<compile_context>
chip_gen: v5e
topology: v5e:2x2
jax: 0.10.0
libtpu: 0.0.40
codegen_flags: <defaults>
</compile_context>

<pallas_src>
import functools

import numpy as np
import jax
import jax.numpy as jnp
from jax.experimental import pallas as pl
from jax.experimental.pallas import tpu as pltpu

# ----------------------------------------------------------------------------
# Model hyper-parameters (bio_vae legacy VQ_VAE defaults, small test config)
# ----------------------------------------------------------------------------
IN_CH = 3
NUM_HIDDENS = 32
NUM_RES_HIDDENS = 16
NUM_RES_LAYERS = 2
EMBEDDING_DIM = 16
NUM_EMBEDDINGS = 32
COMMITMENT_COST = 0.25

LANE = 128
CP = LANE          # output-channel padding (lane-dense stores)
KP = LANE          # codebook rows padded to the lane width

_VMEM_LIMIT = 32 * 1024 * 1024


def _round_up(x, m):
    return (x + m - 1) // m * m


# ----------------------------------------------------------------------------
# Single-shot GEMM kernel: out = [relu]( [relu](A) @ B + bias )
# ----------------------------------------------------------------------------
def _gemm_kernel(a_ref, b_ref, bias_ref, o_ref, *, relu, input_relu):
    a = a_ref[...]
    if input_relu:                       # fused ReLU on the GEMM input (bf16)
        a = jnp.maximum(a, 0.0)
    out = jnp.dot(a, b_ref[...], preferred_element_type=jnp.float32)
    out = out + bias_ref[...]
    if relu:
        out = jnp.maximum(out, 0.0)
    o_ref[...] = out.astype(o_ref.dtype)


def pallas_gemm(a, b, bias, *, relu=False, input_relu=False,
                out_dtype=jnp.bfloat16):
    """a:(M,K) -> bf16, b:(K,Nc) bf16, bias:(1,Nc) f32 -> (M,Nc) out_dtype."""
    M, K = a.shape
    Kb, Nc = b.shape
    assert K == Kb and K % LANE == 0 and Nc % LANE == 0

    tm = min(512, _round_up(M, 8))
    tn = min(512, Nc)
    Mp = _round_up(M, tm)

    a = a.astype(jnp.bfloat16)
    if Mp != M:
        a = jnp.pad(a, ((0, Mp - M), (0, 0)))

    grid = (Mp // tm, Nc // tn)
    flops = 2 * Mp * Nc * K
    bytes_accessed = ((Mp * K + K * Nc) * 2 + Nc * 4
                      + Mp * Nc * np.dtype(out_dtype).itemsize)

    out = pl.pallas_call(
        functools.partial(_gemm_kernel, relu=relu, input_relu=input_relu),
        out_shape=jax.ShapeDtypeStruct((Mp, Nc), out_dtype),
        grid=grid,
        in_specs=[pl.BlockSpec((tm, K), lambda i, j: (i, 0)),
                  pl.BlockSpec((K, tn), lambda i, j: (0, j)),
                  pl.BlockSpec((1, tn), lambda i, j: (0, j))],
        out_specs=pl.BlockSpec((tm, tn), lambda i, j: (i, j)),
        compiler_params=pltpu.CompilerParams(
            dimension_semantics=("parallel", "parallel"),
            vmem_limit_bytes=_VMEM_LIMIT),
        cost_estimate=pl.CostEstimate(flops=flops, transcendentals=0,
                                      bytes_accessed=bytes_accessed),
    )(a, b, bias)
    return out if Mp == M else out[:M]


# ----------------------------------------------------------------------------
# Fused residual stack: the whole stack (NUM_RES_LAYERS blocks, 4 GEMMs) is one
# pallas_call.  The 3x3 conv is expressed as 9 shift-and-mask matmuls
# (S_t @ relu(h)) @ W3_t so no spatial reshapes are needed inside the kernel.
# The stack's trailing ReLU is fused into the consumer's prologue.
# ----------------------------------------------------------------------------
def _res_stack_kernel(h_ref, s_ref, w3_ref, w1_ref, o_ref, *, n_layers, mp):
    h = h_ref[...].astype(jnp.float32)                 # (Mp, CP) f32 carrier
    for l in range(n_layers):
        a = jnp.maximum(h, 0.0).astype(jnp.bfloat16)   # leading ReLU
        acc = jnp.zeros_like(h)
        for t in range(9):                             # 3x3 conv, 9 taps
            s_t = s_ref[t * mp:(t + 1) * mp, :]        # (Mp, Mp) shift+mask
            shifted = jnp.dot(s_t, a, preferred_element_type=jnp.float32)
            w3_t = w3_ref[(l * 9 + t) * CP:(l * 9 + t + 1) * CP, :]
            acc = acc + jnp.dot(shifted.astype(jnp.bfloat16), w3_t,
                                preferred_element_type=jnp.float32)
        r = jnp.maximum(acc, 0.0).astype(jnp.bfloat16)  # middle ReLU
        w1_l = w1_ref[l * CP:(l + 1) * CP, :]
        h = h + jnp.dot(r, w1_l, preferred_element_type=jnp.float32)  # skip add
    o_ref[...] = h.astype(o_ref.dtype)                 # trailing ReLU fused downstream


def residual_stack_fused(h, w3_all, w1_all, s_mat):
    N, H, W, C = h.shape
    n_layers = w1_all.shape[0] // CP
    h_flat = h.reshape(-1, C)
    M = h_flat.shape[0]
    Mp = s_mat.shape[1]
    if Mp != M:
        h_flat = jnp.pad(h_flat, ((0, Mp - M), (0, 0)))
    out = pl.pallas_call(
        functools.partial(_res_stack_kernel, n_layers=n_layers, mp=Mp),
        out_shape=jax.ShapeDtypeStruct((Mp, C), jnp.bfloat16),
        grid=(1,),
        in_specs=[pl.BlockSpec((Mp, C), lambda i: (0, 0)),
                  pl.BlockSpec(s_mat.shape, lambda i: (0, 0)),
                  pl.BlockSpec(w3_all.shape, lambda i: (0, 0)),
                  pl.BlockSpec(w1_all.shape, lambda i: (0, 0))],
        out_specs=pl.BlockSpec((Mp, C), lambda i: (0, 0)),
        compiler_params=pltpu.CompilerParams(
            dimension_semantics=("arbitrary",),
            vmem_limit_bytes=_VMEM_LIMIT),
    )(h_flat, s_mat, w3_all, w1_all)
    return out[:M].reshape(N, H, W, C)


def _build_shift_mats(n, h, w):
    """Nine (Mp x Mp) 0/1 shift-and-mask matrices (tap-major) implementing a
    3x3 / stride-1 / pad-1 conv on an (n, h, w) grid flattened row-major."""
    m = n * h * w
    mp = _round_up(m, 8)
    s = np.zeros((9, mp, mp), np.float32)
    for t, (ty, tx) in enumerate([(a, b) for a in range(3) for b in range(3)]):
        for b in range(n):
            for y in range(h):
                for x in range(w):
                    yy, xx = y + ty - 1, x + tx - 1
                    if 0 <= yy < h and 0 <= xx < w:
                        s[t, b * h * w + y * w + x,
                          b * h * w + yy * w + xx] = 1.0
    return jnp.asarray(s.reshape(9 * mp, mp), dtype=jnp.bfloat16), mp


# ----------------------------------------------------------------------------
# Fused pre-VQ 1x1 conv + vector quantizer (z never leaves VMEM)
# ----------------------------------------------------------------------------
def _prevq_vq_kernel(h_ref, w_ref, b_ref, e_ref, q_ref, loss_ref, perp_ref,
                     sq_acc, cnt_acc, *, m_total, d, k, beta, tm):
    i = pl.program_id(0)
    nsteps = pl.num_programs(0)

    @pl.when(i == 0)
    def _init():
        sq_acc[...] = jnp.zeros_like(sq_acc)
        cnt_acc[...] = jnp.zeros_like(cnt_acc)

    # pre-VQ 1x1 conv, with the encoder stack's trailing ReLU fused in.
    a = jnp.maximum(h_ref[...], 0.0).astype(jnp.bfloat16)
    z = jnp.dot(a, w_ref[...], preferred_element_type=jnp.float32) + b_ref[...]

    e = e_ref[...]                                    # (KP, CP) f32 codebook
    kp = e.shape[0]
    col = jax.lax.broadcasted_iota(jnp.int32, (tm, kp), 1)
    row = jax.lax.broadcasted_iota(jnp.int32, (tm, 1), 0) + i * tm
    valid = row < m_total                             # mask padded rows

    z_sq = jnp.sum(z * z, axis=1, keepdims=True)
    e_sq = jnp.sum(e * e, axis=1)[None, :]
    cross = jax.lax.dot_general(                      # bf16 cross term on the MXU
        z.astype(jnp.bfloat16), e.astype(jnp.bfloat16),
        (((1,), (1,)), ((), ())), preferred_element_type=jnp.float32)
    dist = z_sq + e_sq - 2.0 * cross
    dist = jnp.where(col < k, dist, jnp.float32(1e30))   # mask padded codes

    dmin = jnp.min(dist, axis=1, keepdims=True)
    idx = jnp.min(jnp.where(dist <= dmin, col, kp), axis=1, keepdims=True)
    onehot = jnp.where((col == idx) & valid, 1.0, 0.0).astype(jnp.float32)

    q = jnp.dot(onehot, e, preferred_element_type=jnp.float32)
    q_ref[...] = q

    diff = jnp.where(valid, q - z, 0.0)
    sq_acc[...] += jnp.sum(diff * diff, keepdims=True)
    cnt_acc[...] += jnp.sum(onehot, axis=0, keepdims=True)

    @pl.when(i == nsteps - 1)
    def _finalize():
        mse = sq_acc[...] / jnp.float32(m_total * d)
        loss_ref[...] = (1.0 + beta) * mse            # q_latent + beta*e_latent
        avg = cnt_acc[...] / jnp.float32(m_total)
        ent = jnp.sum(avg * jnp.log(avg + 1e-10), axis=1, keepdims=True)
        perp_ref[...] = jnp.exp(-ent)


def prevq_and_vq(h, w_pre, b_pre, emb_padded, *, n_codes, code_dim, beta):
    """h: (N, H, W, CP) bf16 encoder-stack output (pre trailing ReLU)."""
    N, H, W, C = h.shape
    h_flat = h.reshape(-1, C)
    M = h_flat.shape[0]
    tm = min(512, _round_up(M, 8))
    Mp = _round_up(M, tm)
    if Mp != M:
        h_flat = jnp.pad(h_flat, ((0, Mp - M), (0, 0)))

    q, loss, perp = pl.pallas_call(
        functools.partial(_prevq_vq_kernel, m_total=M, d=code_dim, k=n_codes,
                          beta=float(beta), tm=tm),
        out_shape=(jax.ShapeDtypeStruct((Mp, C), jnp.float32),
                   jax.ShapeDtypeStruct((1, 1), jnp.float32),
                   jax.ShapeDtypeStruct((1, 1), jnp.float32)),
        grid=(Mp // tm,),
        in_specs=[pl.BlockSpec((tm, C), lambda i: (i, 0)),
                  pl.BlockSpec(w_pre.shape, lambda i: (0, 0)),
                  pl.BlockSpec(b_pre.shape, lambda i: (0, 0)),
                  pl.BlockSpec(emb_padded.shape, lambda i: (0, 0))],
        out_specs=(pl.BlockSpec((tm, C), lambda i: (i, 0)),
                   pl.BlockSpec((1, 1), lambda i: (0, 0)),
                   pl.BlockSpec((1, 1), lambda i: (0, 0))),
        scratch_shapes=[pltpu.VMEM((1, 1), jnp.float32),
                        pltpu.VMEM((1, emb_padded.shape[0]), jnp.float32)],
        compiler_params=pltpu.CompilerParams(
            dimension_semantics=("arbitrary",),
            vmem_limit_bytes=_VMEM_LIMIT),
    )(h_flat, w_pre, b_pre, emb_padded)
    quantized = (q if Mp == M else q[:M]).reshape(N, H, W, C)
    return loss[0, 0], quantized, perp[0, 0]


# ----------------------------------------------------------------------------
# Conv / deconv glue (NHWC, packed-K im2col, lane-dense CP outputs)
# ----------------------------------------------------------------------------
def conv2d(x, wmat, bias, kh, kw, stride, padding, cin, *,
           relu=False, input_relu=False, out_dtype=jnp.bfloat16):
    N, H, W, _ = x.shape
    Ho = (H + 2 * padding - kh) // stride + 1
    Wo = (W + 2 * padding - kw) // stride + 1
    xs = x[..., :cin]                               # real channels only (packed K)
    if padding:
        xs = jnp.pad(xs, ((0, 0), (padding, padding), (padding, padding), (0, 0)))
    # TODO(synk): build the patches inside a fused kernel (per-tap DMA) instead
    # of materializing the im2col tensor in HBM for the four standalone convs.
    taps = [xs[:, i:i + stride * (Ho - 1) + 1:stride,
                  j:j + stride * (Wo - 1) + 1:stride, :]
            for i in range(kh) for j in range(kw)]
    patches = jnp.stack(taps, axis=3).reshape(N * Ho * Wo, kh * kw * cin)
    K = kh * kw * cin
    Kp = _round_up(K, LANE)
    if Kp != K:
        patches = jnp.pad(patches, ((0, 0), (0, Kp - K)))
    out = pallas_gemm(patches, wmat, bias, relu=relu, input_relu=input_relu,
                      out_dtype=out_dtype)
    return out.reshape(N, Ho, Wo, CP)


def conv_transpose2d(x, wmat, bias, cin, *, relu=False, input_relu=False,
                     out_dtype=jnp.bfloat16):
    """ConvTranspose2d(k=4, s=2, p=1): all four sub-pixel phases in one GEMM
    (N = 4*CP = 512) over a shared 3x3 window, then a pixel-shuffle."""
    N, H, W, _ = x.shape
    xs = jnp.pad(x[..., :cin], ((0, 0), (1, 1), (1, 1), (0, 0)))
    taps = [xs[:, ty:ty + H, tx:tx + W, :] for ty in range(3) for tx in range(3)]
    patches = jnp.stack(taps, axis=3).reshape(N * H * W, 9 * cin)
    K = 9 * cin
    Kp = _round_up(K, LANE)
    if Kp != K:
        patches = jnp.pad(patches, ((0, 0), (0, Kp - K)))
    out = pallas_gemm(patches, wmat, bias, relu=relu, input_relu=input_relu,
                      out_dtype=out_dtype)             # (M, 4*CP)
    out = out.reshape(N, H, W, 2, 2, CP)               # (n, h, w, py, px, c)
    out = jnp.transpose(out, (0, 1, 3, 2, 4, 5)).reshape(N, 2 * H, 2 * W, CP)
    return out


# ----------------------------------------------------------------------------
# Parameters (PyTorch-layout init, packed into GEMM matrices)
# ----------------------------------------------------------------------------
def _conv_init(key, cout, cin, kh, kw, transposed=False):
    k1, k2 = jax.random.split(key)
    bound = 1.0 / float(cin * kh * kw) ** 0.5
    shape = (cin, cout, kh, kw) if transposed else (cout, cin, kh, kw)
    w = jax.random.uniform(k1, shape, jnp.float32, -bound, bound)
    b = jax.random.uniform(k2, (cout,), jnp.float32, -bound, bound)
    return w, b


def init_raw_params(key):
    keys = jax.random.split(key, 16)
    p = {}
    p['enc1'] = _conv_init(keys[0], NUM_HIDDENS // 2, IN_CH, 4, 4)
    p['enc2'] = _conv_init(keys[1], NUM_HIDDENS, NUM_HIDDENS // 2, 4, 4)
    p['enc3'] = _conv_init(keys[2], NUM_HIDDENS, NUM_HIDDENS, 3, 3)
    p['enc_res'] = []
    for l in range(NUM_RES_LAYERS):
        w1, _ = _conv_init(keys[3 + l], NUM_RES_HIDDENS, NUM_HIDDENS, 3, 3)
        w2, _ = _conv_init(keys[5 + l], NUM_HIDDENS, NUM_RES_HIDDENS, 1, 1)
        p['enc_res'].append((w1, w2))
    p['prevq'] = _conv_init(keys[7], EMBEDDING_DIM, NUM_HIDDENS, 1, 1)
    p['embedding'] = jax.random.uniform(
        keys[8], (NUM_EMBEDDINGS, EMBEDDING_DIM), jnp.float32,
        -1.0 / NUM_EMBEDDINGS, 1.0 / NUM_EMBEDDINGS)
    p['dec1'] = _conv_init(keys[9], NUM_HIDDENS, EMBEDDING_DIM, 3, 3)
    p['dec_res'] = []
    for l in range(NUM_RES_LAYERS):
        w1, _ = _conv_init(keys[10 + l], NUM_RES_HIDDENS, NUM_HIDDENS, 3, 3)
        w2, _ = _conv_init(keys[12 + l], NUM_HIDDENS, NUM_RES_HIDDENS, 1, 1)
        p['dec_res'].append((w1, w2))
    p['dect1'] = _conv_init(keys[14], NUM_HIDDENS // 2, NUM_HIDDENS, 4, 4,
                            transposed=True)
    p['dect2'] = _conv_init(keys[15], IN_CH, NUM_HIDDENS // 2, 4, 4,
                            transposed=True)
    return p


def _prep_conv(w, b):
    # torch (Cout, Cin, kh, kw) -> packed-K matrix (round_up(kh*kw*Cin,128), CP)
    cout, cin, kh, kw = w.shape
    kreal = kh * kw * cin
    kp = _round_up(kreal, LANE)
    wt = jnp.transpose(w, (2, 3, 1, 0)).reshape(kreal, cout)
    wmat = jnp.zeros((kp, CP), jnp.float32).at[:kreal, :cout].set(wt)
    bp = jnp.zeros((1, CP), jnp.float32).at[0, :cout].set(b)
    return wmat.astype(jnp.bfloat16), bp


def _prep_res_w3(w):
    # 3x3 residual conv (bias-free): per-tap channel-padded (9*CP, CP) matrix,
    # used inside the fused residual-stack kernel (activations keep CP lanes).
    cout, cin, kh, kw = w.shape
    wt = jnp.transpose(w, (2, 3, 1, 0)).reshape(kh * kw, cin, cout)
    wp = jnp.zeros((kh * kw, CP, CP), jnp.float32).at[:, :cin, :cout].set(wt)
    return wp.reshape(kh * kw * CP, CP).astype(jnp.bfloat16)


def _prep_res_w1(w):
    cout, cin = w.shape[0], w.shape[1]
    wt = jnp.transpose(w[:, :, 0, 0], (1, 0))
    wp = jnp.zeros((CP, CP), jnp.float32).at[:cin, :cout].set(wt)
    return wp.astype(jnp.bfloat16)


def _prep_deconv(w, b):
    # torch ConvTranspose2d weight (Cin, Cout, 4, 4), stride 2, pad 1.  The four
    # sub-pixel phases are embedded into a shared 3x3/s1 window and their weight
    # matrices concatenated along N -> a single (Kp, 4*CP) GEMM per deconv.
    cin, cout = w.shape[0], w.shape[1]
    kreal = 9 * cin
    kp = _round_up(kreal, LANE)
    wmat = jnp.zeros((kp, 4 * CP), jnp.float32)
    for py in range(2):
        for px in range(2):
            phase = 2 * py + px
            for di in range(2):
                for dj in range(2):
                    ty, tx = py + di, px + dj
                    tap = ty * 3 + tx
                    sub = w[:, :, 3 - py - 2 * di, 3 - px - 2 * dj]  # (Cin, Cout)
                    wmat = wmat.at[tap * cin:(tap + 1) * cin,
                                   phase * CP:phase * CP + cout].set(sub)
    bias4 = jnp.zeros((1, 4 * CP), jnp.float32)
    for phase in range(4):
        bias4 = bias4.at[0, phase * CP:phase * CP + cout].set(b)
    return wmat.astype(jnp.bfloat16), bias4


def prepare_params(raw):
    p = {}
    p['enc1'] = _prep_conv(*raw['enc1'])
    p['enc2'] = _prep_conv(*raw['enc2'])
    p['enc3'] = _prep_conv(*raw['enc3'])
    p['enc_res_w3'] = jnp.concatenate(
        [_prep_res_w3(w3) for w3, _ in raw['enc_res']], axis=0)
    p['enc_res_w1'] = jnp.concatenate(
        [_prep_res_w1(w1) for _, w1 in raw['enc_res']], axis=0)
    p['prevq'] = _prep_conv(*raw['prevq'])
    p['embedding'] = jnp.zeros((KP, CP), jnp.float32).at[
        :NUM_EMBEDDINGS, :EMBEDDING_DIM].set(raw['embedding'])
    p['dec1'] = _prep_conv(*raw['dec1'])
    p['dec_res_w3'] = jnp.concatenate(
        [_prep_res_w3(w3) for w3, _ in raw['dec_res']], axis=0)
    p['dec_res_w1'] = jnp.concatenate(
        [_prep_res_w1(w1) for _, w1 in raw['dec_res']], axis=0)
    p['dect1'] = _prep_deconv(*raw['dect1'])
    p['dect2'] = _prep_deconv(*raw['dect2'])
    return p


# ----------------------------------------------------------------------------
# Bio_VAE forward (default VQ-VAE backbone): (vq_loss, x_recon, perplexity)
# ----------------------------------------------------------------------------
def bio_vae_forward(x_nchw, p, epoch=None):
    x = jnp.transpose(x_nchw.astype(jnp.float32), (0, 2, 3, 1))   # NHWC

    # encoder
    h = conv2d(x, *p['enc1'], 4, 4, 2, 1, IN_CH, relu=True)
    h = conv2d(h, *p['enc2'], 4, 4, 2, 1, NUM_HIDDENS // 2, relu=True)
    h = conv2d(h, *p['enc3'], 3, 3, 1, 1, NUM_HIDDENS)
    s_mat, _ = _build_shift_mats(h.shape[0], h.shape[1], h.shape[2])
    h = residual_stack_fused(h, p['enc_res_w3'], p['enc_res_w1'], s_mat)

    # pre-VQ 1x1 conv + vector quantizer, fused (z stays in VMEM)
    vq_loss, quantized, perplexity = prevq_and_vq(
        h, p['prevq'][0], p['prevq'][1], p['embedding'],
        n_codes=NUM_EMBEDDINGS, code_dim=EMBEDDING_DIM, beta=COMMITMENT_COST)

    # decoder
    # TODO(synk): fuse dec1 into the VQ kernel as well so `quantized` never
    # round-trips through HBM (needs the shift-matrix conv inside that kernel).
    d = conv2d(quantized, *p['dec1'], 3, 3, 1, 1, EMBEDDING_DIM)
    d = residual_stack_fused(d, p['dec_res_w3'], p['dec_res_w1'], s_mat)
    d = conv_transpose2d(d, *p['dect1'], NUM_HIDDENS, relu=True, input_relu=True)
    xr = conv_transpose2d(d, *p['dect2'], NUM_HIDDENS // 2,
                          out_dtype=jnp.float32)

    x_recon = jnp.transpose(xr[..., :IN_CH], (0, 3, 1, 2))         # back to NCHW
    return vq_loss, x_recon, perplexity


# ----------------------------------------------------------------------------

if __name__ == "__main__":
    key = jax.random.PRNGKey(0)
    k_params, k_x = jax.random.split(key)
    raw = init_raw_params(k_params)
    params = prepare_params(raw)
    x = jax.random.uniform(k_x, (2, IN_CH, 16, 16), jnp.float32)   # NCHW

    fwd = jax.jit(bio_vae_forward)
    vq_loss, x_recon, perplexity = fwd(x, params)
    jax.block_until_ready((vq_loss, x_recon, perplexity))

    assert x_recon.shape == x.shape, x_recon.shape
    assert vq_loss.shape == () and perplexity.shape == ()
    assert bool(jnp.all(jnp.isfinite(x_recon)))
    assert bool(jnp.isfinite(vq_loss)) and bool(jnp.isfinite(perplexity))
    print("KERNEL_OK")
</pallas_src>

<mosaic_0001>
module attributes {stable_mosaic.version = 11 : i64} {
  func.func @_gemm_kernel(%arg0: i32, %arg1: i32, %arg2: memref<128x128xbf16, #tpu.memory_space<vmem>>, %arg3: memref<128x128xbf16, #tpu.memory_space<vmem>>, %arg4: memref<1x128xf32, #tpu.memory_space<vmem>>, %arg5: memref<128x128xbf16, #tpu.memory_space<vmem>>) attributes {dimension_semantics = [#tpu.dimension_semantics<parallel>, #tpu.dimension_semantics<parallel>], iteration_bounds = array<i64: 1, 1>, scalar_prefetch = 0 : i64, scratch_operands = 0 : i64, tpu.core_type = #tpu.core_type<tc>, window_params = [{transform_indices = @transform_0, window_bounds = array<i64: 128, 128>}, {transform_indices = @transform_1, window_bounds = array<i64: 128, 128>}, {transform_indices = @transform_2, window_bounds = array<i64: 1, 128>}, {transform_indices = @transform_3, window_bounds = array<i64: 128, 128>}]} {
    %c0 = arith.constant 0 : index
    %c0_0 = arith.constant 0 : index
    %0 = vector.load %arg2[%c0, %c0_0] : memref<128x128xbf16, #tpu.memory_space<vmem>>, vector<128x128xbf16>
    %c0_1 = arith.constant 0 : index
    %c0_2 = arith.constant 0 : index
    %1 = vector.load %arg3[%c0_1, %c0_2] : memref<128x128xbf16, #tpu.memory_space<vmem>>, vector<128x128xbf16>
    %cst = arith.constant dense<0.000000e+00> : vector<128x128xf32>
    %2 = tpu.matmul %0, %1, %cst {dimension_numbers = #tpu.dot_dimension_numbers<[1], [0], [0], [1], [0, 0, 1, 1], [], []>} : vector<128x128xbf16>, vector<128x128xbf16>, vector<128x128xf32> -> vector<128x128xf32>
    %c0_3 = arith.constant 0 : index
    %c0_4 = arith.constant 0 : index
    %3 = vector.load %arg4[%c0_3, %c0_4] : memref<1x128xf32, #tpu.memory_space<vmem>>, vector<1x128xf32>
    %4 = vector.broadcast %3 : vector<1x128xf32> to vector<128x128xf32>
    %5 = arith.addf %2, %4 : vector<128x128xf32>
    %cst_5 = arith.constant 0.000000e+00 : f32
    %6 = vector.broadcast %cst_5 : f32 to vector<128x128xf32>
    %7 = arith.maximumf %5, %6 : vector<128x128xf32>
    %8 = arith.truncf %7 : vector<128x128xf32> to vector<128x128xbf16>
    %c0_6 = arith.constant 0 : index
    %c0_7 = arith.constant 0 : index
    %9 = vector.load %arg5[%c0_6, %c0_7] : memref<128x128xbf16, #tpu.memory_space<vmem>>, vector<128x128xbf16>
    tpu.vector_store %arg5[%c0_6, %c0_7], %8 {strides = array<i32>} : memref<128x128xbf16, #tpu.memory_space<vmem>>, vector<128x128xbf16>,
    return
  }
  func.func @transform_0(%arg0: i32, %arg1: i32) -> (i32, i32) {
    %c0_i32 = arith.constant 0 : i32
    %c0_i32_0 = arith.constant 0 : i32
    return %arg0, %c0_i32 : i32, i32
  }
  func.func @transform_1(%arg0: i32, %arg1: i32) -> (i32, i32) {
    %c0_i32 = arith.constant 0 : i32
    %c0_i32_0 = arith.constant 0 : i32
    return %c0_i32, %arg1 : i32, i32
  }
  func.func @transform_2(%arg0: i32, %arg1: i32) -> (i32, i32) {
    %c0_i32 = arith.constant 0 : i32
    %c0_i32_0 = arith.constant 0 : i32
    return %c0_i32, %arg1 : i32, i32
  }
  func.func @transform_3(%arg0: i32, %arg1: i32) -> (i32, i32) {
    %c0_i32 = arith.constant 0 : i32
    return %arg0, %arg1 : i32, i32
  }
}

module attributes {stable_mosaic.version = 11 : i64} {
  func.func @_gemm_kernel(%arg0: i32, %arg1: i32, %arg2: memref<32x256xbf16, #tpu.memory_space<vmem>>, %arg3: memref<256x128xbf16, #tpu.memory_space<vmem>>, %arg4: memref<1x128xf32, #tpu.memory_space<vmem>>, %arg5: memref<32x128xbf16, #tpu.memory_space<vmem>>) attributes {dimension_semantics = [#tpu.dimension_semantics<parallel>, #tpu.dimension_semantics<parallel>], iteration_bounds = array<i64: 1, 1>, scalar_prefetch = 0 : i64, scratch_operands = 0 : i64, tpu.core_type = #tpu.core_type<tc>, window_params = [{transform_indices = @transform_0, window_bounds = array<i64: 32, 256>}, {transform_indices = @transform_1, window_bounds = array<i64: 256, 128>}, {transform_indices = @transform_2, window_bounds = array<i64: 1, 128>}, {transform_indices = @transform_3, window_bounds = array<i64: 32, 128>}]} {
    %c0 = arith.constant 0 : index
    %c0_0 = arith.constant 0 : index
    %0 = vector.load %arg2[%c0, %c0_0] : memref<32x256xbf16, #tpu.memory_space<vmem>>, vector<32x256xbf16>
    %c0_1 = arith.constant 0 : index
    %c0_2 = arith.constant 0 : index
    %1 = vector.load %arg3[%c0_1, %c0_2] : memref<256x128xbf16, #tpu.memory_space<vmem>>, vector<256x128xbf16>
    %cst = arith.constant dense<0.000000e+00> : vector<32x128xf32>
    %2 = tpu.matmul %0, %1, %cst {dimension_numbers = #tpu.dot_dimension_numbers<[1], [0], [0], [1], [0, 0, 1, 1], [], []>} : vector<32x256xbf16>, vector<256x128xbf16>, vector<32x128xf32> -> vector<32x128xf32>
    %c0_3 = arith.constant 0 : index
    %c0_4 = arith.constant 0 : index
    %3 = vector.load %arg4[%c0_3, %c0_4] : memref<1x128xf32, #tpu.memory_space<vmem>>, vector<1x128xf32>
    %4 = vector.broadcast %3 : vector<1x128xf32> to vector<32x128xf32>
    %5 = arith.addf %2, %4 : vector<32x128xf32>
    %cst_5 = arith.constant 0.000000e+00 : f32
    %6 = vector.broadcast %cst_5 : f32 to vector<32x128xf32>
    %7 = arith.maximumf %5, %6 : vector<32x128xf32>
    %8 = arith.truncf %7 : vector<32x128xf32> to vector<32x128xbf16>
    %c0_6 = arith.constant 0 : index
    %c0_7 = arith.constant 0 : index
    %9 = vector.load %arg5[%c0_6, %c0_7] : memref<32x128xbf16, #tpu.memory_space<vmem>>, vector<32x128xbf16>
    tpu.vector_store %arg5[%c0_6, %c0_7], %8 {strides = array<i32>} : memref<32x128xbf16, #tpu.memory_space<vmem>>, vector<32x128xbf16>,
    return
  }
  func.func @transform_0(%arg0: i32, %arg1: i32) -> (i32, i32) {
    %c0_i32 = arith.constant 0 : i32
    %c0_i32_0 = arith.constant 0 : i32
    return %arg0, %c0_i32 : i32, i32
  }
  func.func @transform_1(%arg0: i32, %arg1: i32) -> (i32, i32) {
    %c0_i32 = arith.constant 0 : i32
    %c0_i32_0 = arith.constant 0 : i32
    return %c0_i32, %arg1 : i32, i32
  }
  func.func @transform_2(%arg0: i32, %arg1: i32) -> (i32, i32) {
    %c0_i32 = arith.constant 0 : i32
    %c0_i32_0 = arith.constant 0 : i32
    return %c0_i32, %arg1 : i32, i32
  }
  func.func @transform_3(%arg0: i32, %arg1: i32) -> (i32, i32) {
    %c0_i32 = arith.constant 0 : i32
    return %arg0, %arg1 : i32, i32
  }
}

module attributes {stable_mosaic.version = 11 : i64} {
  func.func @_gemm_kernel(%arg0: i32, %arg1: i32, %arg2: memref<32x384xbf16, #tpu.memory_space<vmem>>, %arg3: memref<384x128xbf16, #tpu.memory_space<vmem>>, %arg4: memref<1x128xf32, #tpu.memory_space<vmem>>, %arg5: memref<32x128xbf16, #tpu.memory_space<vmem>>) attributes {dimension_semantics = [#tpu.dimension_semantics<parallel>, #tpu.dimension_semantics<parallel>], iteration_bounds = array<i64: 1, 1>, scalar_prefetch = 0 : i64, scratch_operands = 0 : i64, tpu.core_type = #tpu.core_type<tc>, window_params = [{transform_indices = @transform_0, window_bounds = array<i64: 32, 384>}, {transform_indices = @transform_1, window_bounds = array<i64: 384, 128>}, {transform_indices = @transform_2, window_bounds = array<i64: 1, 128>}, {transform_indices = @transform_3, window_bounds = array<i64: 32, 128>}]} {
    %c0 = arith.constant 0 : index
    %c0_0 = arith.constant 0 : index
    %0 = vector.load %arg2[%c0, %c0_0] : memref<32x384xbf16, #tpu.memory_space<vmem>>, vector<32x384xbf16>
    %c0_1 = arith.constant 0 : index
    %c0_2 = arith.constant 0 : index
    %1 = vector.load %arg3[%c0_1, %c0_2] : memref<384x128xbf16, #tpu.memory_space<vmem>>, vector<384x128xbf16>
    %cst = arith.constant dense<0.000000e+00> : vector<32x128xf32>
    %2 = tpu.matmul %0, %1, %cst {dimension_numbers = #tpu.dot_dimension_numbers<[1], [0], [0], [1], [0, 0, 1, 1], [], []>} : vector<32x384xbf16>, vector<384x128xbf16>, vector<32x128xf32> -> vector<32x128xf32>
    %c0_3 = arith.constant 0 : index
    %c0_4 = arith.constant 0 : index
    %3 = vector.load %arg4[%c0_3, %c0_4] : memref<1x128xf32, #tpu.memory_space<vmem>>, vector<1x128xf32>
    %4 = vector.broadcast %3 : vector<1x128xf32> to vector<32x128xf32>
    %5 = arith.addf %2, %4 : vector<32x128xf32>
    %6 = arith.truncf %5 : vector<32x128xf32> to vector<32x128xbf16>
    %c0_5 = arith.constant 0 : index
    %c0_6 = arith.constant 0 : index
    %7 = vector.load %arg5[%c0_5, %c0_6] : memref<32x128xbf16, #tpu.memory_space<vmem>>, vector<32x128xbf16>
    tpu.vector_store %arg5[%c0_5, %c0_6], %6 {strides = array<i32>} : memref<32x128xbf16, #tpu.memory_space<vmem>>, vector<32x128xbf16>,
    return
  }
  func.func @transform_0(%arg0: i32, %arg1: i32) -> (i32, i32) {
    %c0_i32 = arith.constant 0 : i32
    %c0_i32_0 = arith.constant 0 : i32
    return %arg0, %c0_i32 : i32, i32
  }
  func.func @transform_1(%arg0: i32, %arg1: i32) -> (i32, i32) {
    %c0_i32 = arith.constant 0 : i32
    %c0_i32_0 = arith.constant 0 : i32
    return %c0_i32, %arg1 : i32, i32
  }
  func.func @transform_2(%arg0: i32, %arg1: i32) -> (i32, i32) {
    %c0_i32 = arith.constant 0 : i32
    %c0_i32_0 = arith.constant 0 : i32
    return %c0_i32, %arg1 : i32, i32
  }
  func.func @transform_3(%arg0: i32, %arg1: i32) -> (i32, i32) {
    %c0_i32 = arith.constant 0 : i32
    return %arg0, %arg1 : i32, i32
  }
}

module attributes {stable_mosaic.version = 11 : i64} {
  func.func @_res_stack_kernel(%arg0: i32, %arg1: memref<32x128xbf16, #tpu.memory_space<vmem>>, %arg2: memref<288x32xbf16, #tpu.memory_space<vmem>>, %arg3: memref<2304x128xbf16, #tpu.memory_space<vmem>>, %arg4: memref<256x128xbf16, #tpu.memory_space<vmem>>, %arg5: memref<32x128xbf16, #tpu.memory_space<vmem>>) attributes {dimension_semantics = [#tpu.dimension_semantics<arbitrary>], iteration_bounds = array<i64: 1>, scalar_prefetch = 0 : i64, scratch_operands = 0 : i64, tpu.core_type = #tpu.core_type<tc>, window_params = [{pipeline_mode = #tpu.pipeline_mode<synchronous>, transform_indices = @transform_0, window_bounds = array<i64: 32, 128>}, {pipeline_mode = #tpu.pipeline_mode<synchronous>, transform_indices = @transform_1, window_bounds = array<i64: 288, 32>}, {pipeline_mode = #tpu.pipeline_mode<synchronous>, transform_indices = @transform_2, window_bounds = array<i64: 2304, 128>}, {pipeline_mode = #tpu.pipeline_mode<synchronous>, transform_indices = @transform_3, window_bounds = array<i64: 256, 128>}, {pipeline_mode = #tpu.pipeline_mode<synchronous>, transform_indices = @transform_4, window_bounds = array<i64: 32, 128>}]} {
    %c0 = arith.constant 0 : index
    %c0_0 = arith.constant 0 : index
    %0 = vector.load %arg1[%c0, %c0_0] : memref<32x128xbf16, #tpu.memory_space<vmem>>, vector<32x128xbf16>
    %1 = arith.extf %0 : vector<32x128xbf16> to vector<32x128xf32>
    %cst = arith.constant 0.000000e+00 : f32
    %2 = vector.broadcast %cst : f32 to vector<32x128xf32>
    %3 = arith.maximumf %1, %2 : vector<32x128xf32>
    %4 = arith.truncf %3 : vector<32x128xf32> to vector<32x128xbf16>
    %cst_1 = arith.constant 0.000000e+00 : f32
    %5 = vector.broadcast %cst_1 : f32 to vector<32x128xf32>
    %c0_2 = arith.constant 0 : index
    %c0_3 = arith.constant 0 : index
    %6 = vector.load %arg2[%c0_2, %c0_3] : memref<288x32xbf16, #tpu.memory_space<vmem>>, vector<32x32xbf16>
    %cst_4 = arith.constant dense<0.000000e+00> : vector<32x128xf32>
    %7 = tpu.matmul %6, %4, %cst_4 {dimension_numbers = #tpu.dot_dimension_numbers<[1], [0], [0], [1], [0, 0, 1, 1], [], []>} : vector<32x32xbf16>, vector<32x128xbf16>, vector<32x128xf32> -> vector<32x128xf32>
    %c0_5 = arith.constant 0 : index
    %c0_6 = arith.constant 0 : index
    %8 = vector.load %arg3[%c0_5, %c0_6] : memref<2304x128xbf16, #tpu.memory_space<vmem>>, vector<128x128xbf16>
    %9 = arith.truncf %7 : vector<32x128xf32> to vector<32x128xbf16>
    %cst_7 = arith.constant dense<0.000000e+00> : vector<32x128xf32>
    %10 = tpu.matmul %9, %8, %cst_7 {dimension_numbers = #tpu.dot_dimension_numbers<[1], [0], [0], [1], [0, 0, 1, 1], [], []>} : vector<32x128xbf16>, vector<128x128xbf16>, vector<32x128xf32> -> vector<32x128xf32>
    %11 = arith.addf %5, %10 : vector<32x128xf32>
    %c32 = arith.constant 32 : index
    %c0_8 = arith.constant 0 : index
    %12 = vector.load %arg2[%c32, %c0_8] : memref<288x32xbf16, #tpu.memory_space<vmem>>, vector<32x32xbf16>
    %cst_9 = arith.constant dense<0.000000e+00> : vector<32x128xf32>
    %13 = tpu.matmul %12, %4, %cst_9 {dimension_numbers = #tpu.dot_dimension_numbers<[1], [0], [0], [1], [0, 0, 1, 1], [], []>} : vector<32x32xbf16>, vector<32x128xbf16>, vector<32x128xf32> -> vector<32x128xf32>
    %c128 = arith.constant 128 : index
    %c0_10 = arith.constant 0 : index
    %14 = vector.load %arg3[%c128, %c0_10] : memref<2304x128xbf16, #tpu.memory_space<vmem>>, vector<128x128xbf16>
    %15 = arith.truncf %13 : vector<32x128xf32> to vector<32x128xbf16>
    %cst_11 = arith.constant dense<0.000000e+00> : vector<32x128xf32>
    %16 = tpu.matmul %15, %14, %cst_11 {dimension_numbers = #tpu.dot_dimension_numbers<[1], [0], [0], [1], [0, 0, 1, 1], [], []>} : vector<32x128xbf16>, vector<128x128xbf16>, vector<32x128xf32> -> vector<32x128xf32>
    %17 = arith.addf %11, %16 : vector<32x128xf32>
    %c64 = arith.constant 64 : index
    %c0_12 = arith.constant 0 : index
    %18 = vector.load %arg2[%c64, %c0_12] : memref<288x32xbf16, #tpu.memory_space<vmem>>, vector<32x32xbf16>
    %cst_13 = arith.constant dense<0.000000e+00> : vector<32x128xf32>
    %19 = tpu.matmul %18, %4, %cst_13 {dimension_numbers = #tpu.dot_dimension_numbers<[1], [0], [0], [1], [0, 0, 1, 1], [], []>} : vector<32x32xbf16>, vector<32x128xbf16>, vector<32x128xf32> -> vector<32x128xf32>
    %c256 = arith.constant 256 : index
    %c0_14 = arith.constant 0 : index
    %20 = vector.load %arg3[%c256, %c0_14] : memref<2304x128xbf16, #tpu.memory_space<vmem>>, vector<128x128xbf16>
    %21 = arith.truncf %19 : vector<32x128xf32> to vector<32x128xbf16>
    %cst_15 = arith.constant dense<0.000000e+00> : vector<32x128xf32>
    %22 = tpu.matmul %21, %20, %cst_15 {dimension_numbers = #tpu.dot_dimension_numbers<[1], [0], [0], [1], [0, 0, 1, 1], [], []>} : vector<32x128xbf16>, vector<128x128xbf16>, vector<32x128xf32> -> vector<32x128xf32>
    %23 = arith.addf %17, %22 : vector<32x128xf32>
    %c96 = arith.constant 96 : index
    %c0_16 = arith.constant 0 : index
    %24 = vector.load %arg2[%c96, %c0_16] : memref<288x32xbf16, #tpu.memory_space<vmem>>, vector<32x32xbf16>
    %cst_17 = arith.constant dense<0.000000e+00> : vector<32x128xf32>
    %25 = tpu.matmul %24, %4, %cst_17 {dimension_numbers = #tpu.dot_dimension_numbers<[1], [0], [0], [1], [0, 0, 1, 1], [], []>} : vector<32x32xbf16>, vector<32x128xbf16>, vector<32x128xf32> -> vector<32x128xf32>
    %c384 = arith.constant 384 : index
    %c0_18 = arith.constant 0 : index
    %26 = vector.load %arg3[%c384, %c0_18] : memref<2304x128xbf16, #tpu.memory_space<vmem>>, vector<128x128xbf16>
    %27 = arith.truncf %25 : vector<32x128xf32> to vector<32x128xbf16>
    %cst_19 = arith.constant dense<0.000000e+00> : vector<32x128xf32>
    %28 = tpu.matmul %27, %26, %cst_19 {dimension_numbers = #tpu.dot_dimension_numbers<[1], [0], [0], [1], [0, 0, 1, 1], [], []>} : vector<32x128xbf16>, vector<128x128xbf16>, vector<32x128xf32> -> vector<32x128xf32>
    %29 = arith.addf %23, %28 : vector<32x128xf32>
    %c128_20 = arith.constant 128 : index
    %c0_21 = arith.constant 0 : index
    %30 = vector.load %arg2[%c128_20, %c0_21] : memref<288x32xbf16, #tpu.memory_space<vmem>>, vector<32x32xbf16>
    %cst_22 = arith.constant dense<0.000000e+00> : vector<32x128xf32>
    %31 = tpu.matmul %30, %4, %cst_22 {dimension_numbers = #tpu.dot_dimension_numbers<[1], [0], [0], [1], [0, 0, 1, 1], [], []>} : vector<32x32xbf16>, vector<32x128xbf16>, vector<32x128xf32> -> vector<32x128xf32>
    %c512 = arith.constant 512 : index
    %c0_23 = arith.constant 0 : index
    %32 = vector.load %arg3[%c512, %c0_23] : memref<2304x128xbf16, #tpu.memory_space<vmem>>, vector<128x128xbf16>
    %33 = arith.truncf %31 : vector<32x128xf32> to vector<32x128xbf16>
    %cst_24 = arith.constant dense<0.000000e+00> : vector<32x128xf32>
    %34 = tpu.matmul %33, %32, %cst_24 {dimension_numbers = #tpu.dot_dimension_numbers<[1], [0], [0], [1], [0, 0, 1, 1], [], []>} : vector<32x128xbf16>, vector<128x128xbf16>, vector<32x128xf32> -> vector<32x128xf32>
    %35 = arith.addf %29, %34 : vector<32x128xf32>
    %c160 = arith.constant 160 : index
    %c0_25 = arith.constant 0 : index
    %36 = vector.load %arg2[%c160, %c0_25] : memref<288x32xbf16, #tpu.memory_space<vmem>>, vector<32x32xbf16>
    %cst_26 = arith.constant dense<0.000000e+00> : vector<32x128xf32>
    %37 = tpu.matmul %36, %4, %cst_26 {dimension_numbers = #tpu.dot_dimension_numbers<[1], [0], [0], [1], [0, 0, 1, 1], [], []>} : vector<32x32xbf16>, vector<32x128xbf16>, vector<32x128xf32> -> vector<32x128xf32>
    %c640 = arith.constant 640 : index
    %c0_27 = arith.constant 0 : index
    %38 = vector.load %arg3[%c640, %c0_27] : memref<2304x128xbf16, #tpu.memory_space<vmem>>, vector<128x128xbf16>
    %39 = arith.truncf %37 : vector<32x128xf32> to vector<32x128xbf16>
    %cst_28 = arith.constant dense<0.000000e+00> : vector<32x128xf32>
    %40 = tpu.matmul %39, %38, %cst_28 {dimension_numbers = #tpu.dot_dimension_numbers<[1], [0], [0], [1], [0, 0, 1, 1], [], []>} : vector<32x128xbf16>, vector<128x128xbf16>, vector<32x128xf32> -> vector<32x128xf32>
    %41 = arith.addf %35, %40 : vector<32x128xf32>
    %c192 = arith.constant 192 : index
    %c0_29 = arith.constant 0 : index
    %42 = vector.load %arg2[%c192, %c0_29] : memref<288x32xbf16, #tpu.memory_space<vmem>>, vector<32x32xbf16>
    %cst_30 = arith.constant dense<0.000000e+00> : vector<32x128xf32>
    %43 = tpu.matmul %42, %4, %cst_30 {dimension_numbers = #tpu.dot_dimension_numbers<[1], [0], [0], [1], [0, 0, 1, 1], [], []>} : vector<32x32xbf16>, vector<32x128xbf16>, vector<32x128xf32> -> vector<32x128xf32>
    %c768 = arith.constant 768 : index
    %c0_31 = arith.constant 0 : index
    %44 = vector.load %arg3[%c768, %c0_31] : memref<2304x128xbf16, #tpu.memory_space<vmem>>, vector<128x128xbf16>
    %45 = arith.truncf %43 : vector<32x128xf32> to vector<32x128xbf16>
    %cst_32 = arith.constant dense<0.000000e+00> : vector<32x128xf32>
    %46 = tpu.matmul %45, %44, %cst_32 {dimension_numbers = #tpu.dot_dimension_numbers<[1], [0], [0], [1], [0, 0, 1, 1], [], []>} : vector<32x128xbf16>, vector<128x128xbf16>, vector<32x128xf32> -> vector<32x128xf32>
    %47 = arith.addf %41, %46 : vector<32x128xf32>
    %c224 = arith.constant 224 : index
    %c0_33 = arith.constant 0 : index
    %48 = vector.load %arg2[%c224, %c0_33] : memref<288x32xbf16, #tpu.memory_space<vmem>>, vector<32x32xbf16>
    %cst_34 = arith.constant dense<0.000000e+00> : vector<32x128xf32>
    %49 = tpu.matmul %48, %4, %cst_34 {dimension_numbers = #tpu.dot_dimension_numbers<[1], [0], [0], [1], [0, 0, 1, 1], [], []>} : vector<32x32xbf16>, vector<32x128xbf16>, vector<32x128xf32> -> vector<32x128xf32>
    %c896 = arith.constant 896 : index
    %c0_35 = arith.constant 0 : index
    %50 = vector.load %arg3[%c896, %c0_35] : memref<2304x128xbf16, #tpu.memory_space<vmem>>, vector<128x128xbf16>
    %51 = arith.truncf %49 : vector<32x128xf32> to vector<32x128xbf16>
    %cst_36 = arith.constant dense<0.000000e+00> : vector<32x128xf32>
    %52 = tpu.matmul %51, %50, %cst_36 {dimension_numbers = #tpu.dot_dimension_numbers<[1], [0], [0], [1], [0, 0, 1, 1], [], []>} : vector<32x128xbf16>, vector<128x128xbf16>, vector<32x128xf32> -> vector<32x128xf32>
    %53 = arith.addf %47, %52 : vector<32x128xf32>
    %c256_37 = arith.constant 256 : index
    %c0_38 = arith.constant 0 : index
    %54 = vector.load %arg2[%c256_37, %c0_38] : memref<288x32xbf16, #tpu.memory_space<vmem>>, vector<32x32xbf16>
    %cst_39 = arith.constant dense<0.000000e+00> : vector<32x128xf32>
    %55 = tpu.matmul %54, %4, %cst_39 {dimension_numbers = #tpu.dot_dimension_numbers<[1], [0], [0], [1], [0, 0, 1, 1], [], []>} : vector<32x32xbf16>, vector<32x128xbf16>, vector<32x128xf32> -> vector<32x128xf32>
    %c1024 = arith.constant 1024 : index
    %c0_40 = arith.constant 0 : index
    %56 = vector.load %arg3[%c1024, %c0_40] : memref<2304x128xbf16, #tpu.memory_space<vmem>>, vector<128x128xbf16>
    %57 = arith.truncf %55 : vector<32x128xf32> to vector<32x128xbf16>
    %cst_41 = arith.constant dense<0.000000e+00> : vector<32x128xf32>
    %58 = tpu.matmul %57, %56, %cst_41 {dimension_numbers = #tpu.dot_dimension_numbers<[1], [0], [0], [1], [0, 0, 1, 1], [], []>} : vector<32x128xbf16>, vector<128x128xbf16>, vector<32x128xf32> -> vector<32x128xf32>
    %59 = arith.addf %53, %58 : vector<32x128xf32>
    %cst_42 = arith.constant 0.000000e+00 : f32
    %60 = vector.broadcast %cst_42 : f32 to vector<32x128xf32>
    %61 = arith.maximumf %59, %60 : vector<32x128xf32>
    %62 = arith.truncf %61 : vector<32x128xf32> to vector<32x128xbf16>
    %c0_43 = arith.constant 0 : index
    %c0_44 = arith.constant 0 : index
    %63 = vector.load %arg4[%c0_43, %c0_44] : memref<256x128xbf16, #tpu.memory_space<vmem>>, vector<128x128xbf16>
    %cst_45 = arith.constant dense<0.000000e+00> : vector<32x128xf32>
    %64 = tpu.matmul %62, %63, %cst_45 {dimension_numbers = #tpu.dot_dimension_numbers<[1], [0], [0], [1], [0, 0, 1, 1], [], []>} : vector<32x128xbf16>, vector<128x128xbf16>, vector<32x128xf32> -> vector<32x128xf32>
    %65 = arith.addf %1, %64 : vector<32x128xf32>
    %cst_46 = arith.constant 0.000000e+00 : f32
    %66 = vector.broadcast %cst_46 : f32 to vector<32x128xf32>
    %67 = arith.maximumf %65, %66 : vector<32x128xf32>
    %68 = arith.truncf %67 : vector<32x128xf32> to vector<32x128xbf16>
    %cst_47 = arith.constant 0.000000e+00 : f32
    %69 = vector.broadcast %cst_47 : f32 to vector<32x128xf32>
    %c0_48 = arith.constant 0 : index
    %c0_49 = arith.constant 0 : index
    %70 = vector.load %arg2[%c0_48, %c0_49] : memref<288x32xbf16, #tpu.memory_space<vmem>>, vector<32x32xbf16>
    %cst_50 = arith.constant dense<0.000000e+00> : vector<32x128xf32>
    %71 = tpu.matmul %70, %68, %cst_50 {dimension_numbers = #tpu.dot_dimension_numbers<[1], [0], [0], [1], [0, 0, 1, 1], [], []>} : vector<32x32xbf16>, vector<32x128xbf16>, vector<32x128xf32> -> vector<32x128xf32>
    %c1152 = arith.constant 1152 : index
    %c0_51 = arith.constant 0 : index
    %72 = vector.load %arg3[%c1152, %c0_51] : memref<2304x128xbf16, #tpu.memory_space<vmem>>, vector<128x128xbf16>
    %73 = arith.truncf %71 : vector<32x128xf32> to vector<32x128xbf16>
    %cst_52 = arith.constant dense<0.000000e+00> : vector<32x128xf32>
    %74 = tpu.matmul %73, %72, %cst_52 {dimension_numbers = #tpu.dot_dimension_numbers<[1], [0], [0], [1], [0, 0, 1, 1], [], []>} : vector<32x128xbf16>, vector<128x128xbf16>, vector<32x128xf32> -> vector<32x128xf32>
    %75 = arith.addf %69, %74 : vector<32x128xf32>
    %c32_53 = arith.constant 32 : index
    %c0_54 = arith.constant 0 : index
    %76 = vector.load %arg2[%c32_53, %c0_54] : memref<288x32xbf16, #tpu.memory_space<vmem>>, vector<32x32xbf16>
    %cst_55 = arith.constant dense<0.000000e+00> : vector<32x128xf32>
    %77 = tpu.matmul %76, %68, %cst_55 {dimension_numbers = #tpu.dot_dimension_numbers<[1], [0], [0], [1], [0, 0, 1, 1], [], []>} : vector<32x32xbf16>, vector<32x128xbf16>, vector<32x128xf32> -> vector<32x128xf32>
    %c1280 = arith.constant 1280 : index
    %c0_56 = arith.constant 0 : index
    %78 = vector.load %arg3[%c1280, %c0_56] : memref<2304x128xbf16, #tpu.memory_space<vmem>>, vector<128x128xbf16>
    %79 = arith.truncf %77 : vector<32x128xf32> to vector<32x128xbf16>
    %cst_57 = arith.constant dense<0.000000e+00> : vector<32x128xf32>
    %80 = tpu.matmul %79, %78, %cst_57 {dimension_numbers = #tpu.dot_dimension_numbers<[1], [0], [0], [1], [0, 0, 1, 1], [], []>} : vector<32x128xbf16>, vector<128x128xbf16>, vector<32x128xf32> -> vector<32x128xf32>
    %81 = arith.addf %75, %80 : vector<32x128xf32>
    %c64_58 = arith.constant 64 : index
    %c0_59 = arith.constant 0 : index
    %82 = vector.load %arg2[%c64_58, %c0_59] : memref<288x32xbf16, #tpu.memory_space<vmem>>, vector<32x32xbf16>
    %cst_60 = arith.constant dense<0.000000e+00> : vector<32x128xf32>
    %83 = tpu.matmul %82, %68, %cst_60 {dimension_numbers = #tpu.dot_dimension_numbers<[1], [0], [0], [1], [0, 0, 1, 1], [], []>} : vector<32x32xbf16>, vector<32x128xbf16>, vector<32x128xf32> -> vector<32x128xf32>
    %c1408 = arith.constant 1408 : index
    %c0_61 = arith.constant 0 : index
    %84 = vector.load %arg3[%c1408, %c0_61] : memref<2304x128xbf16, #tpu.memory_space<vmem>>, vector<128x128xbf16>
    %85 = arith.truncf %83 : vector<32x128xf32> to vector<32x128xbf16>
    %cst_62 = arith.constant dense<0.000000e+00> : vector<32x128xf32>
    %86 = tpu.matmul %85, %84, %cst_62 {dimension_numbers = #tpu.dot_dimension_numbers<[1], [0], [0], [1], [0, 0, 1, 1], [], []>} : vector<32x128xbf16>, vector<128x128xbf16>, vector<32x128xf32> -> vector<32x128xf32>
    %87 = arith.addf %81, %86 : vector<32x128xf32>
    %c96_63 = arith.constant 96 : index
    %c0_64 = arith.constant 0 : index
    %88 = vector.load %arg2[%c96_63, %c0_64] : memref<288x32xbf16, #tpu.memory_space<vmem>>, vector<32x32xbf16>
    %cst_65 = arith.constant dense<0.000000e+00> : vector<32x128xf32>
    %89 = tpu.matmul %88, %68, %cst_65 {dimension_numbers = #tpu.dot_dimension_numbers<[1], [0], [0], [1], [0, 0, 1, 1], [], []>} : vector<32x32xbf16>, vector<32x128xbf16>, vector<32x128xf32> -> vector<32x128xf32>
    %c1536 = arith.constant 1536 : index
    %c0_66 = arith.constant 0 : index
    %90 = vector.load %arg3[%c1536, %c0_66] : memref<2304x128xbf16, #tpu.memory_space<vmem>>, vector<128x128xbf16>
    %91 = arith.truncf %89 : vector<32x128xf32> to vector<32x128xbf16>
    %cst_67 = arith.constant dense<0.000000e+00> : vector<32x128xf32>
    %92 = tpu.matmul %91, %90, %cst_67 {dimension_numbers = #tpu.dot_dimension_numbers<[1], [0], [0], [1], [0, 0, 1, 1], [], []>} : vector<32x128xbf16>, vector<128x128xbf16>, vector<32x128xf32> -> vector<32x128xf32>
    %93 = arith.addf %87, %92 : vector<32x128xf32>
    %c128_68 = arith.constant 128 : index
    %c0_69 = arith.constant 0 : index
    %94 = vector.load %arg2[%c128_68, %c0_69] : memref<288x32xbf16, #tpu.memory_space<vmem>>, vector<32x32xbf16>
    %cst_70 = arith.constant dense<0.000000e+00> : vector<32x128xf32>
    %95 = tpu.matmul %94, %68, %cst_70 {dimension_numbers = #tpu.dot_dimension_numbers<[1], [0], [0], [1], [0, 0, 1, 1], [], []>} : vector<32x32xbf16>, vector<32x128xbf16>, vector<32x128xf32> -> vector<32x128xf32>
    %c1664 = arith.constant 1664 : index
    %c0_71 = arith.constant 0 : index
    %96 = vector.load %arg3[%c1664, %c0_71] : memref<2304x128xbf16, #tpu.memory_space<vmem>>, vector<128x128xbf16>
    %97 = arith.truncf %95 : vector<32x128xf32> to vector<32x128xbf16>
    %cst_72 = arith.constant dense<0.000000e+00> : vector<32x128xf32>
    %98 = tpu.matmul %97, %96, %cst_72 {dimension_numbers = #tpu.dot_dimension_numbers<[1], [0], [0], [1], [0, 0, 1, 1], [], []>} : vector<32x128xbf16>, vector<128x128xbf16>, vector<32x128xf32> -> vector<32x128xf32>
    %99 = arith.addf %93, %98 : vector<32x128xf32>
    %c160_73 = arith.constant 160 : index
    %c0_74 = arith.constant 0 : index
    %100 = vector.load %arg2[%c160_73, %c0_74] : memref<288x32xbf16, #tpu.memory_space<vmem>>, vector<32x32xbf16>
    %cst_75 = arith.constant dense<0.000000e+00> : vector<32x128xf32>
    %101 = tpu.matmul %100, %68, %cst_75 {dimension_numbers = #tpu.dot_dimension_numbers<[1], [0], [0], [1], [0, 0, 1, 1], [], []>} : vector<32x32xbf16>, vector<32x128xbf16>, vector<32x128xf32> -> vector<32x128xf32>
    %c1792 = arith.constant 1792 : index
    %c0_76 = arith.constant 0 : index
    %102 = vector.load %arg3[%c1792, %c0_76] : memref<2304x128xbf16, #tpu.memory_space<vmem>>, vector<128x128xbf16>
    %103 = arith.truncf %101 : vector<32x128xf32> to vector<32x128xbf16>
    %cst_77 = arith.constant dense<0.000000e+00> : vector<32x128xf32>
    %104 = tpu.matmul %103, %102, %cst_77 {dimension_numbers = #tpu.dot_dimension_numbers<[1], [0], [0], [1], [0, 0, 1, 1], [], []>} : vector<32x128xbf16>, vector<128x128xbf16>, vector<32x128xf32> -> vector<32x128xf32>
    %105 = arith.addf %99, %104 : vector<32x128xf32>
    %c192_78 = arith.constant 192 : index
    %c0_79 = arith.constant 0 : index
    %106 = vector.load %arg2[%c192_78, %c0_79] : memref<288x32xbf16, #tpu.memory_space<vmem>>, vector<32x32xbf16>
    %cst_80 = arith.constant dense<0.000000e+00> : vector<32x128xf32>
    %107 = tpu.matmul %106, %68, %cst_80 {dimension_numbers = #tpu.dot_dimension_numbers<[1], [0], [0], [1], [0, 0, 1, 1], [], []>} : vector<32x32xbf16>, vector<32x128xbf16>, vector<32x128xf32> -> vector<32x128xf32>
    %c1920 = arith.constant 1920 : index
    %c0_81 = arith.constant 0 : index
    %108 = vector.load %arg3[%c1920, %c0_81] : memref<2304x128xbf16, #tpu.memory_space<vmem>>, vector<128x128xbf16>
    %109 = arith.truncf %107 : vector<32x128xf32> to vector<32x128xbf16>
    %cst_82 = arith.constant dense<0.000000e+00> : vector<32x128xf32>
    %110 = tpu.matmul %109, %108, %cst_82 {dimension_numbers = #tpu.dot_dimension_numbers<[1], [0], [0], [1], [0, 0, 1, 1], [], []>} : vector<32x128xbf16>, vector<128x128xbf16>, vector<32x128xf32> -> vector<32x128xf32>
    %111 = arith.addf %105, %110 : vector<32x128xf32>
    %c224_83 = arith.constant 224 : index
    %c0_84 = arith.constant 0 : index
    %112 = vector.load %arg2[%c224_83, %c0_84] : memref<288x32xbf16, #tpu.memory_space<vmem>>, vector<32x32xbf16>
    %cst_85 = arith.constant dense<0.000000e+00> : vector<32x128xf32>
    %113 = tpu.matmul %112, %68, %cst_85 {dimension_numbers = #tpu.dot_dimension_numbers<[1], [0], [0], [1], [0, 0, 1, 1], [], []>} : vector<32x32xbf16>, vector<32x128xbf16>, vector<32x128xf32> -> vector<32x128xf32>
    %c2048 = arith.constant 2048 : index
    %c0_86 = arith.constant 0 : index
    %114 = vector.load %arg3[%c2048, %c0_86] : memref<2304x128xbf16, #tpu.memory_space<vmem>>, vector<128x128xbf16>
    %115 = arith.truncf %113 : vector<32x128xf32> to vector<32x128xbf16>
    %cst_87 = arith.constant dense<0.000000e+00> : vector<32x128xf32>
    %116 = tpu.matmul %115, %114, %cst_87 {dimension_numbers = #tpu.dot_dimension_numbers<[1], [0], [0], [1], [0, 0, 1, 1], [], []>} : vector<32x128xbf16>, vector<128x128xbf16>, vector<32x128xf32> -> vector<32x128xf32>
    %117 = arith.addf %111, %116 : vector<32x128xf32>
    %c256_88 = arith.constant 256 : index
    %c0_89 = arith.constant 0 : index
    %118 = vector.load %arg2[%c256_88, %c0_89] : memref<288x32xbf16, #tpu.memory_space<vmem>>, vector<32x32xbf16>
    %cst_90 = arith.constant dense<0.000000e+00> : vector<32x128xf32>
    %119 = tpu.matmul %118, %68, %cst_90 {dimension_numbers = #tpu.dot_dimension_numbers<[1], [0], [0], [1], [0, 0, 1, 1], [], []>} : vector<32x32xbf16>, vector<32x128xbf16>, vector<32x128xf32> -> vector<32x128xf32>
    %c2176 = arith.constant 2176 : index
    %c0_91 = arith.constant 0 : index
    %120 = vector.load %arg3[%c2176, %c0_91] : memref<2304x128xbf16, #tpu.memory_space<vmem>>, vector<128x128xbf16>
    %121 = arith.truncf %119 : vector<32x128xf32> to vector<32x128xbf16>
    %cst_92 = arith.constant dense<0.000000e+00> : vector<32x128xf32>
    %122 = tpu.matmul %121, %120, %cst_92 {dimension_numbers = #tpu.dot_dimension_numbers<[1], [0], [0], [1], [0, 0, 1, 1], [], []>} : vector<32x128xbf16>, vector<128x128xbf16>, vector<32x128xf32> -> vector<32x128xf32>
    %123 = arith.addf %117, %122 : vector<32x128xf32>
    %cst_93 = arith.constant 0.000000e+00 : f32
    %124 = vector.broadcast %cst_93 : f32 to vector<32x128xf32>
    %125 = arith.maximumf %123, %124 : vector<32x128xf32>
    %126 = arith.truncf %125 : vector<32x128xf32> to vector<32x128xbf16>
    %c128_94 = arith.constant 128 : index
    %c0_95 = arith.constant 0 : index
    %127 = vector.load %arg4[%c128_94, %c0_95] : memref<256x128xbf16, #tpu.memory_space<vmem>>, vector<128x128xbf16>
    %cst_96 = arith.constant dense<0.000000e+00> : vector<32x128xf32>
    %128 = tpu.matmul %126, %127, %cst_96 {dimension_numbers = #tpu.dot_dimension_numbers<[1], [0], [0], [1], [0, 0, 1, 1], [], []>} : vector<32x128xbf16>, vector<128x128xbf16>, vector<32x128xf32> -> vector<32x128xf32>
    %129 = arith.addf %65, %128 : vector<32x128xf32>
    %130 = arith.truncf %129 : vector<32x128xf32> to vector<32x128xbf16>
    %c0_97 = arith.constant 0 : index
    %c0_98 = arith.constant 0 : index
    %131 = vector.load %arg5[%c0_97, %c0_98] : memref<32x128xbf16, #tpu.memory_space<vmem>>, vector<32x128xbf16>
    tpu.vector_store %arg5[%c0_97, %c0_98], %130 {strides = array<i32>} : memref<32x128xbf16, #tpu.memory_space<vmem>>, vector<32x128xbf16>,
    return
  }
  func.func @transform_0(%arg0: i32) -> (i32, i32) {
    %c0_i32 = arith.constant 0 : i32
    %c0_i32_0 = arith.constant 0 : i32
    %c0_i32_1 = arith.constant 0 : i32
    return %c0_i32, %c0_i32_0 : i32, i32
  }
  func.func @transform_1(%arg0: i32) -> (i32, i32) {
    %c0_i32 = arith.constant 0 : i32
    %c0_i32_0 = arith.constant 0 : i32
    %c0_i32_1 = arith.constant 0 : i32
    return %c0_i32, %c0_i32_0 : i32, i32
  }
  func.func @transform_2(%arg0: i32) -> (i32, i32) {
    %c0_i32 = arith.constant 0 : i32
    %c0_i32_0 = arith.constant 0 : i32
    %c0_i32_1 = arith.constant 0 : i32
    return %c0_i32, %c0_i32_0 : i32, i32
  }
  func.func @transform_3(%arg0: i32) -> (i32, i32) {
    %c0_i32 = arith.constant 0 : i32
    %c0_i32_0 = arith.constant 0 : i32
    %c0_i32_1 = arith.constant 0 : i32
    return %c0_i32, %c0_i32_0 : i32, i32
  }
  func.func @transform_4(%arg0: i32) -> (i32, i32) {
    %c0_i32 = arith.constant 0 : i32
    %c0_i32_0 = arith.constant 0 : i32
    %c0_i32_1 = arith.constant 0 : i32
    return %c0_i32, %c0_i32_0 : i32, i32
  }
}

module attributes {stable_mosaic.version = 11 : i64} {
  func.func @_prevq_vq_kernel(%arg0: i32, %arg1: memref<32x128xbf16, #tpu.memory_space<vmem>>, %arg2: memref<128x128xbf16, #tpu.memory_space<vmem>>, %arg3: memref<1x128xf32, #tpu.memory_space<vmem>>, %arg4: memref<128x128xf32, #tpu.memory_space<vmem>>, %arg5: memref<32x128xf32, #tpu.memory_space<vmem>>, %arg6: memref<1x1xf32, #tpu.memory_space<vmem>>, %arg7: memref<1x1xf32, #tpu.memory_space<vmem>>, %arg8: memref<1x1xf32, #tpu.memory_space<vmem>>, %arg9: memref<1x128xf32, #tpu.memory_space<vmem>>) attributes {dimension_semantics = [#tpu.dimension_semantics<arbitrary>], iteration_bounds = array<i64: 1>, scalar_prefetch = 0 : i64, scratch_operands = 2 : i64, tpu.core_type = #tpu.core_type<tc>, window_params = [{transform_indices = @transform_0, window_bounds = array<i64: 32, 128>}, {pipeline_mode = #tpu.pipeline_mode<synchronous>, transform_indices = @transform_1, window_bounds = array<i64: 128, 128>}, {pipeline_mode = #tpu.pipeline_mode<synchronous>, transform_indices = @transform_2, window_bounds = array<i64: 1, 128>}, {pipeline_mode = #tpu.pipeline_mode<synchronous>, transform_indices = @transform_3, window_bounds = array<i64: 128, 128>}, {transform_indices = @transform_4, window_bounds = array<i64: 32, 128>}, {pipeline_mode = #tpu.pipeline_mode<synchronous>, transform_indices = @transform_5, window_bounds = array<i64: 1, 1>}, {pipeline_mode = #tpu.pipeline_mode<synchronous>, transform_indices = @transform_6, window_bounds = array<i64: 1, 1>}]} {
    %c0_i32 = arith.constant 0 : i32
    %0 = arith.cmpi eq, %arg0, %c0_i32 : i32
    %1 = arith.extui %0 : i1 to i32
    %c0_i32_0 = arith.constant 0 : i32
    %2 = arith.cmpi ne, %1, %c0_i32_0 : i32
    scf.if %2 {
      %cst_36 = arith.constant 0.000000e+00 : f32
      %77 = vector.broadcast %cst_36 : f32 to vector<1x1xf32>
      %c0_37 = arith.constant 0 : index
      %c0_38 = arith.constant 0 : index
      %78 = vector.load %arg8[%c0_37, %c0_38] : memref<1x1xf32, #tpu.memory_space<vmem>>, vector<1x1xf32>
      tpu.vector_store %arg8[%c0_37, %c0_38], %77 {strides = array<i32>} : memref<1x1xf32, #tpu.memory_space<vmem>>, vector<1x1xf32>,
      %cst_39 = arith.constant 0.000000e+00 : f32
      %79 = vector.broadcast %cst_39 : f32 to vector<1x128xf32>
      %c0_40 = arith.constant 0 : index
      %c0_41 = arith.constant 0 : index
      %80 = vector.load %arg9[%c0_40, %c0_41] : memref<1x128xf32, #tpu.memory_space<vmem>>, vector<1x128xf32>
      tpu.vector_store %arg9[%c0_40, %c0_41], %79 {strides = array<i32>} : memref<1x128xf32, #tpu.memory_space<vmem>>, vector<1x128xf32>,
    } else {
    }
    %c0 = arith.constant 0 : index
    %c0_1 = arith.constant 0 : index
    %3 = vector.load %arg1[%c0, %c0_1] : memref<32x128xbf16, #tpu.memory_space<vmem>>, vector<32x128xbf16>
    %cst = arith.constant 0.000000e+00 : bf16
    %4 = vector.broadcast %cst : bf16 to vector<32x128xbf16>
    %5 = arith.maximumf %3, %4 : vector<32x128xbf16>
    %c0_2 = arith.constant 0 : index
    %c0_3 = arith.constant 0 : index
    %6 = vector.load %arg2[%c0_2, %c0_3] : memref<128x128xbf16, #tpu.memory_space<vmem>>, vector<128x128xbf16>
    %cst_4 = arith.constant dense<0.000000e+00> : vector<32x128xf32>
    %7 = tpu.matmul %5, %6, %cst_4 {dimension_numbers = #tpu.dot_dimension_numbers<[1], [0], [0], [1], [0, 0, 1, 1], [], []>} : vector<32x128xbf16>, vector<128x128xbf16>, vector<32x128xf32> -> vector<32x128xf32>
    %c0_5 = arith.constant 0 : index
    %c0_6 = arith.constant 0 : index
    %8 = vector.load %arg3[%c0_5, %c0_6] : memref<1x128xf32, #tpu.memory_space<vmem>>, vector<1x128xf32>
    %9 = vector.broadcast %8 : vector<1x128xf32> to vector<32x128xf32>
    %10 = arith.addf %7, %9 : vector<32x128xf32>
    %c0_7 = arith.constant 0 : index
    %c0_8 = arith.constant 0 : index
    %11 = vector.load %arg4[%c0_7, %c0_8] : memref<128x128xf32, #tpu.memory_space<vmem>>, vector<128x128xf32>
    %12 = tpu.iota {dimensions = array<i32: 1>} : vector<32x128xi32>
    %13 = tpu.iota {dimensions = array<i32: 0>} : vector<32x1xi32>
    %c32_i32 = arith.constant 32 : i32
    %14 = arith.muli %arg0, %c32_i32 : i32
    %15 = vector.broadcast %14 : i32 to vector<32x1xi32>
    %16 = arith.addi %13, %15 : vector<32x1xi32>
    %c32_i32_9 = arith.constant 32 : i32
    %17 = vector.broadcast %c32_i32_9 : i32 to vector<32x1xi32>
    %18 = arith.cmpi slt, %16, %17 : vector<32x1xi32>
    %19 = arith.mulf %10, %10 : vector<32x128xf32>
    %cst_10 = arith.constant dense<0.000000e+00> : vector<32xf32>
    %20 = vector.multi_reduction <add>, %19, %cst_10 [1] : vector<32x128xf32> to vector<32xf32>
    %21 = vector.shape_cast %20 : vector<32xf32> to vector<32x1xf32>
    %22 = arith.mulf %11, %11 : vector<128x128xf32>
    %cst_11 = arith.constant dense<0.000000e+00> : vector<128xf32>
    %23 = vector.multi_reduction <add>, %22, %cst_11 [1] : vector<128x128xf32> to vector<128xf32>
    %24 = vector.shape_cast %23 : vector<128xf32> to vector<1x128xf32>
    %25 = arith.truncf %10 : vector<32x128xf32> to vector<32x128xbf16>
    %26 = arith.truncf %11 : vector<128x128xf32> to vector<128x128xbf16>
    %cst_12 = arith.constant dense<0.000000e+00> : vector<32x128xf32>
    %27 = tpu.matmul %25, %26, %cst_12 {dimension_numbers = #tpu.dot_dimension_numbers<[1], [1], [0], [0], [0, 0, 1, 0], [], []>} : vector<32x128xbf16>, vector<128x128xbf16>, vector<32x128xf32> -> vector<32x128xf32>
    %28 = vector.broadcast %21 : vector<32x1xf32> to vector<32x128xf32>
    %29 = vector.broadcast %24 : vector<1x128xf32> to vector<32x128xf32>
    %30 = arith.addf %28, %29 : vector<32x128xf32>
    %cst_13 = arith.constant 2.000000e+00 : f32
    %31 = vector.broadcast %cst_13 : f32 to vector<32x128xf32>
    %32 = arith.mulf %31, %27 : vector<32x128xf32>
    %33 = arith.subf %30, %32 : vector<32x128xf32>
    %c32_i32_14 = arith.constant 32 : i32
    %34 = vector.broadcast %c32_i32_14 : i32 to vector<32x128xi32>
    %35 = arith.cmpi slt, %12, %34 : vector<32x128xi32>
    %cst_15 = arith.constant 1.000000e+30 : f32
    %36 = vector.broadcast %cst_15 : f32 to vector<32x128xf32>
    %37 = arith.select %35, %33, %36 : vector<32x128xi1>, vector<32x128xf32>
    %cst_16 = arith.constant dense<0x7F800000> : vector<32xf32>
    %38 = vector.multi_reduction <minimumf>, %37, %cst_16 [1] : vector<32x128xf32> to vector<32xf32>
    %39 = vector.shape_cast %38 : vector<32xf32> to vector<32x1xf32>
    %40 = vector.broadcast %39 : vector<32x1xf32> to vector<32x128xf32>
    %41 = arith.cmpf ole, %37, %40 : vector<32x128xf32>
    %c128_i32 = arith.constant 128 : i32
    %42 = vector.broadcast %c128_i32 : i32 to vector<32x128xi32>
    %43 = arith.select %41, %12, %42 : vector<32x128xi1>, vector<32x128xi32>
    %cst_17 = arith.constant dense<2147483647> : vector<32xi32>
    %44 = vector.multi_reduction <minsi>, %43, %cst_17 [1] : vector<32x128xi32> to vector<32xi32>
    %45 = vector.shape_cast %44 : vector<32xi32> to vector<32x1xi32>
    %46 = vector.broadcast %45 : vector<32x1xi32> to vector<32x128xi32>
    %47 = arith.cmpi eq, %12, %46 : vector<32x128xi32>
    %48 = vector.broadcast %18 : vector<32x1xi1> to vector<32x128xi1>
    %49 = arith.andi %47, %48 : vector<32x128xi1>
    %cst_18 = arith.constant 1.000000e+00 : f32
    %cst_19 = arith.constant 0.000000e+00 : f32
    %50 = vector.broadcast %cst_18 : f32 to vector<32x128xf32>
    %51 = vector.broadcast %cst_19 : f32 to vector<32x128xf32>
    %52 = arith.select %49, %50, %51 : vector<32x128xi1>, vector<32x128xf32>
    %cst_20 = arith.constant dense<0.000000e+00> : vector<32x128xf32>
    %53 = tpu.matmul %52, %11, %cst_20 {dimension_numbers = #tpu.dot_dimension_numbers<[1], [0], [0], [1], [0, 0, 1, 1], [], []>} : vector<32x128xf32>, vector<128x128xf32>, vector<32x128xf32> -> vector<32x128xf32>
    %c0_21 = arith.constant 0 : index
    %c0_22 = arith.constant 0 : index
    %54 = vector.load %arg5[%c0_21, %c0_22] : memref<32x128xf32, #tpu.memory_space<vmem>>, vector<32x128xf32>
    tpu.vector_store %arg5[%c0_21, %c0_22], %53 {strides = array<i32>} : memref<32x128xf32, #tpu.memory_space<vmem>>, vector<32x128xf32>,
    %55 = arith.subf %53, %10 : vector<32x128xf32>
    %cst_23 = arith.constant 0.000000e+00 : f32
    %56 = vector.shape_cast %18 : vector<32x1xi1> to vector<32x1xi1>
    %57 = vector.broadcast %56 : vector<32x1xi1> to vector<32x128xi1>
    %58 = vector.broadcast %cst_23 : f32 to vector<32x128xf32>
    %59 = arith.select %57, %55, %58 : vector<32x128xi1>, vector<32x128xf32>
    %c0_24 = arith.constant 0 : index
    %c0_25 = arith.constant 0 : index
    %60 = vector.load %arg8[%c0_24, %c0_25] : memref<1x1xf32, #tpu.memory_space<vmem>>, vector<1x1xf32>
    %61 = arith.mulf %59, %59 : vector<32x128xf32>
    %62 = vector.shape_cast %61 : vector<32x128xf32> to vector<1x32x128xf32>
    %cst_26 = arith.constant dense<0.000000e+00> : vector<1xf32>
    %63 = vector.multi_reduction <add>, %62, %cst_26 [1, 2] : vector<1x32x128xf32> to vector<1xf32>
    %64 = vector.shape_cast %63 : vector<1xf32> to vector<1x1x1xf32>
    %65 = vector.extract %64[0, 0, 0] : f32 from vector<1x1x1xf32>
    %66 = vector.broadcast %65 : f32 to vector<1x1xf32>
    %67 = arith.addf %60, %66 : vector<1x1xf32>
    %c0_27 = arith.constant 0 : index
    %c0_28 = arith.constant 0 : index
    %68 = vector.load %arg8[%c0_27, %c0_28] : memref<1x1xf32, #tpu.memory_space<vmem>>, vector<1x1xf32>
    tpu.vector_store %arg8[%c0_27, %c0_28], %67 {strides = array<i32>} : memref<1x1xf32, #tpu.memory_space<vmem>>, vector<1x1xf32>,
    %c0_29 = arith.constant 0 : index
    %c0_30 = arith.constant 0 : index
    %69 = vector.load %arg9[%c0_29, %c0_30] : memref<1x128xf32, #tpu.memory_space<vmem>>, vector<1x128xf32>
    %cst_31 = arith.constant dense<0.000000e+00> : vector<128xf32>
    %70 = vector.multi_reduction <add>, %52, %cst_31 [0] : vector<32x128xf32> to vector<128xf32>
    %71 = vector.shape_cast %70 : vector<128xf32> to vector<1x128xf32>
    %72 = arith.addf %69, %71 : vector<1x128xf32>
    %c0_32 = arith.constant 0 : index
    %c0_33 = arith.constant 0 : index
    %73 = vector.load %arg9[%c0_32, %c0_33] : memref<1x128xf32, #tpu.memory_space<vmem>>, vector<1x128xf32>
    tpu.vector_store %arg9[%c0_32, %c0_33], %72 {strides = array<i32>} : memref<1x128xf32, #tpu.memory_space<vmem>>, vector<1x128xf32>,
    %c0_i32_34 = arith.constant 0 : i32
    %74 = arith.cmpi eq, %arg0, %c0_i32_34 : i32
    %75 = arith.extui %74 : i1 to i32
    %c0_i32_35 = arith.constant 0 : i32
    %76 = arith.cmpi ne, %75, %c0_i32_35 : i32
    scf.if %76 {
      %c0_36 = arith.constant 0 : index
      %c0_37 = arith.constant 0 : index
      %77 = vector.load %arg8[%c0_36, %c0_37] : memref<1x1xf32, #tpu.memory_space<vmem>>, vector<1x1xf32>
      %cst_38 = arith.constant 5.120000e+02 : f32
      %78 = vector.broadcast %cst_38 : f32 to vector<1x1xf32>
      %79 = arith.divf %77, %78 : vector<1x1xf32>
      %cst_39 = arith.constant 1.250000e+00 : f32
      %80 = vector.broadcast %cst_39 : f32 to vector<1x1xf32>
      %81 = arith.mulf %80, %79 : vector<1x1xf32>
      %c0_40 = arith.constant 0 : index
      %c0_41 = arith.constant 0 : index
      %82 = vector.load %arg6[%c0_40, %c0_41] : memref<1x1xf32, #tpu.memory_space<vmem>>, vector<1x1xf32>
      tpu.vector_store %arg6[%c0_40, %c0_41], %81 {strides = array<i32>} : memref<1x1xf32, #tpu.memory_space<vmem>>, vector<1x1xf32>,
      %c0_42 = arith.constant 0 : index
      %c0_43 = arith.constant 0 : index
      %83 = vector.load %arg9[%c0_42, %c0_43] : memref<1x128xf32, #tpu.memory_space<vmem>>, vector<1x128xf32>
      %cst_44 = arith.constant 3.200000e+01 : f32
      %84 = vector.broadcast %cst_44 : f32 to vector<1x128xf32>
      %85 = arith.divf %83, %84 : vector<1x128xf32>
      %cst_45 = arith.constant 1.000000e-10 : f32
      %86 = vector.broadcast %cst_45 : f32 to vector<1x128xf32>
      %87 = arith.addf %85, %86 : vector<1x128xf32>
      %88 = math.log %87 : vector<1x128xf32>
      %89 = arith.mulf %85, %88 : vector<1x128xf32>
      %cst_46 = arith.constant dense<0.000000e+00> : vector<1xf32>
      %90 = vector.multi_reduction <add>, %89, %cst_46 [1] : vector<1x128xf32> to vector<1xf32>
      %91 = vector.shape_cast %90 : vector<1xf32> to vector<1x1xf32>
      %cst_47 = arith.constant 0.000000e+00 : f32
      %92 = vector.broadcast %cst_47 : f32 to vector<1x1xf32>
      %93 = arith.subf %92, %91 : vector<1x1xf32>
      %94 = math.exp %93 : vector<1x1xf32>
      %c0_48 = arith.constant 0 : index
      %c0_49 = arith.constant 0 : index
      %95 = vector.load %arg7[%c0_48, %c0_49] : memref<1x1xf32, #tpu.memory_space<vmem>>, vector<1x1xf32>
      tpu.vector_store %arg7[%c0_48, %c0_49], %94 {strides = array<i32>} : memref<1x1xf32, #tpu.memory_space<vmem>>, vector<1x1xf32>,
    } else {
    }
    return
  }
  func.func @transform_0(%arg0: i32) -> (i32, i32) {
    %c0_i32 = arith.constant 0 : i32
    %c0_i32_0 = arith.constant 0 : i32
    return %arg0, %c0_i32 : i32, i32
  }
  func.func @transform_1(%arg0: i32) -> (i32, i32) {
    %c0_i32 = arith.constant 0 : i32
    %c0_i32_0 = arith.constant 0 : i32
    %c0_i32_1 = arith.constant 0 : i32
    return %c0_i32, %c0_i32_0 : i32, i32
  }
  func.func @transform_2(%arg0: i32) -> (i32, i32) {
    %c0_i32 = arith.constant 0 : i32
    %c0_i32_0 = arith.constant 0 : i32
    %c0_i32_1 = arith.constant 0 : i32
    return %c0_i32, %c0_i32_0 : i32, i32
  }
  func.func @transform_3(%arg0: i32) -> (i32, i32) {
    %c0_i32 = arith.constant 0 : i32
    %c0_i32_0 = arith.constant 0 : i32
    %c0_i32_1 = arith.constant 0 : i32
    return %c0_i32, %c0_i32_0 : i32, i32
  }
  func.func @transform_4(%arg0: i32) -> (i32, i32) {
    %c0_i32 = arith.constant 0 : i32
    %c0_i32_0 = arith.constant 0 : i32
    return %arg0, %c0_i32 : i32, i32
  }
  func.func @transform_5(%arg0: i32) -> (i32, i32) {
    %c0_i32 = arith.constant 0 : i32
    %c0_i32_0 = arith.constant 0 : i32
    %c0_i32_1 = arith.constant 0 : i32
    return %c0_i32, %c0_i32_0 : i32, i32
  }
  func.func @transform_6(%arg0: i32) -> (i32, i32) {
    %c0_i32 = arith.constant 0 : i32
    %c0_i32_0 = arith.constant 0 : i32
    %c0_i32_1 = arith.constant 0 : i32
    return %c0_i32, %c0_i32_0 : i32, i32
  }
}

module attributes {stable_mosaic.version = 11 : i64} {
  func.func @_gemm_kernel(%arg0: i32, %arg1: i32, %arg2: memref<32x256xbf16, #tpu.memory_space<vmem>>, %arg3: memref<256x128xbf16, #tpu.memory_space<vmem>>, %arg4: memref<1x128xf32, #tpu.memory_space<vmem>>, %arg5: memref<32x128xbf16, #tpu.memory_space<vmem>>) attributes {dimension_semantics = [#tpu.dimension_semantics<parallel>, #tpu.dimension_semantics<parallel>], iteration_bounds = array<i64: 1, 1>, scalar_prefetch = 0 : i64, scratch_operands = 0 : i64, tpu.core_type = #tpu.core_type<tc>, window_params = [{transform_indices = @transform_0, window_bounds = array<i64: 32, 256>}, {transform_indices = @transform_1, window_bounds = array<i64: 256, 128>}, {transform_indices = @transform_2, window_bounds = array<i64: 1, 128>}, {transform_indices = @transform_3, window_bounds = array<i64: 32, 128>}]} {
    %c0 = arith.constant 0 : index
    %c0_0 = arith.constant 0 : index
    %0 = vector.load %arg2[%c0, %c0_0] : memref<32x256xbf16, #tpu.memory_space<vmem>>, vector<32x256xbf16>
    %c0_1 = arith.constant 0 : index
    %c0_2 = arith.constant 0 : index
    %1 = vector.load %arg3[%c0_1, %c0_2] : memref<256x128xbf16, #tpu.memory_space<vmem>>, vector<256x128xbf16>
    %cst = arith.constant dense<0.000000e+00> : vector<32x128xf32>
    %2 = tpu.matmul %0, %1, %cst {dimension_numbers = #tpu.dot_dimension_numbers<[1], [0], [0], [1], [0, 0, 1, 1], [], []>} : vector<32x256xbf16>, vector<256x128xbf16>, vector<32x128xf32> -> vector<32x128xf32>
    %c0_3 = arith.constant 0 : index
    %c0_4 = arith.constant 0 : index
    %3 = vector.load %arg4[%c0_3, %c0_4] : memref<1x128xf32, #tpu.memory_space<vmem>>, vector<1x128xf32>
    %4 = vector.broadcast %3 : vector<1x128xf32> to vector<32x128xf32>
    %5 = arith.addf %2, %4 : vector<32x128xf32>
    %6 = arith.truncf %5 : vector<32x128xf32> to vector<32x128xbf16>
    %c0_5 = arith.constant 0 : index
    %c0_6 = arith.constant 0 : index
    %7 = vector.load %arg5[%c0_5, %c0_6] : memref<32x128xbf16, #tpu.memory_space<vmem>>, vector<32x128xbf16>
    tpu.vector_store %arg5[%c0_5, %c0_6], %6 {strides = array<i32>} : memref<32x128xbf16, #tpu.memory_space<vmem>>, vector<32x128xbf16>,
    return
  }
  func.func @transform_0(%arg0: i32, %arg1: i32) -> (i32, i32) {
    %c0_i32 = arith.constant 0 : i32
    %c0_i32_0 = arith.constant 0 : i32
    return %arg0, %c0_i32 : i32, i32
  }
  func.func @transform_1(%arg0: i32, %arg1: i32) -> (i32, i32) {
    %c0_i32 = arith.constant 0 : i32
    %c0_i32_0 = arith.constant 0 : i32
    return %c0_i32, %arg1 : i32, i32
  }
  func.func @transform_2(%arg0: i32, %arg1: i32) -> (i32, i32) {
    %c0_i32 = arith.constant 0 : i32
    %c0_i32_0 = arith.constant 0 : i32
    return %c0_i32, %arg1 : i32, i32
  }
  func.func @transform_3(%arg0: i32, %arg1: i32) -> (i32, i32) {
    %c0_i32 = arith.constant 0 : i32
    return %arg0, %arg1 : i32, i32
  }
}

module attributes {stable_mosaic.version = 11 : i64} {
  func.func @_gemm_kernel(%arg0: i32, %arg1: i32, %arg2: memref<32x384xbf16, #tpu.memory_space<vmem>>, %arg3: memref<384x512xbf16, #tpu.memory_space<vmem>>, %arg4: memref<1x512xf32, #tpu.memory_space<vmem>>, %arg5: memref<32x512xbf16, #tpu.memory_space<vmem>>) attributes {dimension_semantics = [#tpu.dimension_semantics<parallel>, #tpu.dimension_semantics<parallel>], iteration_bounds = array<i64: 1, 1>, scalar_prefetch = 0 : i64, scratch_operands = 0 : i64, tpu.core_type = #tpu.core_type<tc>, window_params = [{transform_indices = @transform_0, window_bounds = array<i64: 32, 384>}, {transform_indices = @transform_1, window_bounds = array<i64: 384, 512>}, {transform_indices = @transform_2, window_bounds = array<i64: 1, 512>}, {transform_indices = @transform_3, window_bounds = array<i64: 32, 512>}]} {
    %c0 = arith.constant 0 : index
    %c0_0 = arith.constant 0 : index
    %0 = vector.load %arg2[%c0, %c0_0] : memref<32x384xbf16, #tpu.memory_space<vmem>>, vector<32x384xbf16>
    %cst = arith.constant 0.000000e+00 : bf16
    %1 = vector.broadcast %cst : bf16 to vector<32x384xbf16>
    %2 = arith.maximumf %0, %1 : vector<32x384xbf16>
    %c0_1 = arith.constant 0 : index
    %c0_2 = arith.constant 0 : index
    %3 = vector.load %arg3[%c0_1, %c0_2] : memref<384x512xbf16, #tpu.memory_space<vmem>>, vector<384x512xbf16>
    %cst_3 = arith.constant dense<0.000000e+00> : vector<32x512xf32>
    %4 = tpu.matmul %2, %3, %cst_3 {dimension_numbers = #tpu.dot_dimension_numbers<[1], [0], [0], [1], [0, 0, 1, 1], [], []>} : vector<32x384xbf16>, vector<384x512xbf16>, vector<32x512xf32> -> vector<32x512xf32>
    %c0_4 = arith.constant 0 : index
    %c0_5 = arith.constant 0 : index
    %5 = vector.load %arg4[%c0_4, %c0_5] : memref<1x512xf32, #tpu.memory_space<vmem>>, vector<1x512xf32>
    %6 = vector.broadcast %5 : vector<1x512xf32> to vector<32x512xf32>
    %7 = arith.addf %4, %6 : vector<32x512xf32>
    %cst_6 = arith.constant 0.000000e+00 : f32
    %8 = vector.broadcast %cst_6 : f32 to vector<32x512xf32>
    %9 = arith.maximumf %7, %8 : vector<32x512xf32>
    %10 = arith.truncf %9 : vector<32x512xf32> to vector<32x512xbf16>
    %c0_7 = arith.constant 0 : index
    %c0_8 = arith.constant 0 : index
    %11 = vector.load %arg5[%c0_7, %c0_8] : memref<32x512xbf16, #tpu.memory_space<vmem>>, vector<32x512xbf16>
    tpu.vector_store %arg5[%c0_7, %c0_8], %10 {strides = array<i32>} : memref<32x512xbf16, #tpu.memory_space<vmem>>, vector<32x512xbf16>,
    return
  }
  func.func @transform_0(%arg0: i32, %arg1: i32) -> (i32, i32) {
    %c0_i32 = arith.constant 0 : i32
    %c0_i32_0 = arith.constant 0 : i32
    return %arg0, %c0_i32 : i32, i32
  }
  func.func @transform_1(%arg0: i32, %arg1: i32) -> (i32, i32) {
    %c0_i32 = arith.constant 0 : i32
    %c0_i32_0 = arith.constant 0 : i32
    return %c0_i32, %arg1 : i32, i32
  }
  func.func @transform_2(%arg0: i32, %arg1: i32) -> (i32, i32) {
    %c0_i32 = arith.constant 0 : i32
    %c0_i32_0 = arith.constant 0 : i32
    return %c0_i32, %arg1 : i32, i32
  }
  func.func @transform_3(%arg0: i32, %arg1: i32) -> (i32, i32) {
    %c0_i32 = arith.constant 0 : i32
    return %arg0, %arg1 : i32, i32
  }
}

module attributes {stable_mosaic.version = 11 : i64} {
  func.func @_gemm_kernel(%arg0: i32, %arg1: i32, %arg2: memref<128x256xbf16, #tpu.memory_space<vmem>>, %arg3: memref<256x512xbf16, #tpu.memory_space<vmem>>, %arg4: memref<1x512xf32, #tpu.memory_space<vmem>>, %arg5: memref<128x512xf32, #tpu.memory_space<vmem>>) attributes {dimension_semantics = [#tpu.dimension_semantics<parallel>, #tpu.dimension_semantics<parallel>], iteration_bounds = array<i64: 1, 1>, scalar_prefetch = 0 : i64, scratch_operands = 0 : i64, tpu.core_type = #tpu.core_type<tc>, window_params = [{transform_indices = @transform_0, window_bounds = array<i64: 128, 256>}, {transform_indices = @transform_1, window_bounds = array<i64: 256, 512>}, {transform_indices = @transform_2, window_bounds = array<i64: 1, 512>}, {transform_indices = @transform_3, window_bounds = array<i64: 128, 512>}]} {
    %c0 = arith.constant 0 : index
    %c0_0 = arith.constant 0 : index
    %0 = vector.load %arg2[%c0, %c0_0] : memref<128x256xbf16, #tpu.memory_space<vmem>>, vector<128x256xbf16>
    %c0_1 = arith.constant 0 : index
    %c0_2 = arith.constant 0 : index
    %1 = vector.load %arg3[%c0_1, %c0_2] : memref<256x512xbf16, #tpu.memory_space<vmem>>, vector<256x512xbf16>
    %cst = arith.constant dense<0.000000e+00> : vector<128x512xf32>
    %2 = tpu.matmul %0, %1, %cst {dimension_numbers = #tpu.dot_dimension_numbers<[1], [0], [0], [1], [0, 0, 1, 1], [], []>} : vector<128x256xbf16>, vector<256x512xbf16>, vector<128x512xf32> -> vector<128x512xf32>
    %c0_3 = arith.constant 0 : index
    %c0_4 = arith.constant 0 : index
    %3 = vector.load %arg4[%c0_3, %c0_4] : memref<1x512xf32, #tpu.memory_space<vmem>>, vector<1x512xf32>
    %4 = vector.broadcast %3 : vector<1x512xf32> to vector<128x512xf32>
    %5 = arith.addf %2, %4 : vector<128x512xf32>
    %c0_5 = arith.constant 0 : index
    %c0_6 = arith.constant 0 : index
    %6 = vector.load %arg5[%c0_5, %c0_6] : memref<128x512xf32, #tpu.memory_space<vmem>>, vector<128x512xf32>
    tpu.vector_store %arg5[%c0_5, %c0_6], %5 {strides = array<i32>} : memref<128x512xf32, #tpu.memory_space<vmem>>, vector<128x512xf32>,
    return
  }
  func.func @transform_0(%arg0: i32, %arg1: i32) -> (i32, i32) {
    %c0_i32 = arith.constant 0 : i32
    %c0_i32_0 = arith.constant 0 : i32
    return %arg0, %c0_i32 : i32, i32
  }
  func.func @transform_1(%arg0: i32, %arg1: i32) -> (i32, i32) {
    %c0_i32 = arith.constant 0 : i32
    %c0_i32_0 = arith.constant 0 : i32
    return %c0_i32, %arg1 : i32, i32
  }
  func.func @transform_2(%arg0: i32, %arg1: i32) -> (i32, i32) {
    %c0_i32 = arith.constant 0 : i32
    %c0_i32_0 = arith.constant 0 : i32
    return %c0_i32, %arg1 : i32, i32
  }
  func.func @transform_3(%arg0: i32, %arg1: i32) -> (i32, i32) {
    %c0_i32 = arith.constant 0 : i32
    return %arg0, %arg1 : i32, i32
  }
}

</mosaic_0001>

<llo_original>
// kernel: bio_vae_forward.9
$region0: #{bio_vae_forward.9}
  #allocation0 [shape = 'u32[]', space=smem, size = 0x4, offset = 0x4, fixed_abs, tag = 'smem constant byte address 0x4 - core index']
  #allocation1 [shape = 'u32[72,128]{1,0:T(1,128)}', space=vmem, size = 0x9000, scoped, tag = 'internal scratch']
  %s0 = inlined_call_operand.vmem [shape: bf16[128,128], index: 0, kind: input, shape index: {}]
  %s1 = inlined_call_operand.vmem [shape: bf16[128,128], index: 1, kind: input, shape index: {}]
  %s2 = inlined_call_operand.vmem [shape: f32[1,128], index: 2, kind: input, shape index: {}]
  %s3 = inlined_call_operand.vmem [shape: bf16[128,128], index: 3, kind: output, shape index: {}]
  %s4 = sld [smem:[#allocation0]]
  $region22: #{bio_vae_forward.9} parent=0
    _
  %s6 = ssub.s32 1, %s4
  %s7 = scalar_select 0, %s6, %s4
  // Predicated region
  $region2: #{bio_vae_forward.9} parent=0 // pred_check
    _
  $region3: #{bio_vae_forward.9} parent=0 // pred_check_branch
    %9 = sbr.rel (0) target = $region5
  $region4: #{bio_vae_forward.9} parent=0 // pred_region
    _
  $region5: #{bio_vae_forward.9} parent=0 // pred_fallthru
    _
  // Predicated region
  $region6: #{bio_vae_forward.9} parent=0 // pred_check
    _
  $region7: #{bio_vae_forward.9} parent=0 // pred_check_branch
    %11 = sbr.rel (0) target = $region9
  $region8: #{bio_vae_forward.9} parent=0 // pred_region
    _
  $region9: #{bio_vae_forward.9} parent=0 // pred_fallthru
    _
  // Predicated region
  $region10: #{bio_vae_forward.9} parent=0 // pred_check
    _
  $region11: #{bio_vae_forward.9} parent=0 // pred_check_branch
    %13 = sbr.rel (0) target = $region13
  $region12: #{bio_vae_forward.9} parent=0 // pred_region
    _
  $region13: #{bio_vae_forward.9} parent=0 // pred_fallthru
    _
  %v14 = vld [vmem:[%s0] sm:$0xf]
  %v15 = vld [vmem:[%s0 + $0x4] sm:$0xf]
  %v16 = vld [vmem:[%s0 + $0x8] sm:$0xf]
  %v17 = vld [vmem:[%s0 + $0xc] sm:$0xf]
  %v18 = vld [vmem:[%s0 + $0x10] sm:$0xf]
  %v19 = vld [vmem:[%s0 + $0x14] sm:$0xf]
  %v20 = vld [vmem:[%s0 + $0x18] sm:$0xf]
  %v21 = vld [vmem:[%s0 + $0x1c] sm:$0xf]
  %v22 = vld [vmem:[%s0 + $0x20] sm:$0xf]
  %v23 = vld [vmem:[%s0 + $0x24] sm:$0xf]
  %v24 = vld [vmem:[%s0 + $0x28] sm:$0xf]
  %v25 = vld [vmem:[%s0 + $0x2c] sm:$0xf]
  %v26 = vld [vmem:[%s0 + $0x30] sm:$0xf]
  %v27 = vld [vmem:[%s0 + $0x34] sm:$0xf]
  %v28 = vld [vmem:[%s0 + $0x38] sm:$0xf]
  %v29 = vld [vmem:[%s0 + $0x3c] sm:$0xf]
  %v30 = vld [vmem:[%s1] sm:$0xf]
  %v31 = vld [vmem:[%s1 + $0x4] sm:$0xf]
  %v32 = vld [vmem:[%s1 + $0x8] sm:$0xf]
  %v33 = vld [vmem:[%s1 + $0xc] sm:$0xf]
  %v34 = vld [vmem:[%s1 + $0x10] sm:$0xf]
  %v35 = vld [vmem:[%s1 + $0x14] sm:$0xf]
  %v36 = vld [vmem:[%s1 + $0x18] sm:$0xf]
  %v37 = vld [vmem:[%s1 + $0x1c] sm:$0xf]
  %v38 = vld [vmem:[%s1 + $0x20] sm:$0xf]
  %v39 = vld [vmem:[%s1 + $0x24] sm:$0xf]
  %v40 = vld [vmem:[%s1 + $0x28] sm:$0xf]
  %v41 = vld [vmem:[%s1 + $0x2c] sm:$0xf]
  %v42 = vld [vmem:[%s1 + $0x30] sm:$0xf]
  %v43 = vld [vmem:[%s1 + $0x34] sm:$0xf]
  %v44 = vld [vmem:[%s1 + $0x38] sm:$0xf]
  %v45 = vld [vmem:[%s1 + $0x3c] sm:$0xf]
  %v46 = vld [vmem:[%s2] sm:$0x1]
  %v48 = vperm.slane %v46, 0
  %v66 = vunpack.c.l.b16 %v14
  %v67 = vunpack.c.l.b16 %v15
  %v68 = vunpack.c.l.b16 %v16
  %v69 = vunpack.c.l.b16 %v17
  %v70 = vunpack.c.l.b16 %v18
  %v71 = vunpack.c.l.b16 %v19
  %v72 = vunpack.c.l.b16 %v20
  %v73 = vunpack.c.l.b16 %v21
  %v74 = vunpack.c.l.b16 %v22
  %v75 = vunpack.c.l.b16 %v23
  %v76 = vunpack.c.l.b16 %v24
  %v77 = vunpack.c.l.b16 %v25
  %v78 = vunpack.c.l.b16 %v26
  %v79 = vunpack.c.l.b16 %v27
  %v80 = vunpack.c.l.b16 %v28
  %v81 = vunpack.c.l.b16 %v29
  %v82 = vpack.c.b16 %v67, %v66
  %v83 = vpack.c.b16 %v69, %v68
  %v84 = vpack.c.b16 %v71, %v70
  %v85 = vpack.c.b16 %v73, %v72
  %v86 = vpack.c.b16 %v75, %v74
  %v87 = vpack.c.b16 %v77, %v76
  %v88 = vpack.c.b16 %v79, %v78
  %v89 = vpack.c.b16 %v81, %v80
  %v114 = vunpack.c.l.b16 %v30
  %v115 = vunpack.c.l.b16 %v31
  %v116 = vunpack.c.l.b16 %v32
  %v117 = vunpack.c.l.b16 %v33
  %v118 = vunpack.c.l.b16 %v34
  %v119 = vunpack.c.l.b16 %v35
  %v120 = vunpack.c.l.b16 %v36
  %v121 = vunpack.c.l.b16 %v37
  %v122 = vunpack.c.l.b16 %v38
  %v123 = vunpack.c.l.b16 %v39
  %v124 = vunpack.c.l.b16 %v40
  %v125 = vunpack.c.l.b16 %v41
  %v126 = vunpack.c.l.b16 %v42
  %v127 = vunpack.c.l.b16 %v43
  %v128 = vunpack.c.l.b16 %v44
  %v129 = vunpack.c.l.b16 %v45
  %v130 = vpack.c.b16 %v115, %v114
  %v131 = vpack.c.b16 %v117, %v116
  %v132 = vpack.c.b16 %v119, %v118
  %v133 = vpack.c.b16 %v121, %v120
  %v134 = vpack.c.b16 %v123, %v122
  %v135 = vpack.c.b16 %v125, %v124
  %v136 = vpack.c.b16 %v127, %v126
  %v137 = vpack.c.b16 %v129, %v128
  %146 = vmatpush.bf16.msra.mxu0 %v137
  %147 = vmatpush.bf16.msra.mxu0 %v136
  %148 = vmatpush.bf16.msra.mxu0 %v135
  %149 = vmatpush.bf16.msra.mxu0 %v134
  %150 = vmatpush.bf16.msra.mxu0 %v133
  %151 = vmatpush.bf16.msra.mxu0 %v132
  %152 = vmatpush.bf16.msra.mxu0 %v131
  %153 = vmatpush.bf16.msra.mxu0 %v130
  %154 = vmatmul.bf16.gmra.mxu0 %v82
  %v155 = vpop.f32.mrf.mxu0
  %v156 = vadd.f32 %v48, %v155
  %v157 = vpop.f32.mrf.mxu0
  %v158 = vadd.f32 %v48, %v157
  %159 = vmatmul.bf16.gmra.mxu0 %v83
  %v160 = vpop.f32.mrf.mxu0
  %v161 = vadd.f32 %v48, %v160
  %v162 = vpop.f32.mrf.mxu0
  %v163 = vadd.f32 %v48, %v162
  %164 = vmatmul.bf16.gmra.mxu0 %v84
  %v165 = vpop.f32.mrf.mxu0
  %v166 = vadd.f32 %v48, %v165
  %v167 = vpop.f32.mrf.mxu0
  %v168 = vadd.f32 %v48, %v167
  %169 = vmatmul.bf16.gmra.mxu0 %v85
  %v170 = vpop.f32.mrf.mxu0
  %v171 = vadd.f32 %v48, %v170
  %v172 = vpop.f32.mrf.mxu0
  %v173 = vadd.f32 %v48, %v172
  %174 = vmatmul.bf16.gmra.mxu0 %v86
  %v175 = vpop.f32.mrf.mxu0
  %v176 = vadd.f32 %v48, %v175
  %v177 = vpop.f32.mrf.mxu0
  %v178 = vadd.f32 %v48, %v177
  %179 = vmatmul.bf16.gmra.mxu0 %v87
  %v180 = vpop.f32.mrf.mxu0
  %v181 = vadd.f32 %v48, %v180
  %v182 = vpop.f32.mrf.mxu0
  %v183 = vadd.f32 %v48, %v182
  %184 = vmatmul.bf16.gmra.mxu0 %v88
  %v185 = vpop.f32.mrf.mxu0
  %v186 = vadd.f32 %v48, %v185
  %v187 = vpop.f32.mrf.mxu0
  %v188 = vadd.f32 %v48, %v187
  %189 = vmatmul.bf16.gmra.mxu0 %v89
  %v190 = vpop.f32.mrf.mxu0
  %v191 = vadd.f32 %v48, %v190
  %v192 = vpop.f32.mrf.mxu0
  %v193 = vadd.f32 %v48, %v192
  %194 = vdwg.mxu0
  %v195 = vmax.f32 %v156, 0.0
  %v196 = vmax.f32 %v158, 0.0
  %v197 = vmax.f32 %v161, 0.0
  %v198 = vmax.f32 %v163, 0.0
  %v199 = vmax.f32 %v166, 0.0
  %v200 = vmax.f32 %v168, 0.0
  %v201 = vmax.f32 %v171, 0.0
  %v202 = vmax.f32 %v173, 0.0
  %v203 = vmax.f32 %v176, 0.0
  %v204 = vmax.f32 %v178, 0.0
  %v205 = vmax.f32 %v181, 0.0
  %v206 = vmax.f32 %v183, 0.0
  %v207 = vmax.f32 %v186, 0.0
  %v208 = vmax.f32 %v188, 0.0
  %v209 = vmax.f32 %v191, 0.0
  %v210 = vmax.f32 %v193, 0.0
  %v211 = vpack.c.bf16 %v195, %v195
  %v212 = vpack.c.bf16 %v196, %v196
  %v213 = vpack.c.bf16 %v197, %v197
  %v214 = vpack.c.bf16 %v198, %v198
  %v215 = vpack.c.bf16 %v199, %v199
  %v216 = vpack.c.bf16 %v200, %v200
  %v217 = vpack.c.bf16 %v201, %v201
  %v218 = vpack.c.bf16 %v202, %v202
  %v219 = vpack.c.bf16 %v203, %v203
  %v220 = vpack.c.bf16 %v204, %v204
  %v221 = vpack.c.bf16 %v205, %v205
  %v222 = vpack.c.bf16 %v206, %v206
  %v223 = vpack.c.bf16 %v207, %v207
  %v224 = vpack.c.bf16 %v208, %v208
  %v225 = vpack.c.bf16 %v209, %v209
  %v226 = vpack.c.bf16 %v210, %v210
  %227 = vst [vmem:[%s3] sm:$0xf] %v211
  %228 = vst [vmem:[%s3 + $0x4] sm:$0xf] %v212
  %229 = vst [vmem:[%s3 + $0x8] sm:$0xf] %v213
  %230 = vst [vmem:[%s3 + $0xc] sm:$0xf] %v214
  %231 = vst [vmem:[%s3 + $0x10] sm:$0xf] %v215
  %232 = vst [vmem:[%s3 + $0x14] sm:$0xf] %v216
  %233 = vst [vmem:[%s3 + $0x18] sm:$0xf] %v217
  %234 = vst [vmem:[%s3 + $0x1c] sm:$0xf] %v218
  %235 = vst [vmem:[%s3 + $0x20] sm:$0xf] %v219
  %236 = vst [vmem:[%s3 + $0x24] sm:$0xf] %v220
  %237 = vst [vmem:[%s3 + $0x28] sm:$0xf] %v221
  %238 = vst [vmem:[%s3 + $0x2c] sm:$0xf] %v222
  %239 = vst [vmem:[%s3 + $0x30] sm:$0xf] %v223
  %240 = vst [vmem:[%s3 + $0x34] sm:$0xf] %v224
  %241 = vst [vmem:[%s3 + $0x38] sm:$0xf] %v225
  %242 = vst [vmem:[%s3 + $0x3c] sm:$0xf] %v226
  // Predicated region
  $region14: #{bio_vae_forward.9} parent=0 // pred_check
    _
  $region15: #{bio_vae_forward.9} parent=0 // pred_check_branch
    %244 = sbr.rel (0) target = $region17
  $region16: #{bio_vae_forward.9} parent=0 // pred_region
    _
  $region17: #{bio_vae_forward.9} parent=0 // pred_fallthru
    _
  // Predicated region
  $region18: #{bio_vae_forward.9} parent=0 // pred_check
    _
  $region19: #{bio_vae_forward.9} parent=0 // pred_check_branch
    %246 = sbr.rel (0) target = $region21
  $region20: #{bio_vae_forward.9} parent=0 // pred_region
    _
  $region21: #{bio_vae_forward.9} parent=0 // pred_fallthru
    _

// kernel: bio_vae_forward.10
$region0: #{bio_vae_forward.10}
  #allocation0 [shape = 'u32[]', space=smem, size = 0x4, offset = 0x4, fixed_abs, tag = 'smem constant byte address 0x4 - core index']
  #allocation1 [shape = 'u32[72,128]{1,0:T(1,128)}', space=vmem, size = 0x9000, scoped, tag = 'internal scratch']
  %s0 = inlined_call_operand.vmem [shape: bf16[32,256], index: 0, kind: input, shape index: {}]
  %s1 = inlined_call_operand.vmem [shape: bf16[256,128], index: 1, kind: input, shape index: {}]
  %s2 = inlined_call_operand.vmem [shape: f32[1,128], index: 2, kind: input, shape index: {}]
  %s3 = inlined_call_operand.vmem [shape: bf16[32,128], index: 3, kind: output, shape index: {}]
  %s4 = sld [smem:[#allocation0]]
  $region22: #{bio_vae_forward.10} parent=0
    _
  %s6 = ssub.s32 1, %s4
  %s7 = scalar_select 0, %s6, %s4
  // Predicated region
  $region2: #{bio_vae_forward.10} parent=0 // pred_check
    _
  $region3: #{bio_vae_forward.10} parent=0 // pred_check_branch
    %9 = sbr.rel (0) target = $region5
  $region4: #{bio_vae_forward.10} parent=0 // pred_region
    _
  $region5: #{bio_vae_forward.10} parent=0 // pred_fallthru
    _
  // Predicated region
  $region6: #{bio_vae_forward.10} parent=0 // pred_check
    _
  $region7: #{bio_vae_forward.10} parent=0 // pred_check_branch
    %11 = sbr.rel (0) target = $region9
  $region8: #{bio_vae_forward.10} parent=0 // pred_region
    _
  $region9: #{bio_vae_forward.10} parent=0 // pred_fallthru
    _
  // Predicated region
  $region10: #{bio_vae_forward.10} parent=0 // pred_check
    _
  $region11: #{bio_vae_forward.10} parent=0 // pred_check_branch
    %13 = sbr.rel (0) target = $region13
  $region12: #{bio_vae_forward.10} parent=0 // pred_region
    _
  $region13: #{bio_vae_forward.10} parent=0 // pred_fallthru
    _
  %v14 = vld [vmem:[%s0] sm:$0xff]
  %v15 = vld [vmem:[%s0 + $0x8] sm:$0xff]
  %v16 = vld [vmem:[%s0 + $0x10] sm:$0xff]
  %v17 = vld [vmem:[%s0 + $0x18] sm:$0xff]
  %v18 = vld [vmem:[%s1] sm:$0xf]
  %v19 = vld [vmem:[%s1 + $0x4] sm:$0xf]
  %v20 = vld [vmem:[%s1 + $0x8] sm:$0xf]
  %v21 = vld [vmem:[%s1 + $0xc] sm:$0xf]
  %v22 = vld [vmem:[%s1 + $0x10] sm:$0xf]
  %v23 = vld [vmem:[%s1 + $0x14] sm:$0xf]
  %v24 = vld [vmem:[%s1 + $0x18] sm:$0xf]
  %v25 = vld [vmem:[%s1 + $0x1c] sm:$0xf]
  %v26 = vld [vmem:[%s1 + $0x20] sm:$0xf]
  %v27 = vld [vmem:[%s1 + $0x24] sm:$0xf]
  %v28 = vld [vmem:[%s1 + $0x28] sm:$0xf]
  %v29 = vld [vmem:[%s1 + $0x2c] sm:$0xf]
  %v30 = vld [vmem:[%s1 + $0x30] sm:$0xf]
  %v31 = vld [vmem:[%s1 + $0x34] sm:$0xf]
  %v32 = vld [vmem:[%s1 + $0x38] sm:$0xf]
  %v33 = vld [vmem:[%s1 + $0x3c] sm:$0xf]
  %v34 = vld [vmem:[%s1 + $0x40] sm:$0xf]
  %v35 = vld [vmem:[%s1 + $0x44] sm:$0xf]
  %v36 = vld [vmem:[%s1 + $0x48] sm:$0xf]
  %v37 = vld [vmem:[%s1 + $0x4c] sm:$0xf]
  %v38 = vld [vmem:[%s1 + $0x50] sm:$0xf]
  %v39 = vld [vmem:[%s1 + $0x54] sm:$0xf]
  %v40 = vld [vmem:[%s1 + $0x58] sm:$0xf]
  %v41 = vld [vmem:[%s1 + $0x5c] sm:$0xf]
  %v42 = vld [vmem:[%s1 + $0x60] sm:$0xf]
  %v43 = vld [vmem:[%s1 + $0x64] sm:$0xf]
  %v44 = vld [vmem:[%s1 + $0x68] sm:$0xf]
  %v45 = vld [vmem:[%s1 + $0x6c] sm:$0xf]
  %v46 = vld [vmem:[%s1 + $0x70] sm:$0xf]
  %v47 = vld [vmem:[%s1 + $0x74] sm:$0xf]
  %v48 = vld [vmem:[%s1 + $0x78] sm:$0xf]
  %v49 = vld [vmem:[%s1 + $0x7c] sm:$0xf]
  %v50 = vld [vmem:[%s2] sm:$0x1]
  %v52 = vperm.slane %v50, 0
  %v58 = vunpack.c.l.b16 %v14
  %v59 = vunpack.c.h.b16 %v14
  %v60 = vunpack.c.l.b16 %v15
  %v61 = vunpack.c.h.b16 %v15
  %v62 = vunpack.c.l.b16 %v16
  %v63 = vunpack.c.h.b16 %v16
  %v64 = vunpack.c.l.b16 %v17
  %v65 = vunpack.c.h.b16 %v17
  %v66 = vpack.c.b16 %v60, %v58
  %v67 = vpack.c.b16 %v61, %v59
  %v68 = vpack.c.b16 %v64, %v62
  %v69 = vpack.c.b16 %v65, %v63
  %v106 = vunpack.c.l.b16 %v18
  %v107 = vunpack.c.l.b16 %v19
  %v108 = vunpack.c.l.b16 %v20
  %v109 = vunpack.c.l.b16 %v21
  %v110 = vunpack.c.l.b16 %v22
  %v111 = vunpack.c.l.b16 %v23
  %v112 = vunpack.c.l.b16 %v24
  %v113 = vunpack.c.l.b16 %v25
  %v114 = vunpack.c.l.b16 %v26
  %v115 = vunpack.c.l.b16 %v27
  %v116 = vunpack.c.l.b16 %v28
  %v117 = vunpack.c.l.b16 %v29
  %v118 = vunpack.c.l.b16 %v30
  %v119 = vunpack.c.l.b16 %v31
  %v120 = vunpack.c.l.b16 %v32
  %v121 = vunpack.c.l.b16 %v33
  %v122 = vunpack.c.l.b16 %v34
  %v123 = vunpack.c.l.b16 %v35
  %v124 = vunpack.c.l.b16 %v36
  %v125 = vunpack.c.l.b16 %v37
  %v126 = vunpack.c.l.b16 %v38
  %v127 = vunpack.c.l.b16 %v39
  %v128 = vunpack.c.l.b16 %v40
  %v129 = vunpack.c.l.b16 %v41
  %v130 = vunpack.c.l.b16 %v42
  %v131 = vunpack.c.l.b16 %v43
  %v132 = vunpack.c.l.b16 %v44
  %v133 = vunpack.c.l.b16 %v45
  %v134 = vunpack.c.l.b16 %v46
  %v135 = vunpack.c.l.b16 %v47
  %v136 = vunpack.c.l.b16 %v48
  %v137 = vunpack.c.l.b16 %v49
  %v138 = vpack.c.b16 %v107, %v106
  %v139 = vpack.c.b16 %v109, %v108
  %v140 = vpack.c.b16 %v111, %v110
  %v141 = vpack.c.b16 %v113, %v112
  %v142 = vpack.c.b16 %v115, %v114
  %v143 = vpack.c.b16 %v117, %v116
  %v144 = vpack.c.b16 %v119, %v118
  %v145 = vpack.c.b16 %v121, %v120
  %v146 = vpack.c.b16 %v123, %v122
  %v147 = vpack.c.b16 %v125, %v124
  %v148 = vpack.c.b16 %v127, %v126
  %v149 = vpack.c.b16 %v129, %v128
  %v150 = vpack.c.b16 %v131, %v130
  %v151 = vpack.c.b16 %v133, %v132
  %v152 = vpack.c.b16 %v135, %v134
  %v153 = vpack.c.b16 %v137, %v136
  %170 = vmatpush.bf16.msra.mxu0 %v145
  %171 = vmatpush.bf16.msra.mxu0 %v144
  %172 = vmatpush.bf16.msra.mxu0 %v143
  %173 = vmatpush.bf16.msra.mxu0 %v142
  %174 = vmatpush.bf16.msra.mxu0 %v141
  %175 = vmatpush.bf16.msra.mxu0 %v140
  %176 = vmatpush.bf16.msra.mxu0 %v139
  %177 = vmatpush.bf16.msra.mxu0 %v138
  %178 = vmatmul.bf16.gmra.mxu0 %v66
  %v179 = vpop.f32.mrf.mxu0
  %v180 = vadd.f32 %v52, %v179
  %v181 = vpop.f32.mrf.mxu0
  %v182 = vadd.f32 %v52, %v181
  %183 = vmatmul.bf16.gmra.mxu0 %v68
  %v184 = vpop.f32.mrf.mxu0
  %v185 = vadd.f32 %v52, %v184
  %v186 = vpop.f32.mrf.mxu0
  %v187 = vadd.f32 %v52, %v186
  %188 = vdwg.mxu0
  %189 = vmatpush.bf16.msra.mxu0 %v153
  %190 = vmatpush.bf16.msra.mxu0 %v152
  %191 = vmatpush.bf16.msra.mxu0 %v151
  %192 = vmatpush.bf16.msra.mxu0 %v150
  %193 = vmatpush.bf16.msra.mxu0 %v149
  %194 = vmatpush.bf16.msra.mxu0 %v148
  %195 = vmatpush.bf16.msra.mxu0 %v147
  %196 = vmatpush.bf16.msra.mxu0 %v146
  %197 = vmatmul.bf16.gmra.mxu0 %v67
  %v198 = vpop.f32.mrf.mxu0
  %v199 = vadd.f32 %v180, %v198
  %v200 = vpop.f32.mrf.mxu0
  %v201 = vadd.f32 %v182, %v200
  %202 = vmatmul.bf16.gmra.mxu0 %v69
  %v203 = vpop.f32.mrf.mxu0
  %v204 = vadd.f32 %v185, %v203
  %v205 = vpop.f32.mrf.mxu0
  %v206 = vadd.f32 %v187, %v205
  %207 = vdwg.mxu0
  %v208 = vmax.f32 %v199, 0.0
  %v209 = vmax.f32 %v201, 0.0
  %v210 = vmax.f32 %v204, 0.0
  %v211 = vmax.f32 %v206, 0.0
  %v212 = vpack.c.bf16 %v208, %v208
  %v213 = vpack.c.bf16 %v209, %v209
  %v214 = vpack.c.bf16 %v210, %v210
  %v215 = vpack.c.bf16 %v211, %v211
  %216 = vst [vmem:[%s3] sm:$0xf] %v212
  %217 = vst [vmem:[%s3 + $0x4] sm:$0xf] %v213
  %218 = vst [vmem:[%s3 + $0x8] sm:$0xf] %v214
  %219 = vst [vmem:[%s3 + $0xc] sm:$0xf] %v215
  // Predicated region
  $region14: #{bio_vae_forward.10} parent=0 // pred_check
    _
  $region15: #{bio_vae_forward.10} parent=0 // pred_check_branch
    %221 = sbr.rel (0) target = $region17
  $region16: #{bio_vae_forward.10} parent=0 // pred_region
    _
  $region17: #{bio_vae_forward.10} parent=0 // pred_fallthru
    _
  // Predicated region
  $region18: #{bio_vae_forward.10} parent=0 // pred_check
    _
  $region19: #{bio_vae_forward.10} parent=0 // pred_check_branch
    %223 = sbr.rel (0) target = $region21
  $region20: #{bio_vae_forward.10} parent=0 // pred_region
    _
  $region21: #{bio_vae_forward.10} parent=0 // pred_fallthru
    _

// kernel: bio_vae_forward.11
$region0: #{bio_vae_forward.11}
  #allocation0 [shape = 'u32[]', space=smem, size = 0x4, offset = 0x4, fixed_abs, tag = 'smem constant byte address 0x4 - core index']
  #allocation1 [shape = 'u32[72,128]{1,0:T(1,128)}', space=vmem, size = 0x9000, scoped, tag = 'internal scratch']
  %s0 = inlined_call_operand.vmem [shape: bf16[32,384], index: 0, kind: input, shape index: {}]
  %s1 = inlined_call_operand.vmem [shape: bf16[384,128], index: 1, kind: input, shape index: {}]
  %s2 = inlined_call_operand.vmem [shape: f32[1,128], index: 2, kind: input, shape index: {}]
  %s3 = inlined_call_operand.vmem [shape: bf16[32,128], index: 3, kind: output, shape index: {}]
  %s4 = sld [smem:[#allocation0]]
  $region22: #{bio_vae_forward.11} parent=0
    _
  %s6 = ssub.s32 1, %s4
  %s7 = scalar_select 0, %s6, %s4
  // Predicated region
  $region2: #{bio_vae_forward.11} parent=0 // pred_check
    _
  $region3: #{bio_vae_forward.11} parent=0 // pred_check_branch
    %9 = sbr.rel (0) target = $region5
  $region4: #{bio_vae_forward.11} parent=0 // pred_region
    _
  $region5: #{bio_vae_forward.11} parent=0 // pred_fallthru
    _
  // Predicated region
  $region6: #{bio_vae_forward.11} parent=0 // pred_check
    _
  $region7: #{bio_vae_forward.11} parent=0 // pred_check_branch
    %11 = sbr.rel (0) target = $region9
  $region8: #{bio_vae_forward.11} parent=0 // pred_region
    _
  $region9: #{bio_vae_forward.11} parent=0 // pred_fallthru
    _
  // Predicated region
  $region10: #{bio_vae_forward.11} parent=0 // pred_check
    _
  $region11: #{bio_vae_forward.11} parent=0 // pred_check_branch
    %13 = sbr.rel (0) target = $region13
  $region12: #{bio_vae_forward.11} parent=0 // pred_region
    _
  $region13: #{bio_vae_forward.11} parent=0 // pred_fallthru
    _
  %v14 = vld [vmem:[%s0] sm:$0xff]
  %v15 = vld [vmem:[%s0 + $0x8] sm:$0xf]
  %v16 = vld [vmem:[%s0 + $0xc] sm:$0xff]
  %v17 = vld [vmem:[%s0 + $0x14] sm:$0xf]
  %v18 = vld [vmem:[%s0 + $0x18] sm:$0xff]
  %v19 = vld [vmem:[%s0 + $0x20] sm:$0xf]
  %v20 = vld [vmem:[%s0 + $0x24] sm:$0xff]
  %v21 = vld [vmem:[%s0 + $0x2c] sm:$0xf]
  %v22 = vld [vmem:[%s1] sm:$0xf]
  %v23 = vld [vmem:[%s1 + $0x4] sm:$0xf]
  %v24 = vld [vmem:[%s1 + $0x8] sm:$0xf]
  %v25 = vld [vmem:[%s1 + $0xc] sm:$0xf]
  %v26 = vld [vmem:[%s1 + $0x10] sm:$0xf]
  %v27 = vld [vmem:[%s1 + $0x14] sm:$0xf]
  %v28 = vld [vmem:[%s1 + $0x18] sm:$0xf]
  %v29 = vld [vmem:[%s1 + $0x1c] sm:$0xf]
  %v30 = vld [vmem:[%s1 + $0x20] sm:$0xf]
  %v31 = vld [vmem:[%s1 + $0x24] sm:$0xf]
  %v32 = vld [vmem:[%s1 + $0x28] sm:$0xf]
  %v33 = vld [vmem:[%s1 + $0x2c] sm:$0xf]
  %v34 = vld [vmem:[%s1 + $0x30] sm:$0xf]
  %v35 = vld [vmem:[%s1 + $0x34] sm:$0xf]
  %v36 = vld [vmem:[%s1 + $0x38] sm:$0xf]
  %v37 = vld [vmem:[%s1 + $0x3c] sm:$0xf]
  %v38 = vld [vmem:[%s1 + $0x40] sm:$0xf]
  %v39 = vld [vmem:[%s1 + $0x44] sm:$0xf]
  %v40 = vld [vmem:[%s1 + $0x48] sm:$0xf]
  %v41 = vld [vmem:[%s1 + $0x4c] sm:$0xf]
  %v42 = vld [vmem:[%s1 + $0x50] sm:$0xf]
  %v43 = vld [vmem:[%s1 + $0x54] sm:$0xf]
  %v44 = vld [vmem:[%s1 + $0x58] sm:$0xf]
  %v45 = vld [vmem:[%s1 + $0x5c] sm:$0xf]
  %v46 = vld [vmem:[%s1 + $0x60] sm:$0xf]
  %v47 = vld [vmem:[%s1 + $0x64] sm:$0xf]
  %v48 = vld [vmem:[%s1 + $0x68] sm:$0xf]
  %v49 = vld [vmem:[%s1 + $0x6c] sm:$0xf]
  %v50 = vld [vmem:[%s1 + $0x70] sm:$0xf]
  %v51 = vld [vmem:[%s1 + $0x74] sm:$0xf]
  %v52 = vld [vmem:[%s1 + $0x78] sm:$0xf]
  %v53 = vld [vmem:[%s1 + $0x7c] sm:$0xf]
  %v54 = vld [vmem:[%s1 + $0x80] sm:$0xf]
  %v55 = vld [vmem:[%s1 + $0x84] sm:$0xf]
  %v56 = vld [vmem:[%s1 + $0x88] sm:$0xf]
  %v57 = vld [vmem:[%s1 + $0x8c] sm:$0xf]
  %v58 = vld [vmem:[%s1 + $0x90] sm:$0xf]
  %v59 = vld [vmem:[%s1 + $0x94] sm:$0xf]
  %v60 = vld [vmem:[%s1 + $0x98] sm:$0xf]
  %v61 = vld [vmem:[%s1 + $0x9c] sm:$0xf]
  %v62 = vld [vmem:[%s1 + $0xa0] sm:$0xf]
  %v63 = vld [vmem:[%s1 + $0xa4] sm:$0xf]
  %v64 = vld [vmem:[%s1 + $0xa8] sm:$0xf]
  %v65 = vld [vmem:[%s1 + $0xac] sm:$0xf]
  %v66 = vld [vmem:[%s1 + $0xb0] sm:$0xf]
  %v67 = vld [vmem:[%s1 + $0xb4] sm:$0xf]
  %v68 = vld [vmem:[%s1 + $0xb8] sm:$0xf]
  %v69 = vld [vmem:[%s1 + $0xbc] sm:$0xf]
  %v70 = vld [vmem:[%s2] sm:$0x1]
  %v72 = vperm.slane %v70, 0
  %v82 = vunpack.c.l.b16 %v14
  %v83 = vunpack.c.h.b16 %v14
  %v84 = vunpack.c.l.b16 %v15
  %v85 = vunpack.c.l.b16 %v16
  %v86 = vunpack.c.h.b16 %v16
  %v87 = vunpack.c.l.b16 %v17
  %v88 = vunpack.c.l.b16 %v18
  %v89 = vunpack.c.h.b16 %v18
  %v90 = vunpack.c.l.b16 %v19
  %v91 = vunpack.c.l.b16 %v20
  %v92 = vunpack.c.h.b16 %v20
  %v93 = vunpack.c.l.b16 %v21
  %v94 = vpack.c.b16 %v85, %v82
  %v95 = vpack.c.b16 %v86, %v83
  %v96 = vpack.c.b16 %v87, %v84
  %v97 = vpack.c.b16 %v91, %v88
  %v98 = vpack.c.b16 %v92, %v89
  %v99 = vpack.c.b16 %v93, %v90
  %v154 = vunpack.c.l.b16 %v22
  %v155 = vunpack.c.l.b16 %v23
  %v156 = vunpack.c.l.b16 %v24
  %v157 = vunpack.c.l.b16 %v25
  %v158 = vunpack.c.l.b16 %v26
  %v159 = vunpack.c.l.b16 %v27
  %v160 = vunpack.c.l.b16 %v28
  %v161 = vunpack.c.l.b16 %v29
  %v162 = vunpack.c.l.b16 %v30
  %v163 = vunpack.c.l.b16 %v31
  %v164 = vunpack.c.l.b16 %v32
  %v165 = vunpack.c.l.b16 %v33
  %v166 = vunpack.c.l.b16 %v34
  %v167 = vunpack.c.l.b16 %v35
  %v168 = vunpack.c.l.b16 %v36
  %v169 = vunpack.c.l.b16 %v37
  %v170 = vunpack.c.l.b16 %v38
  %v171 = vunpack.c.l.b16 %v39
  %v172 = vunpack.c.l.b16 %v40
  %v173 = vunpack.c.l.b16 %v41
  %v174 = vunpack.c.l.b16 %v42
  %v175 = vunpack.c.l.b16 %v43
  %v176 = vunpack.c.l.b16 %v44
  %v177 = vunpack.c.l.b16 %v45
  %v178 = vunpack.c.l.b16 %v46
  %v179 = vunpack.c.l.b16 %v47
  %v180 = vunpack.c.l.b16 %v48
  %v181 = vunpack.c.l.b16 %v49
  %v182 = vunpack.c.l.b16 %v50
  %v183 = vunpack.c.l.b16 %v51
  %v184 = vunpack.c.l.b16 %v52
  %v185 = vunpack.c.l.b16 %v53
  %v186 = vunpack.c.l.b16 %v54
  %v187 = vunpack.c.l.b16 %v55
  %v188 = vunpack.c.l.b16 %v56
  %v189 = vunpack.c.l.b16 %v57
  %v190 = vunpack.c.l.b16 %v58
  %v191 = vunpack.c.l.b16 %v59
  %v192 = vunpack.c.l.b16 %v60
  %v193 = vunpack.c.l.b16 %v61
  %v194 = vunpack.c.l.b16 %v62
  %v195 = vunpack.c.l.b16 %v63
  %v196 = vunpack.c.l.b16 %v64
  %v197 = vunpack.c.l.b16 %v65
  %v198 = vunpack.c.l.b16 %v66
  %v199 = vunpack.c.l.b16 %v67
  %v200 = vunpack.c.l.b16 %v68
  %v201 = vunpack.c.l.b16 %v69
  %v202 = vpack.c.b16 %v155, %v154
  %v203 = vpack.c.b16 %v157, %v156
  %v204 = vpack.c.b16 %v159, %v158
  %v205 = vpack.c.b16 %v161, %v160
  %v206 = vpack.c.b16 %v163, %v162
  %v207 = vpack.c.b16 %v165, %v164
  %v208 = vpack.c.b16 %v167, %v166
  %v209 = vpack.c.b16 %v169, %v168
  %v210 = vpack.c.b16 %v171, %v170
  %v211 = vpack.c.b16 %v173, %v172
  %v212 = vpack.c.b16 %v175, %v174
  %v213 = vpack.c.b16 %v177, %v176
  %v214 = vpack.c.b16 %v179, %v178
  %v215 = vpack.c.b16 %v181, %v180
  %v216 = vpack.c.b16 %v183, %v182
  %v217 = vpack.c.b16 %v185, %v184
  %v218 = vpack.c.b16 %v187, %v186
  %v219 = vpack.c.b16 %v189, %v188
  %v220 = vpack.c.b16 %v191, %v190
  %v221 = vpack.c.b16 %v193, %v192
  %v222 = vpack.c.b16 %v195, %v194
  %v223 = vpack.c.b16 %v197, %v196
  %v224 = vpack.c.b16 %v199, %v198
  %v225 = vpack.c.b16 %v201, %v200
  %250 = vmatpush.bf16.msra.mxu0 %v209
  %251 = vmatpush.bf16.msra.mxu0 %v208
  %252 = vmatpush.bf16.msra.mxu0 %v207
  %253 = vmatpush.bf16.msra.mxu0 %v206
  %254 = vmatpush.bf16.msra.mxu0 %v205
  %255 = vmatpush.bf16.msra.mxu0 %v204
  %256 = vmatpush.bf16.msra.mxu0 %v203
  %257 = vmatpush.bf16.msra.mxu0 %v202
  %258 = vmatmul.bf16.gmra.mxu0 %v94
  %v259 = vpop.f32.mrf.mxu0
  %v260 = vadd.f32 %v72, %v259
  %v261 = vpop.f32.mrf.mxu0
  %v262 = vadd.f32 %v72, %v261
  %263 = vmatmul.bf16.gmra.mxu0 %v97
  %v264 = vpop.f32.mrf.mxu0
  %v265 = vadd.f32 %v72, %v264
  %v266 = vpop.f32.mrf.mxu0
  %v267 = vadd.f32 %v72, %v266
  %268 = vdwg.mxu0
  %269 = vmatpush.bf16.msra.mxu0 %v217
  %270 = vmatpush.bf16.msra.mxu0 %v216
  %271 = vmatpush.bf16.msra.mxu0 %v215
  %272 = vmatpush.bf16.msra.mxu0 %v214
  %273 = vmatpush.bf16.msra.mxu0 %v213
  %274 = vmatpush.bf16.msra.mxu0 %v212
  %275 = vmatpush.bf16.msra.mxu0 %v211
  %276 = vmatpush.bf16.msra.mxu0 %v210
  %277 = vmatmul.bf16.gmra.mxu0 %v95
  %v278 = vpop.f32.mrf.mxu0
  %v279 = vadd.f32 %v260, %v278
  %v280 = vpop.f32.mrf.mxu0
  %v281 = vadd.f32 %v262, %v280
  %282 = vmatmul.bf16.gmra.mxu0 %v98
  %v283 = vpop.f32.mrf.mxu0
  %v284 = vadd.f32 %v265, %v283
  %v285 = vpop.f32.mrf.mxu0
  %v286 = vadd.f32 %v267, %v285
  %287 = vdwg.mxu0
  %288 = vmatpush.bf16.msra.mxu0 %v225
  %289 = vmatpush.bf16.msra.mxu0 %v224
  %290 = vmatpush.bf16.msra.mxu0 %v223
  %291 = vmatpush.bf16.msra.mxu0 %v222
  %292 = vmatpush.bf16.msra.mxu0 %v221
  %293 = vmatpush.bf16.msra.mxu0 %v220
  %294 = vmatpush.bf16.msra.mxu0 %v219
  %295 = vmatpush.bf16.msra.mxu0 %v218
  %296 = vmatmul.bf16.gmra.mxu0 %v96
  %v297 = vpop.f32.mrf.mxu0
  %v298 = vadd.f32 %v279, %v297
  %v299 = vpop.f32.mrf.mxu0
  %v300 = vadd.f32 %v281, %v299
  %301 = vmatmul.bf16.gmra.mxu0 %v99
  %v302 = vpop.f32.mrf.mxu0
  %v303 = vadd.f32 %v284, %v302
  %v304 = vpop.f32.mrf.mxu0
  %v305 = vadd.f32 %v286, %v304
  %306 = vdwg.mxu0
  %v307 = vpack.c.bf16 %v298, %v298
  %v308 = vpack.c.bf16 %v300, %v300
  %v309 = vpack.c.bf16 %v303, %v303
  %v310 = vpack.c.bf16 %v305, %v305
  %311 = vst [vmem:[%s3] sm:$0xf] %v307
  %312 = vst [vmem:[%s3 + $0x4] sm:$0xf] %v308
  %313 = vst [vmem:[%s3 + $0x8] sm:$0xf] %v309
  %314 = vst [vmem:[%s3 + $0xc] sm:$0xf] %v310
  // Predicated region
  $region14: #{bio_vae_forward.11} parent=0 // pred_check
    _
  $region15: #{bio_vae_forward.11} parent=0 // pred_check_branch
    %316 = sbr.rel (0) target = $region17
  $region16: #{bio_vae_forward.11} parent=0 // pred_region
    _
  $region17: #{bio_vae_forward.11} parent=0 // pred_fallthru
    _
  // Predicated region
  $region18: #{bio_vae_forward.11} parent=0 // pred_check
    _
  $region19: #{bio_vae_forward.11} parent=0 // pred_check_branch
    %318 = sbr.rel (0) target = $region21
  $region20: #{bio_vae_forward.11} parent=0 // pred_region
    _
  $region21: #{bio_vae_forward.11} parent=0 // pred_fallthru
    _

// kernel: bio_vae_forward.14
$region0: #{bio_vae_forward.14}
  #allocation0 [shape = 'u32[]', space=smem, size = 0x4, offset = 0x4, fixed_abs, tag = 'smem constant byte address 0x4 - core index']
  #allocation1 [shape = 'u32[72,128]{1,0:T(1,128)}', space=vmem, size = 0x9000, scoped, tag = 'internal scratch']
  %s0 = inlined_call_operand.vmem [shape: bf16[32,256], index: 0, kind: input, shape index: {}]
  %s1 = inlined_call_operand.vmem [shape: bf16[256,128], index: 1, kind: input, shape index: {}]
  %s2 = inlined_call_operand.vmem [shape: f32[1,128], index: 2, kind: input, shape index: {}]
  %s3 = inlined_call_operand.vmem [shape: bf16[32,128], index: 3, kind: output, shape index: {}]
  %s4 = sld [smem:[#allocation0]]
  $region22: #{bio_vae_forward.14} parent=0
    _
  %s6 = ssub.s32 1, %s4
  %s7 = scalar_select 0, %s6, %s4
  // Predicated region
  $region2: #{bio_vae_forward.14} parent=0 // pred_check
    _
  $region3: #{bio_vae_forward.14} parent=0 // pred_check_branch
    %9 = sbr.rel (0) target = $region5
  $region4: #{bio_vae_forward.14} parent=0 // pred_region
    _
  $region5: #{bio_vae_forward.14} parent=0 // pred_fallthru
    _
  // Predicated region
  $region6: #{bio_vae_forward.14} parent=0 // pred_check
    _
  $region7: #{bio_vae_forward.14} parent=0 // pred_check_branch
    %11 = sbr.rel (0) target = $region9
  $region8: #{bio_vae_forward.14} parent=0 // pred_region
    _
  $region9: #{bio_vae_forward.14} parent=0 // pred_fallthru
    _
  // Predicated region
  $region10: #{bio_vae_forward.14} parent=0 // pred_check
    _
  $region11: #{bio_vae_forward.14} parent=0 // pred_check_branch
    %13 = sbr.rel (0) target = $region13
  $region12: #{bio_vae_forward.14} parent=0 // pred_region
    _
  $region13: #{bio_vae_forward.14} parent=0 // pred_fallthru
    _
  %v14 = vld [vmem:[%s0] sm:$0xff]
  %v15 = vld [vmem:[%s0 + $0x8] sm:$0xff]
  %v16 = vld [vmem:[%s0 + $0x10] sm:$0xff]
  %v17 = vld [vmem:[%s0 + $0x18] sm:$0xff]
  %v18 = vld [vmem:[%s1] sm:$0xf]
  %v19 = vld [vmem:[%s1 + $0x4] sm:$0xf]
  %v20 = vld [vmem:[%s1 + $0x8] sm:$0xf]
  %v21 = vld [vmem:[%s1 + $0xc] sm:$0xf]
  %v22 = vld [vmem:[%s1 + $0x10] sm:$0xf]
  %v23 = vld [vmem:[%s1 + $0x14] sm:$0xf]
  %v24 = vld [vmem:[%s1 + $0x18] sm:$0xf]
  %v25 = vld [vmem:[%s1 + $0x1c] sm:$0xf]
  %v26 = vld [vmem:[%s1 + $0x20] sm:$0xf]
  %v27 = vld [vmem:[%s1 + $0x24] sm:$0xf]
  %v28 = vld [vmem:[%s1 + $0x28] sm:$0xf]
  %v29 = vld [vmem:[%s1 + $0x2c] sm:$0xf]
  %v30 = vld [vmem:[%s1 + $0x30] sm:$0xf]
  %v31 = vld [vmem:[%s1 + $0x34] sm:$0xf]
  %v32 = vld [vmem:[%s1 + $0x38] sm:$0xf]
  %v33 = vld [vmem:[%s1 + $0x3c] sm:$0xf]
  %v34 = vld [vmem:[%s1 + $0x40] sm:$0xf]
  %v35 = vld [vmem:[%s1 + $0x44] sm:$0xf]
  %v36 = vld [vmem:[%s1 + $0x48] sm:$0xf]
  %v37 = vld [vmem:[%s1 + $0x4c] sm:$0xf]
  %v38 = vld [vmem:[%s1 + $0x50] sm:$0xf]
  %v39 = vld [vmem:[%s1 + $0x54] sm:$0xf]
  %v40 = vld [vmem:[%s1 + $0x58] sm:$0xf]
  %v41 = vld [vmem:[%s1 + $0x5c] sm:$0xf]
  %v42 = vld [vmem:[%s1 + $0x60] sm:$0xf]
  %v43 = vld [vmem:[%s1 + $0x64] sm:$0xf]
  %v44 = vld [vmem:[%s1 + $0x68] sm:$0xf]
  %v45 = vld [vmem:[%s1 + $0x6c] sm:$0xf]
  %v46 = vld [vmem:[%s1 + $0x70] sm:$0xf]
  %v47 = vld [vmem:[%s1 + $0x74] sm:$0xf]
  %v48 = vld [vmem:[%s1 + $0x78] sm:$0xf]
  %v49 = vld [vmem:[%s1 + $0x7c] sm:$0xf]
  %v50 = vld [vmem:[%s2] sm:$0x1]
  %v52 = vperm.slane %v50, 0
  %v58 = vunpack.c.l.b16 %v14
  %v59 = vunpack.c.h.b16 %v14
  %v60 = vunpack.c.l.b16 %v15
  %v61 = vunpack.c.h.b16 %v15
  %v62 = vunpack.c.l.b16 %v16
  %v63 = vunpack.c.h.b16 %v16
  %v64 = vunpack.c.l.b16 %v17
  %v65 = vunpack.c.h.b16 %v17
  %v66 = vpack.c.b16 %v60, %v58
  %v67 = vpack.c.b16 %v61, %v59
  %v68 = vpack.c.b16 %v64, %v62
  %v69 = vpack.c.b16 %v65, %v63
  %v106 = vunpack.c.l.b16 %v18
  %v107 = vunpack.c.l.b16 %v19
  %v108 = vunpack.c.l.b16 %v20
  %v109 = vunpack.c.l.b16 %v21
  %v110 = vunpack.c.l.b16 %v22
  %v111 = vunpack.c.l.b16 %v23
  %v112 = vunpack.c.l.b16 %v24
  %v113 = vunpack.c.l.b16 %v25
  %v114 = vunpack.c.l.b16 %v26
  %v115 = vunpack.c.l.b16 %v27
  %v116 = vunpack.c.l.b16 %v28
  %v117 = vunpack.c.l.b16 %v29
  %v118 = vunpack.c.l.b16 %v30
  %v119 = vunpack.c.l.b16 %v31
  %v120 = vunpack.c.l.b16 %v32
  %v121 = vunpack.c.l.b16 %v33
  %v122 = vunpack.c.l.b16 %v34
  %v123 = vunpack.c.l.b16 %v35
  %v124 = vunpack.c.l.b16 %v36
  %v125 = vunpack.c.l.b16 %v37
  %v126 = vunpack.c.l.b16 %v38
  %v127 = vunpack.c.l.b16 %v39
  %v128 = vunpack.c.l.b16 %v40
  %v129 = vunpack.c.l.b16 %v41
  %v130 = vunpack.c.l.b16 %v42
  %v131 = vunpack.c.l.b16 %v43
  %v132 = vunpack.c.l.b16 %v44
  %v133 = vunpack.c.l.b16 %v45
  %v134 = vunpack.c.l.b16 %v46
  %v135 = vunpack.c.l.b16 %v47
  %v136 = vunpack.c.l.b16 %v48
  %v137 = vunpack.c.l.b16 %v49
  %v138 = vpack.c.b16 %v107, %v106
  %v139 = vpack.c.b16 %v109, %v108
  %v140 = vpack.c.b16 %v111, %v110
  %v141 = vpack.c.b16 %v113, %v112
  %v142 = vpack.c.b16 %v115, %v114
  %v143 = vpack.c.b16 %v117, %v116
  %v144 = vpack.c.b16 %v119, %v118
  %v145 = vpack.c.b16 %v121, %v120
  %v146 = vpack.c.b16 %v123, %v122
  %v147 = vpack.c.b16 %v125, %v124
  %v148 = vpack.c.b16 %v127, %v126
  %v149 = vpack.c.b16 %v129, %v128
  %v150 = vpack.c.b16 %v131, %v130
  %v151 = vpack.c.b16 %v133, %v132
  %v152 = vpack.c.b16 %v135, %v134
  %v153 = vpack.c.b16 %v137, %v136
  %170 = vmatpush.bf16.msra.mxu0 %v145
  %171 = vmatpush.bf16.msra.mxu0 %v144
  %172 = vmatpush.bf16.msra.mxu0 %v143
  %173 = vmatpush.bf16.msra.mxu0 %v142
  %174 = vmatpush.bf16.msra.mxu0 %v141
  %175 = vmatpush.bf16.msra.mxu0 %v140
  %176 = vmatpush.bf16.msra.mxu0 %v139
  %177 = vmatpush.bf16.msra.mxu0 %v138
  %178 = vmatmul.bf16.gmra.mxu0 %v66
  %v179 = vpop.f32.mrf.mxu0
  %v180 = vadd.f32 %v52, %v179
  %v181 = vpop.f32.mrf.mxu0
  %v182 = vadd.f32 %v52, %v181
  %183 = vmatmul.bf16.gmra.mxu0 %v68
  %v184 = vpop.f32.mrf.mxu0
  %v185 = vadd.f32 %v52, %v184
  %v186 = vpop.f32.mrf.mxu0
  %v187 = vadd.f32 %v52, %v186
  %188 = vdwg.mxu0
  %189 = vmatpush.bf16.msra.mxu0 %v153
  %190 = vmatpush.bf16.msra.mxu0 %v152
  %191 = vmatpush.bf16.msra.mxu0 %v151
  %192 = vmatpush.bf16.msra.mxu0 %v150
  %193 = vmatpush.bf16.msra.mxu0 %v149
  %194 = vmatpush.bf16.msra.mxu0 %v148
  %195 = vmatpush.bf16.msra.mxu0 %v147
  %196 = vmatpush.bf16.msra.mxu0 %v146
  %197 = vmatmul.bf16.gmra.mxu0 %v67
  %v198 = vpop.f32.mrf.mxu0
  %v199 = vadd.f32 %v180, %v198
  %v200 = vpop.f32.mrf.mxu0
  %v201 = vadd.f32 %v182, %v200
  %202 = vmatmul.bf16.gmra.mxu0 %v69
  %v203 = vpop.f32.mrf.mxu0
  %v204 = vadd.f32 %v185, %v203
  %v205 = vpop.f32.mrf.mxu0
  %v206 = vadd.f32 %v187, %v205
  %207 = vdwg.mxu0
  %v208 = vpack.c.bf16 %v199, %v199
  %v209 = vpack.c.bf16 %v201, %v201
  %v210 = vpack.c.bf16 %v204, %v204
  %v211 = vpack.c.bf16 %v206, %v206
  %212 = vst [vmem:[%s3] sm:$0xf] %v208
  %213 = vst [vmem:[%s3 + $0x4] sm:$0xf] %v209
  %214 = vst [vmem:[%s3 + $0x8] sm:$0xf] %v210
  %215 = vst [vmem:[%s3 + $0xc] sm:$0xf] %v211
  // Predicated region
  $region14: #{bio_vae_forward.14} parent=0 // pred_check
    _
  $region15: #{bio_vae_forward.14} parent=0 // pred_check_branch
    %217 = sbr.rel (0) target = $region17
  $region16: #{bio_vae_forward.14} parent=0 // pred_region
    _
  $region17: #{bio_vae_forward.14} parent=0 // pred_fallthru
    _
  // Predicated region
  $region18: #{bio_vae_forward.14} parent=0 // pred_check
    _
  $region19: #{bio_vae_forward.14} parent=0 // pred_check_branch
    %219 = sbr.rel (0) target = $region21
  $region20: #{bio_vae_forward.14} parent=0 // pred_region
    _
  $region21: #{bio_vae_forward.14} parent=0 // pred_fallthru
    _

// kernel: bio_vae_forward.13
$region0: #{bio_vae_forward.13}
  #allocation0 [shape = 'u32[]', space=smem, size = 0x4, offset = 0x4, fixed_abs, tag = 'smem constant byte address 0x4 - core index']
  #allocation1 [shape = 'u32[72,128]{1,0:T(1,128)}', space=vmem, size = 0x9000, scoped, tag = 'internal scratch']
  #allocation2 [shape = 'f32[1,1]{1,0:T(1,128)}', space=vmem, size = 0x200, scoped, tag = 'scratch operand']
  #allocation3 [shape = 'f32[1,128]{1,0:T(1,128)}', space=vmem, size = 0x200, scoped, tag = 'scratch operand']
  %s0 = inlined_call_operand.vmem [shape: bf16[32,128], index: 0, kind: input, shape index: {}]
  %s1 = inlined_call_operand.vmem [shape: bf16[128,128], index: 1, kind: input, shape index: {}]
  %s2 = inlined_call_operand.vmem [shape: f32[1,128], index: 2, kind: input, shape index: {}]
  %s3 = inlined_call_operand.vmem [shape: f32[128,128], index: 3, kind: input, shape index: {}]
  %s4 = inlined_call_operand.vmem [shape: f32[32,128], index: 4, kind: output, shape index: {0}]
  %s5 = inlined_call_operand.hbm [shape: f32[1,1], index: 5, kind: output, shape index: {1}]
  %s6 = inlined_call_operand.hbm [shape: f32[1,1], index: 6, kind: output, shape index: {2}]
  %7 = xla_tuple %s4, %s5, %s6
  %s8 = sld [smem:[#allocation0]]
  $region50: #{bio_vae_forward.13} parent=0
    _
  %s10 = ssub.s32 1, %s8
  %s11 = scalar_select 0, %s10, %s8
  $region1: #{bio_vae_forward.13} parent=0
    #allocation4 [shape = 'u8[512]{0}', space=vmem, size = 0x400, scoped, tag = 'output window, operand 1, single buffered']
    #allocation5 [shape = 's32[1]{0}', space=sflag, size = 0x4, scoped, tag = 'scoped memory for bio_vae_forward.13']
    #allocation6 [shape = 'u8[512]{0}', space=vmem, size = 0x400, scoped, tag = 'output window, operand 2, single buffered']
    #allocation7 [shape = 's32[1]{0}', space=sflag, size = 0x4, scoped, tag = 'scoped memory for bio_vae_forward.13']
    %12 = vsyncpa [#allocation5], 0
    %13 = vsyncpa [#allocation7], 0
    // Predicated region
    $region2: #{bio_vae_forward.13} parent=1 // pred_check
      _
    $region3: #{bio_vae_forward.13} parent=1 // pred_check_branch
      %15 = sbr.rel (0) target = $region5
    $region4: #{bio_vae_forward.13} parent=1 // pred_region
      _
    $region5: #{bio_vae_forward.13} parent=1 // pred_fallthru
      _
    // Predicated region
    $region6: #{bio_vae_forward.13} parent=1 // pred_check
      _
    $region7: #{bio_vae_forward.13} parent=1 // pred_check_branch
      %17 = sbr.rel (0) target = $region9
    $region8: #{bio_vae_forward.13} parent=1 // pred_region
      _
    $region9: #{bio_vae_forward.13} parent=1 // pred_fallthru
      _
    // Predicated region
    $region10: #{bio_vae_forward.13} parent=1 // pred_check
      _
    $region11: #{bio_vae_forward.13} parent=1 // pred_check_branch
      %19 = sbr.rel (0) target = $region13
    $region12: #{bio_vae_forward.13} parent=1 // pred_region
      _
    $region13: #{bio_vae_forward.13} parent=1 // pred_fallthru
      _
    // Predicated region
    $region14: #{bio_vae_forward.13} parent=1 // pred_check
      _
    $region15: #{bio_vae_forward.13} parent=1 // pred_check_branch
      %21 = sbr.rel (0) target = $region17
    $region16: #{bio_vae_forward.13} parent=1 // pred_region
      _
    $region17: #{bio_vae_forward.13} parent=1 // pred_fallthru
      _
    %p22 = scmp.eq.s32.totalorder 0, 0
    // Predicated region
    $region18: #{bio_vae_forward.13} parent=1 // pred_check
      %p23 = pneg %p22
    $region19: #{bio_vae_forward.13} parent=1 // pred_check_branch
      %25 = sbr.rel (%p23) target = $region21
    $region20: #{bio_vae_forward.13} parent=1 // pred_region
      %vm26 = vcmask 0
      %27 = vst.msk [vmem:[#allocation2] sm:$0x1] %vm26, 0.0
      %28 = vst [vmem:[#allocation3] sm:$0x1] 0.0
    $region21: #{bio_vae_forward.13} parent=1 // pred_fallthru
      _
    %v29 = vld [vmem:[%s0] sm:$0xf]
    %v30 = vld [vmem:[%s0 + $0x4] sm:$0xf]
    %v31 = vld [vmem:[%s0 + $0x8] sm:$0xf]
    %v32 = vld [vmem:[%s0 + $0xc] sm:$0xf]
    %v33 = vunpack.c.l.bf16 %v29
    %v34 = vunpack.c.l.bf16 %v30
    %v35 = vunpack.c.l.bf16 %v31
    %v36 = vunpack.c.l.bf16 %v32
    %v37 = vmax.f32 %v33, 0.0
    %v38 = vmax.f32 %v34, 0.0
    %v39 = vmax.f32 %v35, 0.0
    %v40 = vmax.f32 %v36, 0.0
    %v41 = vpack.c.bf16 %v38, %v37
    %v42 = vpack.c.bf16 %v40, %v39
    %v43 = vld [vmem:[%s1] sm:$0xf]
    %v44 = vld [vmem:[%s1 + $0x4] sm:$0xf]
    %v45 = vld [vmem:[%s1 + $0x8] sm:$0xf]
    %v46 = vld [vmem:[%s1 + $0xc] sm:$0xf]
    %v47 = vld [vmem:[%s1 + $0x10] sm:$0xf]
    %v48 = vld [vmem:[%s1 + $0x14] sm:$0xf]
    %v49 = vld [vmem:[%s1 + $0x18] sm:$0xf]
    %v50 = vld [vmem:[%s1 + $0x1c] sm:$0xf]
    %v51 = vld [vmem:[%s1 + $0x20] sm:$0xf]
    %v52 = vld [vmem:[%s1 + $0x24] sm:$0xf]
    %v53 = vld [vmem:[%s1 + $0x28] sm:$0xf]
    %v54 = vld [vmem:[%s1 + $0x2c] sm:$0xf]
    %v55 = vld [vmem:[%s1 + $0x30] sm:$0xf]
    %v56 = vld [vmem:[%s1 + $0x34] sm:$0xf]
    %v57 = vld [vmem:[%s1 + $0x38] sm:$0xf]
    %v58 = vld [vmem:[%s1 + $0x3c] sm:$0xf]
    %v59 = vld [vmem:[%s2] sm:$0x1]
    %v61 = vperm.slane %v59, 0
    %v79 = vunpack.c.l.b16 %v43
    %v80 = vunpack.c.l.b16 %v44
    %v81 = vunpack.c.l.b16 %v45
    %v82 = vunpack.c.l.b16 %v46
    %v83 = vunpack.c.l.b16 %v47
    %v84 = vunpack.c.l.b16 %v48
    %v85 = vunpack.c.l.b16 %v49
    %v86 = vunpack.c.l.b16 %v50
    %v87 = vunpack.c.l.b16 %v51
    %v88 = vunpack.c.l.b16 %v52
    %v89 = vunpack.c.l.b16 %v53
    %v90 = vunpack.c.l.b16 %v54
    %v91 = vunpack.c.l.b16 %v55
    %v92 = vunpack.c.l.b16 %v56
    %v93 = vunpack.c.l.b16 %v57
    %v94 = vunpack.c.l.b16 %v58
    %v95 = vpack.c.b16 %v80, %v79
    %v96 = vpack.c.b16 %v82, %v81
    %v97 = vpack.c.b16 %v84, %v83
    %v98 = vpack.c.b16 %v86, %v85
    %v99 = vpack.c.b16 %v88, %v87
    %v100 = vpack.c.b16 %v90, %v89
    %v101 = vpack.c.b16 %v92, %v91
    %v102 = vpack.c.b16 %v94, %v93
    %111 = vmatpush.bf16.msra.mxu0 %v102
    %112 = vmatpush.bf16.msra.mxu0 %v101
    %113 = vmatpush.bf16.msra.mxu0 %v100
    %114 = vmatpush.bf16.msra.mxu0 %v99
    %115 = vmatpush.bf16.msra.mxu0 %v98
    %116 = vmatpush.bf16.msra.mxu0 %v97
    %117 = vmatpush.bf16.msra.mxu0 %v96
    %118 = vmatpush.bf16.msra.mxu0 %v95
    %119 = vmatmul.bf16.gmra.mxu0 %v41
    %v120 = vpop.f32.mrf.mxu0
    %v121 = vadd.f32 %v61, %v120
    %v122 = vpop.f32.mrf.mxu0
    %v123 = vadd.f32 %v61, %v122
    %124 = vmatmul.bf16.gmra.mxu0 %v42
    %v125 = vpop.f32.mrf.mxu0
    %v126 = vadd.f32 %v61, %v125
    %v127 = vpop.f32.mrf.mxu0
    %v128 = vadd.f32 %v61, %v127
    %129 = vdwg.mxu0
    %v130 = vld [vmem:[%s3] sm:$0xff]
    %v131 = vld [vmem:[%s3 + $0x8] sm:$0xff]
    %v132 = vld [vmem:[%s3 + $0x10] sm:$0xff]
    %v133 = vld [vmem:[%s3 + $0x18] sm:$0xff]
    %v134 = vld [vmem:[%s3 + $0x20] sm:$0xff]
    %v135 = vld [vmem:[%s3 + $0x28] sm:$0xff]
    %v136 = vld [vmem:[%s3 + $0x30] sm:$0xff]
    %v137 = vld [vmem:[%s3 + $0x38] sm:$0xff]
    %v138 = vld [vmem:[%s3 + $0x40] sm:$0xff]
    %v139 = vld [vmem:[%s3 + $0x48] sm:$0xff]
    %v140 = vld [vmem:[%s3 + $0x50] sm:$0xff]
    %v141 = vld [vmem:[%s3 + $0x58] sm:$0xff]
    %v142 = vld [vmem:[%s3 + $0x60] sm:$0xff]
    %v143 = vld [vmem:[%s3 + $0x68] sm:$0xff]
    %v144 = vld [vmem:[%s3 + $0x70] sm:$0xff]
    %v145 = vld [vmem:[%s3 + $0x78] sm:$0xff]
    %v146 = vlaneseq
    %v147 = vand.u32 %v146, 127
    %v148 = vlaneseq
    %v149 = vshrl.u32 %v148, 7
    %v150 = vadd.s32 %v149, 8
    %v151 = vadd.s32 %v149, 16
    %v152 = vadd.s32 %v149, 24
    %s153 = smul.u32 0, 32
    %v154 = vstv %s153
    %v155 = vadd.s32 %v149, %v154
    %v156 = vadd.s32 %v150, %v154
    %v157 = vadd.s32 %v151, %v154
    %v158 = vadd.s32 %v152, %v154
    %vm159 = vcmp.lt.s32.totalorder %v155, 32
    %vm160 = vcmp.lt.s32.totalorder %v156, 32
    %vm161 = vcmp.lt.s32.totalorder %v157, 32
    %vm162 = vcmp.lt.s32.totalorder %v158, 32
    %v163 = vmul.f32 %v121, %v121
    %v164 = vmul.f32 %v123, %v123
    %v165 = vmul.f32 %v126, %v126
    %v166 = vmul.f32 %v128, %v128
    %167 = vadd.xlane.f32.xlu0 %v163
    %v168 = vpop.xlane.xlu0 %167
    %169 = vadd.xlane.f32.xlu0 %v164
    %v170 = vpop.xlane.xlu0 %169
    %171 = vadd.xlane.f32.xlu0 %v165
    %v172 = vpop.xlane.xlu0 %171
    %173 = vadd.xlane.f32.xlu0 %v166
    %v174 = vpop.xlane.xlu0 %173
    %v175 = vmul.f32 %v130, %v130
    %v176 = vmul.f32 %v131, %v131
    %v177 = vmul.f32 %v132, %v132
    %v178 = vmul.f32 %v133, %v133
    %v179 = vmul.f32 %v134, %v134
    %v180 = vmul.f32 %v135, %v135
    %v181 = vmul.f32 %v136, %v136
    %v182 = vmul.f32 %v137, %v137
    %v183 = vmul.f32 %v138, %v138
    %v184 = vmul.f32 %v139, %v139
    %v185 = vmul.f32 %v140, %v140
    %v186 = vmul.f32 %v141, %v141
    %v187 = vmul.f32 %v142, %v142
    %v188 = vmul.f32 %v143, %v143
    %v189 = vmul.f32 %v144, %v144
    %v190 = vmul.f32 %v145, %v145
    %191 = vadd.xlane.f32.xlu0 %v175
    %v192 = vpop.xlane.xlu0 %191
    %193 = vadd.xlane.f32.xlu0 %v176
    %v194 = vpop.xlane.xlu0 %193
    %195 = vadd.xlane.f32.xlu0 %v177
    %v196 = vpop.xlane.xlu0 %195
    %197 = vadd.xlane.f32.xlu0 %v178
    %v198 = vpop.xlane.xlu0 %197
    %199 = vadd.xlane.f32.xlu0 %v179
    %v200 = vpop.xlane.xlu0 %199
    %201 = vadd.xlane.f32.xlu0 %v180
    %v202 = vpop.xlane.xlu0 %201
    %203 = vadd.xlane.f32.xlu0 %v181
    %v204 = vpop.xlane.xlu0 %203
    %205 = vadd.xlane.f32.xlu0 %v182
    %v206 = vpop.xlane.xlu0 %205
    %207 = vadd.xlane.f32.xlu0 %v183
    %v208 = vpop.xlane.xlu0 %207
    %209 = vadd.xlane.f32.xlu0 %v184
    %v210 = vpop.xlane.xlu0 %209
    %211 = vadd.xlane.f32.xlu0 %v185
    %v212 = vpop.xlane.xlu0 %211
    %213 = vadd.xlane.f32.xlu0 %v186
    %v214 = vpop.xlane.xlu0 %213
    %215 = vadd.xlane.f32.xlu0 %v187
    %v216 = vpop.xlane.xlu0 %215
    %217 = vadd.xlane.f32.xlu0 %v188
    %v218 = vpop.xlane.xlu0 %217
    %219 = vadd.xlane.f32.xlu0 %v189
    %v220 = vpop.xlane.xlu0 %219
    %221 = vadd.xlane.f32.xlu0 %v190
    %v222 = vpop.xlane.xlu0 %221
    %v223 = vpack.c.bf16 %v123, %v121
    %v224 = vpack.c.bf16 %v128, %v126
    %v225 = vpack.c.bf16 %v131, %v130
    %v226 = vpack.c.bf16 %v133, %v132
    %v227 = vpack.c.bf16 %v135, %v134
    %v228 = vpack.c.bf16 %v137, %v136
    %v229 = vpack.c.bf16 %v139, %v138
    %v230 = vpack.c.bf16 %v141, %v140
    %v231 = vpack.c.bf16 %v143, %v142
    %v232 = vpack.c.bf16 %v145, %v144
    %233 = vmatpush.bf16.xpose.msra.mxu0 %v232
    %234 = vmatpush.bf16.xpose.msra.mxu0 %v231
    %235 = vmatpush.bf16.xpose.msra.mxu0 %v230
    %236 = vmatpush.bf16.xpose.msra.mxu0 %v229
    %237 = vmatpush.bf16.xpose.msra.mxu0 %v228
    %238 = vmatpush.bf16.xpose.msra.mxu0 %v227
    %239 = vmatpush.bf16.xpose.msra.mxu0 %v226
    %240 = vmatpush.bf16.xpose.msra.mxu0 %v225
    %241 = vmatmul.bf16.gmra.mxu0 %v223
    %v242 = vpop.f32.mrf.mxu0
    %v243 = vadd.f32 0.0, %v242
    %v244 = vpop.f32.mrf.mxu0
    %v245 = vadd.f32 0.0, %v244
    %246 = vmatmul.bf16.gmra.mxu0 %v224
    %v247 = vpop.f32.mrf.mxu0
    %v248 = vadd.f32 0.0, %v247
    %v249 = vpop.f32.mrf.mxu0
    %v250 = vadd.f32 0.0, %v249
    %251 = vdwg.mxu0
    %v268 = vperm.slane %v192, %v147
    %v269 = vadd.s32 %v147, 4294967288
    %v270 = vperm.slane %v194, %v269
    %vm271 = vcmask 130112
    %v272 = vsel %vm271, %v270, %v268
    %v273 = vadd.s32 %v147, 4294967280
    %v274 = vperm.slane %v196, %v273
    %vm275 = vcmask 195712
    %v276 = vsel %vm275, %v274, %v272
    %v277 = vadd.s32 %v147, 4294967272
    %v278 = vperm.slane %v198, %v277
    %vm279 = vcmask 261312
    %v280 = vsel %vm279, %v278, %v276
    %v281 = vadd.s32 %v147, 4294967264
    %v282 = vperm.slane %v200, %v281
    %vm283 = vcmask 326912
    %v284 = vsel %vm283, %v282, %v280
    %v285 = vadd.s32 %v147, 4294967256
    %v286 = vperm.slane %v202, %v285
    %vm287 = vcmask 392512
    %v288 = vsel %vm287, %v286, %v284
    %v289 = vadd.s32 %v147, 4294967248
    %v290 = vperm.slane %v204, %v289
    %vm291 = vcmask 458112
    %v292 = vsel %vm291, %v290, %v288
    %v293 = vadd.s32 %v147, 4294967240
    %v294 = vperm.slane %v206, %v293
    %vm295 = vcmask 523712
    %v296 = vsel %vm295, %v294, %v292
    %v297 = vadd.s32 %v147, 4294967232
    %v298 = vperm.slane %v208, %v297
    %vm299 = vcmask 589312
    %v300 = vsel %vm299, %v298, %v296
    %v301 = vadd.s32 %v147, 4294967224
    %v302 = vperm.slane %v210, %v301
    %vm303 = vcmask 654912
    %v304 = vsel %vm303, %v302, %v300
    %v305 = vadd.s32 %v147, 4294967216
    %v306 = vperm.slane %v212, %v305
    %vm307 = vcmask 720512
    %v308 = vsel %vm307, %v306, %v304
    %v309 = vadd.s32 %v147, 4294967208
    %v310 = vperm.slane %v214, %v309
    %vm311 = vcmask 786112
    %v312 = vsel %vm311, %v310, %v308
    %v313 = vadd.s32 %v147, 4294967200
    %v314 = vperm.slane %v216, %v313
    %vm315 = vcmask 851712
    %v316 = vsel %vm315, %v314, %v312
    %v317 = vadd.s32 %v147, 4294967192
    %v318 = vperm.slane %v218, %v317
    %vm319 = vcmask 917312
    %v320 = vsel %vm319, %v318, %v316
    %v321 = vadd.s32 %v147, 4294967184
    %v322 = vperm.slane %v220, %v321
    %vm323 = vcmask 982912
    %v324 = vsel %vm323, %v322, %v320
    %v325 = vadd.s32 %v147, 4294967176
    %v326 = vperm.slane %v222, %v325
    %vm327 = vcmask 1048512
    %v328 = vsel %vm327, %v326, %v324
    %vm329 = vcmask 1042434
    %v330 = vsel %vm329, %v328, %v328
    %vm331 = vcmask 1043459
    %v332 = vsel %vm331, %v328, %v330
    %vm333 = vcmask 1044484
    %v334 = vsel %vm333, %v328, %v332
    %vm335 = vcmask 1045509
    %v336 = vsel %vm335, %v328, %v334
    %vm337 = vcmask 1046534
    %v338 = vsel %vm337, %v328, %v336
    %vm339 = vcmask 1047559
    %v340 = vsel %vm339, %v328, %v338
    %v342 = vadd.f32 %v168, %v340
    %v343 = vadd.f32 %v170, %v340
    %v344 = vadd.f32 %v172, %v340
    %v345 = vadd.f32 %v174, %v340
    %v346 = vmul.f32 %v243, 2.0
    %v347 = vmul.f32 %v245, 2.0
    %v348 = vmul.f32 %v248, 2.0
    %v349 = vmul.f32 %v250, 2.0
    %v350 = vsub.f32 %v342, %v346
    %v351 = vsub.f32 %v343, %v347
    %v352 = vsub.f32 %v344, %v348
    %v353 = vsub.f32 %v345, %v349
    %vm354 = vcmp.lt.s32.totalorder %v147, 32
    %v355 = vsel %vm354, %v350, 1e+30
    %v356 = vsel %vm354, %v351, 1e+30
    %v357 = vsel %vm354, %v352, 1e+30
    %v358 = vsel %vm354, %v353, 1e+30
    %359 = vmin.xlane.f32.xlu0 %v355
    %v360 = vpop.xlane.xlu0 %359
    %361 = vmin.xlane.f32.xlu0 %v356
    %v362 = vpop.xlane.xlu0 %361
    %363 = vmin.xlane.f32.xlu0 %v357
    %v364 = vpop.xlane.xlu0 %363
    %365 = vmin.xlane.f32.xlu0 %v358
    %v366 = vpop.xlane.xlu0 %365
    %vm367 = vcmp.le.f32.partialorder %v355, %v360
    %vm368 = vcmp.le.f32.partialorder %v356, %v362
    %vm369 = vcmp.le.f32.partialorder %v357, %v364
    %vm370 = vcmp.le.f32.partialorder %v358, %v366
    %v371 = vsel %vm367, %v147, 128
    %v372 = vsel %vm368, %v147, 128
    %v373 = vsel %vm369, %v147, 128
    %v374 = vsel %vm370, %v147, 128
    %v375 = vand.u32 %v371, 65535
    %v376 = vshra.s32 %v371, 16
    %v377 = vcvt.s32.f32 %v375
    %v378 = vcvt.s32.f32 %v376
    %379 = vmin.xlane.f32.xlu0 %v378
    %v380 = vpop.xlane.xlu0 %379
    %vm381 = vcmp.eq.f32.partialorder %v378, %v380
    %v382 = vsel %vm381, %v377, inf
    %383 = vmin.xlane.f32.xlu0 %v382
    %v384 = vpop.xlane.xlu0 %383
    %v385 = vcvt.f32.s32 %v384
    %v386 = vcvt.f32.s32 %v380
    %v387 = vshll.u32 %v386, 16
    %v388 = vadd.s32 %v387, %v385
    %v389 = vand.u32 %v372, 65535
    %v390 = vshra.s32 %v372, 16
    %v391 = vcvt.s32.f32 %v389
    %v392 = vcvt.s32.f32 %v390
    %393 = vmin.xlane.f32.xlu0 %v392
    %v394 = vpop.xlane.xlu0 %393
    %vm395 = vcmp.eq.f32.partialorder %v392, %v394
    %v396 = vsel %vm395, %v391, inf
    %397 = vmin.xlane.f32.xlu0 %v396
    %v398 = vpop.xlane.xlu0 %397
    %v399 = vcvt.f32.s32 %v398
    %v400 = vcvt.f32.s32 %v394
    %v401 = vshll.u32 %v400, 16
    %v402 = vadd.s32 %v401, %v399
    %v403 = vand.u32 %v373, 65535
    %v404 = vshra.s32 %v373, 16
    %v405 = vcvt.s32.f32 %v403
    %v406 = vcvt.s32.f32 %v404
    %407 = vmin.xlane.f32.xlu0 %v406
    %v408 = vpop.xlane.xlu0 %407
    %vm409 = vcmp.eq.f32.partialorder %v406, %v408
    %v410 = vsel %vm409, %v405, inf
    %411 = vmin.xlane.f32.xlu0 %v410
    %v412 = vpop.xlane.xlu0 %411
    %v413 = vcvt.f32.s32 %v412
    %v414 = vcvt.f32.s32 %v408
    %v415 = vshll.u32 %v414, 16
    %v416 = vadd.s32 %v415, %v413
    %v417 = vand.u32 %v374, 65535
    %v418 = vshra.s32 %v374, 16
    %v419 = vcvt.s32.f32 %v417
    %v420 = vcvt.s32.f32 %v418
    %421 = vmin.xlane.f32.xlu0 %v420
    %v422 = vpop.xlane.xlu0 %421
    %vm423 = vcmp.eq.f32.partialorder %v420, %v422
    %v424 = vsel %vm423, %v419, inf
    %425 = vmin.xlane.f32.xlu0 %v424
    %v426 = vpop.xlane.xlu0 %425
    %v427 = vcvt.f32.s32 %v426
    %v428 = vcvt.f32.s32 %v422
    %v429 = vshll.u32 %v428, 16
    %v430 = vadd.s32 %v429, %v427
    %vm431 = vcmp.eq.s32.totalorder %v147, %v388
    %vm432 = vcmp.eq.s32.totalorder %v147, %v402
    %vm433 = vcmp.eq.s32.totalorder %v147, %v416
    %vm434 = vcmp.eq.s32.totalorder %v147, %v430
    %v435 = vsel %vm159, 1, 0
    %v436 = vsel %vm160, 1, 0
    %v437 = vsel %vm161, 1, 0
    %v438 = vsel %vm162, 1, 0
    %vm439 = vcmp.eq.s32.totalorder %v435, 1
    %vm440 = vcmp.eq.s32.totalorder %v436, 1
    %vm441 = vcmp.eq.s32.totalorder %v437, 1
    %vm442 = vcmp.eq.s32.totalorder %v438, 1
    %vm443 = vmand %vm431, %vm439
    %vm444 = vmand %vm432, %vm440
    %vm445 = vmand %vm433, %vm441
    %vm446 = vmand %vm434, %vm442
    %v447 = vsel %vm443, 1.0, 0.0
    %v448 = vsel %vm444, 1.0, 0.0
    %v449 = vsel %vm445, 1.0, 0.0
    %v450 = vsel %vm446, 1.0, 0.0
    %451 = vmatpush.msra.mxu0 %v145
    %452 = vmatpush.msra.mxu0 %v144
    %453 = vmatpush.msra.mxu0 %v143
    %454 = vmatpush.msra.mxu0 %v142
    %455 = vmatpush.msra.mxu0 %v141
    %456 = vmatpush.msra.mxu0 %v140
    %457 = vmatpush.msra.mxu0 %v139
    %458 = vmatpush.msra.mxu0 %v138
    %459 = vmatpush.msra.mxu0 %v137
    %460 = vmatpush.msra.mxu0 %v136
    %461 = vmatpush.msra.mxu0 %v135
    %462 = vmatpush.msra.mxu0 %v134
    %463 = vmatpush.msra.mxu0 %v133
    %464 = vmatpush.msra.mxu0 %v132
    %465 = vmatpush.msra.mxu0 %v131
    %466 = vmatpush.msra.mxu0 %v130
    %467 = vmatmul.f32.gmra.mxu0 %v447
    %v468 = vpop.f32.mrf.mxu0
    %v469 = vadd.f32 0.0, %v468
    %470 = vmatmul.f32.gmra.mxu0 %v448
    %v471 = vpop.f32.mrf.mxu0
    %v472 = vadd.f32 0.0, %v471
    %473 = vmatmul.f32.gmra.mxu0 %v449
    %v474 = vpop.f32.mrf.mxu0
    %v475 = vadd.f32 0.0, %v474
    %476 = vmatmul.f32.gmra.mxu0 %v450
    %v477 = vpop.f32.mrf.mxu0
    %v478 = vadd.f32 0.0, %v477
    %479 = vdwg.mxu0
    %480 = vst [vmem:[%s4] sm:$0xff] %v469
    %481 = vst [vmem:[%s4 + $0x8] sm:$0xff] %v472
    %482 = vst [vmem:[%s4 + $0x10] sm:$0xff] %v475
    %483 = vst [vmem:[%s4 + $0x18] sm:$0xff] %v478
    %v484 = vsub.f32 %v469, %v121
    %v485 = vsub.f32 %v472, %v123
    %v486 = vsub.f32 %v475, %v126
    %v487 = vsub.f32 %v478, %v128
    %v488 = vsel %vm439, %v484, 0.0
    %v489 = vsel %vm440, %v485, 0.0
    %v490 = vsel %vm441, %v486, 0.0
    %v491 = vsel %vm442, %v487, 0.0
    %v492 = vld [vmem:[#allocation2] sm:$0x1]
    %v493 = vmul.f32 %v488, %v488
    %v494 = vmul.f32 %v489, %v489
    %v495 = vmul.f32 %v490, %v490
    %v496 = vmul.f32 %v491, %v491
    %v497 = vadd.f32 %v493, %v494
    %v498 = vadd.f32 %v497, %v495
    %v499 = vadd.f32 %v498, %v496
    %500 = vadd.xlane.f32.xlu0 %v499
    %v501 = vpop.xlane.xlu0 %500
    %v502 = vrot.slane %v501, 4
    %v503 = vadd.f32 %v501, %v502
    %v504 = vrot.slane %v503, 2
    %v505 = vadd.f32 %v503, %v504
    %v506 = vrot.slane %v505, 1
    %v507 = vadd.f32 %v505, %v506
    %s508 = vtos %v507
    %v509 = vstv %s508
    %v510 = vadd.f32 %v492, %v509
    %vm511 = vcmask 0
    %512 = vst.msk [vmem:[#allocation2] sm:$0x1] %vm511, %v510
    %v513 = vld [vmem:[#allocation3] sm:$0x1]
    %v514 = vadd.f32 %v447, %v448
    %v515 = vadd.f32 %v514, %v449
    %v516 = vadd.f32 %v515, %v450
    %v517 = vrot.slane %v516, 4
    %v518 = vadd.f32 %v516, %v517
    %v519 = vrot.slane %v518, 2
    %v520 = vadd.f32 %v518, %v519
    %v521 = vrot.slane %v520, 1
    %v522 = vadd.f32 %v520, %v521
    %v523 = vadd.f32 %v513, %v522
    %524 = vst [vmem:[#allocation3] sm:$0x1] %v523
    // Predicated region
    $region22: #{bio_vae_forward.13} parent=1 // pred_check
      %p525 = pneg %p22
    $region23: #{bio_vae_forward.13} parent=1 // pred_check_branch
      %527 = sbr.rel (%p525) target = $region25
    $region24: #{bio_vae_forward.13} parent=1 // pred_region
      %v528 = vld [vmem:[#allocation2] sm:$0x1]
      %v529 = vrcp.pop 512.0
      %v530 = vmul.f32 512.0, %v529
      %v531 = vsub.f32 1.0, %v530
      %v532 = vmul.f32 %v529, %v531
      %v533 = vadd.f32 %v529, %v532
      %vm534 = vweird.f32 %v529
      %v535 = vsel %vm534, %v529, %v533
      %v536 = vmul.f32 %v528, %v535
      %v537 = vmul.f32 %v536, 1.25
      %538 = vst.msk [vmem:[#allocation4] sm:$0x1] %vm511, %v537
      %v539 = vld [vmem:[#allocation3] sm:$0x1]
      %v540 = vrcp.pop 32.0
      %v541 = vmul.f32 32.0, %v540
      %v542 = vsub.f32 1.0, %v541
      %v543 = vmul.f32 %v540, %v542
      %v544 = vadd.f32 %v540, %v543
      %vm545 = vweird.f32 %v540
      %v546 = vsel %vm545, %v540, %v544
      %v547 = vmul.f32 %v539, %v546
      %v548 = vadd.f32 %v547, 1e-10
      %v549 = vlog2.pop %v548
      %v550 = vmul.f32 %v549, 0.6931472
      %v551 = vmul.f32 %v547, %v550
      %vm552 = vcmask 1040384
      %v553 = vsel %vm552, %v551, 0.0
      %554 = vadd.xlane.f32.xlu0 %v553
      %v555 = vpop.xlane.xlu0 %554
      %v556 = vsub.f32 0.0, %v555
      %v557 = vmul.f32 %v556, 1.442695
      %v558 = vpow.pop %v557
      %559 = vst.msk [vmem:[#allocation6] sm:$0x1] %vm511, %v558
    $region25: #{bio_vae_forward.13} parent=1 // pred_fallthru
      _
    // Predicated region
    $region26: #{bio_vae_forward.13} parent=1 // pred_check
      _
    $region27: #{bio_vae_forward.13} parent=1 // pred_check_branch
      %561 = sbr.rel (0) target = $region29
    $region28: #{bio_vae_forward.13} parent=1 // pred_region
      _
    $region29: #{bio_vae_forward.13} parent=1 // pred_fallthru
      _
    // Predicated region
    $region30: #{bio_vae_forward.13} parent=1 // pred_check
      _
    $region31: #{bio_vae_forward.13} parent=1 // pred_check_branch
      %563 = sbr.rel (0) target = $region33
    $region32: #{bio_vae_forward.13} parent=1 // pred_region
      %565 = vsyncadd [#allocation5], 0
      %s567 = sshll.u32 [#allocation4], 4
      %s568 = int_to_ptr.vmem [resolvable:$true] %s567
      %s569 = sshll.u32 %s5, 4
      %s570 = int_to_ptr.hbm [resolvable:$true] %s569
      %572 = dma.vmem_to_hbm [thread:$0]  %s568, 16, %s570, [#allocation5]
    $region33: #{bio_vae_forward.13} parent=1 // pred_fallthru
      _
    // Predicated region
    $region34: #{bio_vae_forward.13} parent=1 // pred_check
      _
    $region35: #{bio_vae_forward.13} parent=1 // pred_check_branch
      %574 = sbr.rel (0) target = $region37
    $region36: #{bio_vae_forward.13} parent=1 // pred_region
      %576 = vsyncadd [#allocation7], 0
      %s578 = sshll.u32 [#allocation6], 4
      %s579 = int_to_ptr.vmem [resolvable:$true] %s578
      %s580 = sshll.u32 %s6, 4
      %s581 = int_to_ptr.hbm [resolvable:$true] %s580
      %583 = dma.vmem_to_hbm [thread:$0]  %s579, 16, %s581, [#allocation7]
    $region37: #{bio_vae_forward.13} parent=1 // pred_fallthru
      _
    // Predicated region
    $region38: #{bio_vae_forward.13} parent=1 // pred_check
      _
    $region39: #{bio_vae_forward.13} parent=1 // pred_check_branch
      %585 = sbr.rel (0) target = $region41
    $region40: #{bio_vae_forward.13} parent=1 // pred_region
      _
    $region41: #{bio_vae_forward.13} parent=1 // pred_fallthru
      _
    // Predicated region
    $region42: #{bio_vae_forward.13} parent=1 // pred_check
      _
    $region43: #{bio_vae_forward.13} parent=1 // pred_check_branch
      %587 = sbr.rel (0) target = $region45
    $region44: #{bio_vae_forward.13} parent=1 // pred_region
      %589 = dma.done [#allocation5], 16
    $region45: #{bio_vae_forward.13} parent=1 // pred_fallthru
      _
    // Predicated region
    $region46: #{bio_vae_forward.13} parent=1 // pred_check
      _
    $region47: #{bio_vae_forward.13} parent=1 // pred_check_branch
      %591 = sbr.rel (0) target = $region49
    $region48: #{bio_vae_forward.13} parent=1 // pred_region
      %593 = dma.done [#allocation7], 16
    $region49: #{bio_vae_forward.13} parent=1 // pred_fallthru
      _
    %594 = vsyncpa [#allocation5], 1
    %595 = vsyncpa [#allocation7], 1

// kernel: bio_vae_forward.16
$region0: #{bio_vae_forward.16}
  #allocation0 [shape = 'u32[]', space=smem, size = 0x4, offset = 0x4, fixed_abs, tag = 'smem constant byte address 0x4 - core index']
  #allocation1 [shape = 'u32[72,128]{1,0:T(1,128)}', space=vmem, size = 0x9000, scoped, tag = 'internal scratch']
  %s0 = inlined_call_operand.vmem [shape: bf16[32,384], index: 0, kind: input, shape index: {}]
  %s1 = inlined_call_operand.vmem [shape: bf16[384,512], index: 1, kind: input, shape index: {}]
  %s2 = inlined_call_operand.vmem [shape: f32[1,512], index: 2, kind: input, shape index: {}]
  %s3 = inlined_call_operand.vmem [shape: bf16[32,512], index: 3, kind: output, shape index: {}]
  %s4 = sld [smem:[#allocation0]]
  $region22: #{bio_vae_forward.16} parent=0
    _
  %s6 = ssub.s32 1, %s4
  %s7 = scalar_select 0, %s6, %s4
  // Predicated region
  $region2: #{bio_vae_forward.16} parent=0 // pred_check
    _
  $region3: #{bio_vae_forward.16} parent=0 // pred_check_branch
    %9 = sbr.rel (0) target = $region5
  $region4: #{bio_vae_forward.16} parent=0 // pred_region
    _
  $region5: #{bio_vae_forward.16} parent=0 // pred_fallthru
    _
  // Predicated region
  $region6: #{bio_vae_forward.16} parent=0 // pred_check
    _
  $region7: #{bio_vae_forward.16} parent=0 // pred_check_branch
    %11 = sbr.rel (0) target = $region9
  $region8: #{bio_vae_forward.16} parent=0 // pred_region
    _
  $region9: #{bio_vae_forward.16} parent=0 // pred_fallthru
    _
  // Predicated region
  $region10: #{bio_vae_forward.16} parent=0 // pred_check
    _
  $region11: #{bio_vae_forward.16} parent=0 // pred_check_branch
    %13 = sbr.rel (0) target = $region13
  $region12: #{bio_vae_forward.16} parent=0 // pred_region
    _
  $region13: #{bio_vae_forward.16} parent=0 // pred_fallthru
    _
  %v14 = vld [vmem:[%s0] sm:$0xff]
  %v15 = vld [vmem:[%s0 + $0x8] sm:$0xf]
  %v16 = vld [vmem:[%s0 + $0xc] sm:$0xff]
  %v17 = vld [vmem:[%s0 + $0x14] sm:$0xf]
  %v18 = vld [vmem:[%s0 + $0x18] sm:$0xff]
  %v19 = vld [vmem:[%s0 + $0x20] sm:$0xf]
  %v20 = vld [vmem:[%s0 + $0x24] sm:$0xff]
  %v21 = vld [vmem:[%s0 + $0x2c] sm:$0xf]
  %v22 = vunpack.c.l.bf16 %v14
  %v23 = vunpack.c.h.bf16 %v14
  %v24 = vunpack.c.l.bf16 %v15
  %v25 = vunpack.c.l.bf16 %v16
  %v26 = vunpack.c.h.bf16 %v16
  %v27 = vunpack.c.l.bf16 %v17
  %v28 = vunpack.c.l.bf16 %v18
  %v29 = vunpack.c.h.bf16 %v18
  %v30 = vunpack.c.l.bf16 %v19
  %v31 = vunpack.c.l.bf16 %v20
  %v32 = vunpack.c.h.bf16 %v20
  %v33 = vunpack.c.l.bf16 %v21
  %v34 = vmax.f32 %v22, 0.0
  %v35 = vmax.f32 %v23, 0.0
  %v36 = vmax.f32 %v24, 0.0
  %v37 = vmax.f32 %v25, 0.0
  %v38 = vmax.f32 %v26, 0.0
  %v39 = vmax.f32 %v27, 0.0
  %v40 = vmax.f32 %v28, 0.0
  %v41 = vmax.f32 %v29, 0.0
  %v42 = vmax.f32 %v30, 0.0
  %v43 = vmax.f32 %v31, 0.0
  %v44 = vmax.f32 %v32, 0.0
  %v45 = vmax.f32 %v33, 0.0
  %v46 = vpack.c.bf16 %v37, %v34
  %v47 = vpack.c.bf16 %v38, %v35
  %v48 = vpack.c.bf16 %v39, %v36
  %v49 = vpack.c.bf16 %v43, %v40
  %v50 = vpack.c.bf16 %v44, %v41
  %v51 = vpack.c.bf16 %v45, %v42
  %v52 = vld [vmem:[%s1] sm:$0xff]
  %v53 = vld [vmem:[%s1 + $0x8] sm:$0xff]
  %v54 = vld [vmem:[%s1 + $0x10] sm:$0xff]
  %v55 = vld [vmem:[%s1 + $0x18] sm:$0xff]
  %v56 = vld [vmem:[%s1 + $0x20] sm:$0xff]
  %v57 = vld [vmem:[%s1 + $0x28] sm:$0xff]
  %v58 = vld [vmem:[%s1 + $0x30] sm:$0xff]
  %v59 = vld [vmem:[%s1 + $0x38] sm:$0xff]
  %v60 = vld [vmem:[%s1 + $0x40] sm:$0xff]
  %v61 = vld [vmem:[%s1 + $0x48] sm:$0xff]
  %v62 = vld [vmem:[%s1 + $0x50] sm:$0xff]
  %v63 = vld [vmem:[%s1 + $0x58] sm:$0xff]
  %v64 = vld [vmem:[%s1 + $0x60] sm:$0xff]
  %v65 = vld [vmem:[%s1 + $0x68] sm:$0xff]
  %v66 = vld [vmem:[%s1 + $0x70] sm:$0xff]
  %v67 = vld [vmem:[%s1 + $0x78] sm:$0xff]
  %v68 = vld [vmem:[%s1 + $0x80] sm:$0xff]
  %v69 = vld [vmem:[%s1 + $0x88] sm:$0xff]
  %v70 = vld [vmem:[%s1 + $0x90] sm:$0xff]
  %v71 = vld [vmem:[%s1 + $0x98] sm:$0xff]
  %v72 = vld [vmem:[%s1 + $0xa0] sm:$0xff]
  %v73 = vld [vmem:[%s1 + $0xa8] sm:$0xff]
  %v74 = vld [vmem:[%s1 + $0xb0] sm:$0xff]
  %v75 = vld [vmem:[%s1 + $0xb8] sm:$0xff]
  %v76 = vld [vmem:[%s1 + $0xc0] sm:$0xff]
  %v77 = vld [vmem:[%s1 + $0xc8] sm:$0xff]
  %v78 = vld [vmem:[%s1 + $0xd0] sm:$0xff]
  %v79 = vld [vmem:[%s1 + $0xd8] sm:$0xff]
  %v80 = vld [vmem:[%s1 + $0xe0] sm:$0xff]
  %v81 = vld [vmem:[%s1 + $0xe8] sm:$0xff]
  %v82 = vld [vmem:[%s1 + $0xf0] sm:$0xff]
  %v83 = vld [vmem:[%s1 + $0xf8] sm:$0xff]
  %v84 = vld [vmem:[%s1 + $0x100] sm:$0xff]
  %v85 = vld [vmem:[%s1 + $0x108] sm:$0xff]
  %v86 = vld [vmem:[%s1 + $0x110] sm:$0xff]
  %v87 = vld [vmem:[%s1 + $0x118] sm:$0xff]
  %v88 = vld [vmem:[%s1 + $0x120] sm:$0xff]
  %v89 = vld [vmem:[%s1 + $0x128] sm:$0xff]
  %v90 = vld [vmem:[%s1 + $0x130] sm:$0xff]
  %v91 = vld [vmem:[%s1 + $0x138] sm:$0xff]
  %v92 = vld [vmem:[%s1 + $0x140] sm:$0xff]
  %v93 = vld [vmem:[%s1 + $0x148] sm:$0xff]
  %v94 = vld [vmem:[%s1 + $0x150] sm:$0xff]
  %v95 = vld [vmem:[%s1 + $0x158] sm:$0xff]
  %v96 = vld [vmem:[%s1 + $0x160] sm:$0xff]
  %v97 = vld [vmem:[%s1 + $0x168] sm:$0xff]
  %v98 = vld [vmem:[%s1 + $0x170] sm:$0xff]
  %v99 = vld [vmem:[%s1 + $0x178] sm:$0xff]
  %v100 = vld [vmem:[%s1 + $0x180] sm:$0xff]
  %v101 = vld [vmem:[%s1 + $0x188] sm:$0xff]
  %v102 = vld [vmem:[%s1 + $0x190] sm:$0xff]
  %v103 = vld [vmem:[%s1 + $0x198] sm:$0xff]
  %v104 = vld [vmem:[%s1 + $0x1a0] sm:$0xff]
  %v105 = vld [vmem:[%s1 + $0x1a8] sm:$0xff]
  %v106 = vld [vmem:[%s1 + $0x1b0] sm:$0xff]
  %v107 = vld [vmem:[%s1 + $0x1b8] sm:$0xff]
  %v108 = vld [vmem:[%s1 + $0x1c0] sm:$0xff]
  %v109 = vld [vmem:[%s1 + $0x1c8] sm:$0xff]
  %v110 = vld [vmem:[%s1 + $0x1d0] sm:$0xff]
  %v111 = vld [vmem:[%s1 + $0x1d8] sm:$0xff]
  %v112 = vld [vmem:[%s1 + $0x1e0] sm:$0xff]
  %v113 = vld [vmem:[%s1 + $0x1e8] sm:$0xff]
  %v114 = vld [vmem:[%s1 + $0x1f0] sm:$0xff]
  %v115 = vld [vmem:[%s1 + $0x1f8] sm:$0xff]
  %v116 = vld [vmem:[%s1 + $0x200] sm:$0xff]
  %v117 = vld [vmem:[%s1 + $0x208] sm:$0xff]
  %v118 = vld [vmem:[%s1 + $0x210] sm:$0xff]
  %v119 = vld [vmem:[%s1 + $0x218] sm:$0xff]
  %v120 = vld [vmem:[%s1 + $0x220] sm:$0xff]
  %v121 = vld [vmem:[%s1 + $0x228] sm:$0xff]
  %v122 = vld [vmem:[%s1 + $0x230] sm:$0xff]
  %v123 = vld [vmem:[%s1 + $0x238] sm:$0xff]
  %v124 = vld [vmem:[%s1 + $0x240] sm:$0xff]
  %v125 = vld [vmem:[%s1 + $0x248] sm:$0xff]
  %v126 = vld [vmem:[%s1 + $0x250] sm:$0xff]
  %v127 = vld [vmem:[%s1 + $0x258] sm:$0xff]
  %v128 = vld [vmem:[%s1 + $0x260] sm:$0xff]
  %v129 = vld [vmem:[%s1 + $0x268] sm:$0xff]
  %v130 = vld [vmem:[%s1 + $0x270] sm:$0xff]
  %v131 = vld [vmem:[%s1 + $0x278] sm:$0xff]
  %v132 = vld [vmem:[%s1 + $0x280] sm:$0xff]
  %v133 = vld [vmem:[%s1 + $0x288] sm:$0xff]
  %v134 = vld [vmem:[%s1 + $0x290] sm:$0xff]
  %v135 = vld [vmem:[%s1 + $0x298] sm:$0xff]
  %v136 = vld [vmem:[%s1 + $0x2a0] sm:$0xff]
  %v137 = vld [vmem:[%s1 + $0x2a8] sm:$0xff]
  %v138 = vld [vmem:[%s1 + $0x2b0] sm:$0xff]
  %v139 = vld [vmem:[%s1 + $0x2b8] sm:$0xff]
  %v140 = vld [vmem:[%s1 + $0x2c0] sm:$0xff]
  %v141 = vld [vmem:[%s1 + $0x2c8] sm:$0xff]
  %v142 = vld [vmem:[%s1 + $0x2d0] sm:$0xff]
  %v143 = vld [vmem:[%s1 + $0x2d8] sm:$0xff]
  %v144 = vld [vmem:[%s1 + $0x2e0] sm:$0xff]
  %v145 = vld [vmem:[%s1 + $0x2e8] sm:$0xff]
  %v146 = vld [vmem:[%s1 + $0x2f0] sm:$0xff]
  %v147 = vld [vmem:[%s1 + $0x2f8] sm:$0xff]
  %v148 = vld [vmem:[%s2] sm:$0xf]
  %v150 = vperm.slane %v148, 0
  %v151 = vperm.slane %v148, 1
  %v152 = vperm.slane %v148, 2
  %v153 = vperm.slane %v148, 3
  %v254 = vunpack.c.l.b16 %v52
  %v255 = vunpack.c.h.b16 %v52
  %v256 = vunpack.c.l.b16 %v53
  %v257 = vunpack.c.h.b16 %v53
  %v258 = vunpack.c.l.b16 %v54
  %v259 = vunpack.c.h.b16 %v54
  %v260 = vunpack.c.l.b16 %v55
  %v261 = vunpack.c.h.b16 %v55
  %v262 = vunpack.c.l.b16 %v56
  %v263 = vunpack.c.h.b16 %v56
  %v264 = vunpack.c.l.b16 %v57
  %v265 = vunpack.c.h.b16 %v57
  %v266 = vunpack.c.l.b16 %v58
  %v267 = vunpack.c.h.b16 %v58
  %v268 = vunpack.c.l.b16 %v59
  %v269 = vunpack.c.h.b16 %v59
  %v270 = vunpack.c.l.b16 %v60
  %v271 = vunpack.c.h.b16 %v60
  %v272 = vunpack.c.l.b16 %v61
  %v273 = vunpack.c.h.b16 %v61
  %v274 = vunpack.c.l.b16 %v62
  %v275 = vunpack.c.h.b16 %v62
  %v276 = vunpack.c.l.b16 %v63
  %v277 = vunpack.c.h.b16 %v63
  %v278 = vunpack.c.l.b16 %v64
  %v279 = vunpack.c.h.b16 %v64
  %v280 = vunpack.c.l.b16 %v65
  %v281 = vunpack.c.h.b16 %v65
  %v282 = vunpack.c.l.b16 %v66
  %v283 = vunpack.c.h.b16 %v66
  %v284 = vunpack.c.l.b16 %v67
  %v285 = vunpack.c.h.b16 %v67
  %v286 = vunpack.c.l.b16 %v68
  %v287 = vunpack.c.h.b16 %v68
  %v288 = vunpack.c.l.b16 %v69
  %v289 = vunpack.c.h.b16 %v69
  %v290 = vunpack.c.l.b16 %v70
  %v291 = vunpack.c.h.b16 %v70
  %v292 = vunpack.c.l.b16 %v71
  %v293 = vunpack.c.h.b16 %v71
  %v294 = vunpack.c.l.b16 %v72
  %v295 = vunpack.c.h.b16 %v72
  %v296 = vunpack.c.l.b16 %v73
  %v297 = vunpack.c.h.b16 %v73
  %v298 = vunpack.c.l.b16 %v74
  %v299 = vunpack.c.h.b16 %v74
  %v300 = vunpack.c.l.b16 %v75
  %v301 = vunpack.c.h.b16 %v75
  %v302 = vunpack.c.l.b16 %v76
  %v303 = vunpack.c.h.b16 %v76
  %v304 = vunpack.c.l.b16 %v77
  %v305 = vunpack.c.h.b16 %v77
  %v306 = vunpack.c.l.b16 %v78
  %v307 = vunpack.c.h.b16 %v78
  %v308 = vunpack.c.l.b16 %v79
  %v309 = vunpack.c.h.b16 %v79
  %v310 = vunpack.c.l.b16 %v80
  %v311 = vunpack.c.h.b16 %v80
  %v312 = vunpack.c.l.b16 %v81
  %v313 = vunpack.c.h.b16 %v81
  %v314 = vunpack.c.l.b16 %v82
  %v315 = vunpack.c.h.b16 %v82
  %v316 = vunpack.c.l.b16 %v83
  %v317 = vunpack.c.h.b16 %v83
  %v318 = vunpack.c.l.b16 %v84
  %v319 = vunpack.c.h.b16 %v84
  %v320 = vunpack.c.l.b16 %v85
  %v321 = vunpack.c.h.b16 %v85
  %v322 = vunpack.c.l.b16 %v86
  %v323 = vunpack.c.h.b16 %v86
  %v324 = vunpack.c.l.b16 %v87
  %v325 = vunpack.c.h.b16 %v87
  %v326 = vunpack.c.l.b16 %v88
  %v327 = vunpack.c.h.b16 %v88
  %v328 = vunpack.c.l.b16 %v89
  %v329 = vunpack.c.h.b16 %v89
  %v330 = vunpack.c.l.b16 %v90
  %v331 = vunpack.c.h.b16 %v90
  %v332 = vunpack.c.l.b16 %v91
  %v333 = vunpack.c.h.b16 %v91
  %v334 = vunpack.c.l.b16 %v92
  %v335 = vunpack.c.h.b16 %v92
  %v336 = vunpack.c.l.b16 %v93
  %v337 = vunpack.c.h.b16 %v93
  %v338 = vunpack.c.l.b16 %v94
  %v339 = vunpack.c.h.b16 %v94
  %v340 = vunpack.c.l.b16 %v95
  %v341 = vunpack.c.h.b16 %v95
  %v342 = vunpack.c.l.b16 %v96
  %v343 = vunpack.c.h.b16 %v96
  %v344 = vunpack.c.l.b16 %v97
  %v345 = vunpack.c.h.b16 %v97
  %v346 = vunpack.c.l.b16 %v98
  %v347 = vunpack.c.h.b16 %v98
  %v348 = vunpack.c.l.b16 %v99
  %v349 = vunpack.c.h.b16 %v99
  %v350 = vunpack.c.l.b16 %v100
  %v351 = vunpack.c.h.b16 %v100
  %v352 = vunpack.c.l.b16 %v101
  %v353 = vunpack.c.h.b16 %v101
  %v354 = vunpack.c.l.b16 %v102
  %v355 = vunpack.c.h.b16 %v102
  %v356 = vunpack.c.l.b16 %v103
  %v357 = vunpack.c.h.b16 %v103
  %v358 = vunpack.c.l.b16 %v104
  %v359 = vunpack.c.h.b16 %v104
  %v360 = vunpack.c.l.b16 %v105
  %v361 = vunpack.c.h.b16 %v105
  %v362 = vunpack.c.l.b16 %v106
  %v363 = vunpack.c.h.b16 %v106
  %v364 = vunpack.c.l.b16 %v107
  %v365 = vunpack.c.h.b16 %v107
  %v366 = vunpack.c.l.b16 %v108
  %v367 = vunpack.c.h.b16 %v108
  %v368 = vunpack.c.l.b16 %v109
  %v369 = vunpack.c.h.b16 %v109
  %v370 = vunpack.c.l.b16 %v110
  %v371 = vunpack.c.h.b16 %v110
  %v372 = vunpack.c.l.b16 %v111
  %v373 = vunpack.c.h.b16 %v111
  %v374 = vunpack.c.l.b16 %v112
  %v375 = vunpack.c.h.b16 %v112
  %v376 = vunpack.c.l.b16 %v113
  %v377 = vunpack.c.h.b16 %v113
  %v378 = vunpack.c.l.b16 %v114
  %v379 = vunpack.c.h.b16 %v114
  %v380 = vunpack.c.l.b16 %v115
  %v381 = vunpack.c.h.b16 %v115
  %v382 = vunpack.c.l.b16 %v116
  %v383 = vunpack.c.h.b16 %v116
  %v384 = vunpack.c.l.b16 %v117
  %v385 = vunpack.c.h.b16 %v117
  %v386 = vunpack.c.l.b16 %v118
  %v387 = vunpack.c.h.b16 %v118
  %v388 = vunpack.c.l.b16 %v119
  %v389 = vunpack.c.h.b16 %v119
  %v390 = vunpack.c.l.b16 %v120
  %v391 = vunpack.c.h.b16 %v120
  %v392 = vunpack.c.l.b16 %v121
  %v393 = vunpack.c.h.b16 %v121
  %v394 = vunpack.c.l.b16 %v122
  %v395 = vunpack.c.h.b16 %v122
  %v396 = vunpack.c.l.b16 %v123
  %v397 = vunpack.c.h.b16 %v123
  %v398 = vunpack.c.l.b16 %v124
  %v399 = vunpack.c.h.b16 %v124
  %v400 = vunpack.c.l.b16 %v125
  %v401 = vunpack.c.h.b16 %v125
  %v402 = vunpack.c.l.b16 %v126
  %v403 = vunpack.c.h.b16 %v126
  %v404 = vunpack.c.l.b16 %v127
  %v405 = vunpack.c.h.b16 %v127
  %v406 = vunpack.c.l.b16 %v128
  %v407 = vunpack.c.h.b16 %v128
  %v408 = vunpack.c.l.b16 %v129
  %v409 = vunpack.c.h.b16 %v129
  %v410 = vunpack.c.l.b16 %v130
  %v411 = vunpack.c.h.b16 %v130
  %v412 = vunpack.c.l.b16 %v131
  %v413 = vunpack.c.h.b16 %v131
  %v414 = vunpack.c.l.b16 %v132
  %v415 = vunpack.c.h.b16 %v132
  %v416 = vunpack.c.l.b16 %v133
  %v417 = vunpack.c.h.b16 %v133
  %v418 = vunpack.c.l.b16 %v134
  %v419 = vunpack.c.h.b16 %v134
  %v420 = vunpack.c.l.b16 %v135
  %v421 = vunpack.c.h.b16 %v135
  %v422 = vunpack.c.l.b16 %v136
  %v423 = vunpack.c.h.b16 %v136
  %v424 = vunpack.c.l.b16 %v137
  %v425 = vunpack.c.h.b16 %v137
  %v426 = vunpack.c.l.b16 %v138
  %v427 = vunpack.c.h.b16 %v138
  %v428 = vunpack.c.l.b16 %v139
  %v429 = vunpack.c.h.b16 %v139
  %v430 = vunpack.c.l.b16 %v140
  %v431 = vunpack.c.h.b16 %v140
  %v432 = vunpack.c.l.b16 %v141
  %v433 = vunpack.c.h.b16 %v141
  %v434 = vunpack.c.l.b16 %v142
  %v435 = vunpack.c.h.b16 %v142
  %v436 = vunpack.c.l.b16 %v143
  %v437 = vunpack.c.h.b16 %v143
  %v438 = vunpack.c.l.b16 %v144
  %v439 = vunpack.c.h.b16 %v144
  %v440 = vunpack.c.l.b16 %v145
  %v441 = vunpack.c.h.b16 %v145
  %v442 = vunpack.c.l.b16 %v146
  %v443 = vunpack.c.h.b16 %v146
  %v444 = vunpack.c.l.b16 %v147
  %v445 = vunpack.c.h.b16 %v147
  %v446 = vpack.c.b16 %v258, %v254
  %v447 = vpack.c.b16 %v259, %v255
  %v448 = vpack.c.b16 %v260, %v256
  %v449 = vpack.c.b16 %v261, %v257
  %v450 = vpack.c.b16 %v266, %v262
  %v451 = vpack.c.b16 %v267, %v263
  %v452 = vpack.c.b16 %v268, %v264
  %v453 = vpack.c.b16 %v269, %v265
  %v454 = vpack.c.b16 %v274, %v270
  %v455 = vpack.c.b16 %v275, %v271
  %v456 = vpack.c.b16 %v276, %v272
  %v457 = vpack.c.b16 %v277, %v273
  %v458 = vpack.c.b16 %v282, %v278
  %v459 = vpack.c.b16 %v283, %v279
  %v460 = vpack.c.b16 %v284, %v280
  %v461 = vpack.c.b16 %v285, %v281
  %v462 = vpack.c.b16 %v290, %v286
  %v463 = vpack.c.b16 %v291, %v287
  %v464 = vpack.c.b16 %v292, %v288
  %v465 = vpack.c.b16 %v293, %v289
  %v466 = vpack.c.b16 %v298, %v294
  %v467 = vpack.c.b16 %v299, %v295
  %v468 = vpack.c.b16 %v300, %v296
  %v469 = vpack.c.b16 %v301, %v297
  %v470 = vpack.c.b16 %v306, %v302
  %v471 = vpack.c.b16 %v307, %v303
  %v472 = vpack.c.b16 %v308, %v304
  %v473 = vpack.c.b16 %v309, %v305
  %v474 = vpack.c.b16 %v314, %v310
  %v475 = vpack.c.b16 %v315, %v311
  %v476 = vpack.c.b16 %v316, %v312
  %v477 = vpack.c.b16 %v317, %v313
  %v478 = vpack.c.b16 %v322, %v318
  %v479 = vpack.c.b16 %v323, %v319
  %v480 = vpack.c.b16 %v324, %v320
  %v481 = vpack.c.b16 %v325, %v321
  %v482 = vpack.c.b16 %v330, %v326
  %v483 = vpack.c.b16 %v331, %v327
  %v484 = vpack.c.b16 %v332, %v328
  %v485 = vpack.c.b16 %v333, %v329
  %v486 = vpack.c.b16 %v338, %v334
  %v487 = vpack.c.b16 %v339, %v335
  %v488 = vpack.c.b16 %v340, %v336
  %v489 = vpack.c.b16 %v341, %v337
  %v490 = vpack.c.b16 %v346, %v342
  %v491 = vpack.c.b16 %v347, %v343
  %v492 = vpack.c.b16 %v348, %v344
  %v493 = vpack.c.b16 %v349, %v345
  %v494 = vpack.c.b16 %v354, %v350
  %v495 = vpack.c.b16 %v355, %v351
  %v496 = vpack.c.b16 %v356, %v352
  %v497 = vpack.c.b16 %v357, %v353
  %v498 = vpack.c.b16 %v362, %v358
  %v499 = vpack.c.b16 %v363, %v359
  %v500 = vpack.c.b16 %v364, %v360
  %v501 = vpack.c.b16 %v365, %v361
  %v502 = vpack.c.b16 %v370, %v366
  %v503 = vpack.c.b16 %v371, %v367
  %v504 = vpack.c.b16 %v372, %v368
  %v505 = vpack.c.b16 %v373, %v369
  %v506 = vpack.c.b16 %v378, %v374
  %v507 = vpack.c.b16 %v379, %v375
  %v508 = vpack.c.b16 %v380, %v376
  %v509 = vpack.c.b16 %v381, %v377
  %v510 = vpack.c.b16 %v386, %v382
  %v511 = vpack.c.b16 %v387, %v383
  %v512 = vpack.c.b16 %v388, %v384
  %v513 = vpack.c.b16 %v389, %v385
  %v514 = vpack.c.b16 %v394, %v390
  %v515 = vpack.c.b16 %v395, %v391
  %v516 = vpack.c.b16 %v396, %v392
  %v517 = vpack.c.b16 %v397, %v393
  %v518 = vpack.c.b16 %v402, %v398
  %v519 = vpack.c.b16 %v403, %v399
  %v520 = vpack.c.b16 %v404, %v400
  %v521 = vpack.c.b16 %v405, %v401
  %v522 = vpack.c.b16 %v410, %v406
  %v523 = vpack.c.b16 %v411, %v407
  %v524 = vpack.c.b16 %v412, %v408
  %v525 = vpack.c.b16 %v413, %v409
  %v526 = vpack.c.b16 %v418, %v414
  %v527 = vpack.c.b16 %v419, %v415
  %v528 = vpack.c.b16 %v420, %v416
  %v529 = vpack.c.b16 %v421, %v417
  %v530 = vpack.c.b16 %v426, %v422
  %v531 = vpack.c.b16 %v427, %v423
  %v532 = vpack.c.b16 %v428, %v424
  %v533 = vpack.c.b16 %v429, %v425
  %v534 = vpack.c.b16 %v434, %v430
  %v535 = vpack.c.b16 %v435, %v431
  %v536 = vpack.c.b16 %v436, %v432
  %v537 = vpack.c.b16 %v437, %v433
  %v538 = vpack.c.b16 %v442, %v438
  %v539 = vpack.c.b16 %v443, %v439
  %v540 = vpack.c.b16 %v444, %v440
  %v541 = vpack.c.b16 %v445, %v441
  %638 = vmatpush.bf16.msra.mxu0 %v474
  %639 = vmatpush.bf16.msra.mxu0 %v470
  %640 = vmatpush.bf16.msra.mxu0 %v466
  %641 = vmatpush.bf16.msra.mxu0 %v462
  %642 = vmatpush.bf16.msra.mxu0 %v458
  %643 = vmatpush.bf16.msra.mxu0 %v454
  %644 = vmatpush.bf16.msra.mxu0 %v450
  %645 = vmatpush.bf16.msra.mxu0 %v446
  %646 = vmatmul.bf16.gmra.mxu0 %v46
  %v647 = vpop.f32.mrf.mxu0
  %v648 = vadd.f32 %v150, %v647
  %v649 = vpop.f32.mrf.mxu0
  %v650 = vadd.f32 %v150, %v649
  %651 = vmatmul.bf16.gmra.mxu0 %v49
  %v652 = vpop.f32.mrf.mxu0
  %v653 = vadd.f32 %v150, %v652
  %v654 = vpop.f32.mrf.mxu0
  %v655 = vadd.f32 %v150, %v654
  %656 = vdwg.mxu0
  %657 = vmatpush.bf16.msra.mxu0 %v506
  %658 = vmatpush.bf16.msra.mxu0 %v502
  %659 = vmatpush.bf16.msra.mxu0 %v498
  %660 = vmatpush.bf16.msra.mxu0 %v494
  %661 = vmatpush.bf16.msra.mxu0 %v490
  %662 = vmatpush.bf16.msra.mxu0 %v486
  %663 = vmatpush.bf16.msra.mxu0 %v482
  %664 = vmatpush.bf16.msra.mxu0 %v478
  %665 = vmatmul.bf16.gmra.mxu0 %v47
  %v666 = vpop.f32.mrf.mxu0
  %v667 = vadd.f32 %v648, %v666
  %v668 = vpop.f32.mrf.mxu0
  %v669 = vadd.f32 %v650, %v668
  %670 = vmatmul.bf16.gmra.mxu0 %v50
  %v671 = vpop.f32.mrf.mxu0
  %v672 = vadd.f32 %v653, %v671
  %v673 = vpop.f32.mrf.mxu0
  %v674 = vadd.f32 %v655, %v673
  %675 = vdwg.mxu0
  %676 = vmatpush.bf16.msra.mxu0 %v538
  %677 = vmatpush.bf16.msra.mxu0 %v534
  %678 = vmatpush.bf16.msra.mxu0 %v530
  %679 = vmatpush.bf16.msra.mxu0 %v526
  %680 = vmatpush.bf16.msra.mxu0 %v522
  %681 = vmatpush.bf16.msra.mxu0 %v518
  %682 = vmatpush.bf16.msra.mxu0 %v514
  %683 = vmatpush.bf16.msra.mxu0 %v510
  %684 = vmatmul.bf16.gmra.mxu0 %v48
  %v685 = vpop.f32.mrf.mxu0
  %v686 = vadd.f32 %v667, %v685
  %v687 = vpop.f32.mrf.mxu0
  %v688 = vadd.f32 %v669, %v687
  %689 = vmatmul.bf16.gmra.mxu0 %v51
  %v690 = vpop.f32.mrf.mxu0
  %v691 = vadd.f32 %v672, %v690
  %v692 = vpop.f32.mrf.mxu0
  %v693 = vadd.f32 %v674, %v692
  %694 = vdwg.mxu0
  %695 = vmatpush.bf16.msra.mxu0 %v475
  %696 = vmatpush.bf16.msra.mxu0 %v471
  %697 = vmatpush.bf16.msra.mxu0 %v467
  %698 = vmatpush.bf16.msra.mxu0 %v463
  %699 = vmatpush.bf16.msra.mxu0 %v459
  %700 = vmatpush.bf16.msra.mxu0 %v455
  %701 = vmatpush.bf16.msra.mxu0 %v451
  %702 = vmatpush.bf16.msra.mxu0 %v447
  %703 = vmatmul.bf16.gmra.mxu0 %v46
  %v704 = vpop.f32.mrf.mxu0
  %v705 = vadd.f32 %v151, %v704
  %v706 = vpop.f32.mrf.mxu0
  %v707 = vadd.f32 %v151, %v706
  %708 = vmatmul.bf16.gmra.mxu0 %v49
  %v709 = vpop.f32.mrf.mxu0
  %v710 = vadd.f32 %v151, %v709
  %v711 = vpop.f32.mrf.mxu0
  %v712 = vadd.f32 %v151, %v711
  %713 = vdwg.mxu0
  %714 = vmatpush.bf16.msra.mxu0 %v507
  %715 = vmatpush.bf16.msra.mxu0 %v503
  %716 = vmatpush.bf16.msra.mxu0 %v499
  %717 = vmatpush.bf16.msra.mxu0 %v495
  %718 = vmatpush.bf16.msra.mxu0 %v491
  %719 = vmatpush.bf16.msra.mxu0 %v487
  %720 = vmatpush.bf16.msra.mxu0 %v483
  %721 = vmatpush.bf16.msra.mxu0 %v479
  %722 = vmatmul.bf16.gmra.mxu0 %v47
  %v723 = vpop.f32.mrf.mxu0
  %v724 = vadd.f32 %v705, %v723
  %v725 = vpop.f32.mrf.mxu0
  %v726 = vadd.f32 %v707, %v725
  %727 = vmatmul.bf16.gmra.mxu0 %v50
  %v728 = vpop.f32.mrf.mxu0
  %v729 = vadd.f32 %v710, %v728
  %v730 = vpop.f32.mrf.mxu0
  %v731 = vadd.f32 %v712, %v730
  %732 = vdwg.mxu0
  %733 = vmatpush.bf16.msra.mxu0 %v539
  %734 = vmatpush.bf16.msra.mxu0 %v535
  %735 = vmatpush.bf16.msra.mxu0 %v531
  %736 = vmatpush.bf16.msra.mxu0 %v527
  %737 = vmatpush.bf16.msra.mxu0 %v523
  %738 = vmatpush.bf16.msra.mxu0 %v519
  %739 = vmatpush.bf16.msra.mxu0 %v515
  %740 = vmatpush.bf16.msra.mxu0 %v511
  %741 = vmatmul.bf16.gmra.mxu0 %v48
  %v742 = vpop.f32.mrf.mxu0
  %v743 = vadd.f32 %v724, %v742
  %v744 = vpop.f32.mrf.mxu0
  %v745 = vadd.f32 %v726, %v744
  %746 = vmatmul.bf16.gmra.mxu0 %v51
  %v747 = vpop.f32.mrf.mxu0
  %v748 = vadd.f32 %v729, %v747
  %v749 = vpop.f32.mrf.mxu0
  %v750 = vadd.f32 %v731, %v749
  %751 = vdwg.mxu0
  %752 = vmatpush.bf16.msra.mxu0 %v476
  %753 = vmatpush.bf16.msra.mxu0 %v472
  %754 = vmatpush.bf16.msra.mxu0 %v468
  %755 = vmatpush.bf16.msra.mxu0 %v464
  %756 = vmatpush.bf16.msra.mxu0 %v460
  %757 = vmatpush.bf16.msra.mxu0 %v456
  %758 = vmatpush.bf16.msra.mxu0 %v452
  %759 = vmatpush.bf16.msra.mxu0 %v448
  %760 = vmatmul.bf16.gmra.mxu0 %v46
  %v761 = vpop.f32.mrf.mxu0
  %v762 = vadd.f32 %v152, %v761
  %v763 = vpop.f32.mrf.mxu0
  %v764 = vadd.f32 %v152, %v763
  %765 = vmatmul.bf16.gmra.mxu0 %v49
  %v766 = vpop.f32.mrf.mxu0
  %v767 = vadd.f32 %v152, %v766
  %v768 = vpop.f32.mrf.mxu0
  %v769 = vadd.f32 %v152, %v768
  %770 = vdwg.mxu0
  %771 = vmatpush.bf16.msra.mxu0 %v508
  %772 = vmatpush.bf16.msra.mxu0 %v504
  %773 = vmatpush.bf16.msra.mxu0 %v500
  %774 = vmatpush.bf16.msra.mxu0 %v496
  %775 = vmatpush.bf16.msra.mxu0 %v492
  %776 = vmatpush.bf16.msra.mxu0 %v488
  %777 = vmatpush.bf16.msra.mxu0 %v484
  %778 = vmatpush.bf16.msra.mxu0 %v480
  %779 = vmatmul.bf16.gmra.mxu0 %v47
  %v780 = vpop.f32.mrf.mxu0
  %v781 = vadd.f32 %v762, %v780
  %v782 = vpop.f32.mrf.mxu0
  %v783 = vadd.f32 %v764, %v782
  %784 = vmatmul.bf16.gmra.mxu0 %v50
  %v785 = vpop.f32.mrf.mxu0
  %v786 = vadd.f32 %v767, %v785
  %v787 = vpop.f32.mrf.mxu0
  %v788 = vadd.f32 %v769, %v787
  %789 = vdwg.mxu0
  %790 = vmatpush.bf16.msra.mxu0 %v540
  %791 = vmatpush.bf16.msra.mxu0 %v536
  %792 = vmatpush.bf16.msra.mxu0 %v532
  %793 = vmatpush.bf16.msra.mxu0 %v528
  %794 = vmatpush.bf16.msra.mxu0 %v524
  %795 = vmatpush.bf16.msra.mxu0 %v520
  %796 = vmatpush.bf16.msra.mxu0 %v516
  %797 = vmatpush.bf16.msra.mxu0 %v512
  %798 = vmatmul.bf16.gmra.mxu0 %v48
  %v799 = vpop.f32.mrf.mxu0
  %v800 = vadd.f32 %v781, %v799
  %v801 = vpop.f32.mrf.mxu0
  %v802 = vadd.f32 %v783, %v801
  %803 = vmatmul.bf16.gmra.mxu0 %v51
  %v804 = vpop.f32.mrf.mxu0
  %v805 = vadd.f32 %v786, %v804
  %v806 = vpop.f32.mrf.mxu0
  %v807 = vadd.f32 %v788, %v806
  %808 = vdwg.mxu0
  %809 = vmatpush.bf16.msra.mxu0 %v477
  %810 = vmatpush.bf16.msra.mxu0 %v473
  %811 = vmatpush.bf16.msra.mxu0 %v469
  %812 = vmatpush.bf16.msra.mxu0 %v465
  %813 = vmatpush.bf16.msra.mxu0 %v461
  %814 = vmatpush.bf16.msra.mxu0 %v457
  %815 = vmatpush.bf16.msra.mxu0 %v453
  %816 = vmatpush.bf16.msra.mxu0 %v449
  %817 = vmatmul.bf16.gmra.mxu0 %v46
  %v818 = vpop.f32.mrf.mxu0
  %v819 = vadd.f32 %v153, %v818
  %v820 = vpop.f32.mrf.mxu0
  %v821 = vadd.f32 %v153, %v820
  %822 = vmatmul.bf16.gmra.mxu0 %v49
  %v823 = vpop.f32.mrf.mxu0
  %v824 = vadd.f32 %v153, %v823
  %v825 = vpop.f32.mrf.mxu0
  %v826 = vadd.f32 %v153, %v825
  %827 = vdwg.mxu0
  %828 = vmatpush.bf16.msra.mxu0 %v509
  %829 = vmatpush.bf16.msra.mxu0 %v505
  %830 = vmatpush.bf16.msra.mxu0 %v501
  %831 = vmatpush.bf16.msra.mxu0 %v497
  %832 = vmatpush.bf16.msra.mxu0 %v493
  %833 = vmatpush.bf16.msra.mxu0 %v489
  %834 = vmatpush.bf16.msra.mxu0 %v485
  %835 = vmatpush.bf16.msra.mxu0 %v481
  %836 = vmatmul.bf16.gmra.mxu0 %v47
  %v837 = vpop.f32.mrf.mxu0
  %v838 = vadd.f32 %v819, %v837
  %v839 = vpop.f32.mrf.mxu0
  %v840 = vadd.f32 %v821, %v839
  %841 = vmatmul.bf16.gmra.mxu0 %v50
  %v842 = vpop.f32.mrf.mxu0
  %v843 = vadd.f32 %v824, %v842
  %v844 = vpop.f32.mrf.mxu0
  %v845 = vadd.f32 %v826, %v844
  %846 = vdwg.mxu0
  %847 = vmatpush.bf16.msra.mxu0 %v541
  %848 = vmatpush.bf16.msra.mxu0 %v537
  %849 = vmatpush.bf16.msra.mxu0 %v533
  %850 = vmatpush.bf16.msra.mxu0 %v529
  %851 = vmatpush.bf16.msra.mxu0 %v525
  %852 = vmatpush.bf16.msra.mxu0 %v521
  %853 = vmatpush.bf16.msra.mxu0 %v517
  %854 = vmatpush.bf16.msra.mxu0 %v513
  %855 = vmatmul.bf16.gmra.mxu0 %v48
  %v856 = vpop.f32.mrf.mxu0
  %v857 = vadd.f32 %v838, %v856
  %v858 = vpop.f32.mrf.mxu0
  %v859 = vadd.f32 %v840, %v858
  %860 = vmatmul.bf16.gmra.mxu0 %v51
  %v861 = vpop.f32.mrf.mxu0
  %v862 = vadd.f32 %v843, %v861
  %v863 = vpop.f32.mrf.mxu0
  %v864 = vadd.f32 %v845, %v863
  %865 = vdwg.mxu0
  %v866 = vmax.f32 %v686, 0.0
  %v867 = vmax.f32 %v743, 0.0
  %v868 = vmax.f32 %v800, 0.0
  %v869 = vmax.f32 %v857, 0.0
  %v870 = vmax.f32 %v688, 0.0
  %v871 = vmax.f32 %v745, 0.0
  %v872 = vmax.f32 %v802, 0.0
  %v873 = vmax.f32 %v859, 0.0
  %v874 = vmax.f32 %v691, 0.0
  %v875 = vmax.f32 %v748, 0.0
  %v876 = vmax.f32 %v805, 0.0
  %v877 = vmax.f32 %v862, 0.0
  %v878 = vmax.f32 %v693, 0.0
  %v879 = vmax.f32 %v750, 0.0
  %v880 = vmax.f32 %v807, 0.0
  %v881 = vmax.f32 %v864, 0.0
  %v882 = vpack.c.bf16 %v867, %v866
  %v883 = vpack.c.bf16 %v869, %v868
  %v884 = vpack.c.bf16 %v871, %v870
  %v885 = vpack.c.bf16 %v873, %v872
  %v886 = vpack.c.bf16 %v875, %v874
  %v887 = vpack.c.bf16 %v877, %v876
  %v888 = vpack.c.bf16 %v879, %v878
  %v889 = vpack.c.bf16 %v881, %v880
  %890 = vst [vmem:[%s3] sm:$0xff] %v882
  %891 = vst [vmem:[%s3 + $0x8] sm:$0xff] %v883
  %892 = vst [vmem:[%s3 + $0x10] sm:$0xff] %v884
  %893 = vst [vmem:[%s3 + $0x18] sm:$0xff] %v885
  %894 = vst [vmem:[%s3 + $0x20] sm:$0xff] %v886
  %895 = vst [vmem:[%s3 + $0x28] sm:$0xff] %v887
  %896 = vst [vmem:[%s3 + $0x30] sm:$0xff] %v888
  %897 = vst [vmem:[%s3 + $0x38] sm:$0xff] %v889
  // Predicated region
  $region14: #{bio_vae_forward.16} parent=0 // pred_check
    _
  $region15: #{bio_vae_forward.16} parent=0 // pred_check_branch
    %899 = sbr.rel (0) target = $region17
  $region16: #{bio_vae_forward.16} parent=0 // pred_region
    _
  $region17: #{bio_vae_forward.16} parent=0 // pred_fallthru
    _
  // Predicated region
  $region18: #{bio_vae_forward.16} parent=0 // pred_check
    _
  $region19: #{bio_vae_forward.16} parent=0 // pred_check_branch
    %901 = sbr.rel (0) target = $region21
  $region20: #{bio_vae_forward.16} parent=0 // pred_region
    _
  $region21: #{bio_vae_forward.16} parent=0 // pred_fallthru
    _

// kernel: bio_vae_forward.12
$region0: #{bio_vae_forward.12}
  #allocation0 [shape = 'u32[]', space=smem, size = 0x4, offset = 0x4, fixed_abs, tag = 'smem constant byte address 0x4 - core index']
  #allocation1 [shape = 'u32[72,128]{1,0:T(1,128)}', space=vmem, size = 0x9000, scoped, tag = 'internal scratch']
  %s0 = inlined_call_operand.vmem [shape: bf16[32,128], index: 0, kind: input, shape index: {}]
  %s1 = inlined_call_operand.vmem [shape: bf16[288,32], index: 1, kind: input, shape index: {}]
  %s2 = inlined_call_operand.vmem [shape: bf16[2304,128], index: 2, kind: input, shape index: {}]
  %s3 = inlined_call_operand.vmem [shape: bf16[256,128], index: 3, kind: input, shape index: {}]
  %s4 = inlined_call_operand.vmem [shape: bf16[32,128], index: 4, kind: output, shape index: {}]
  %s5 = sld [smem:[#allocation0]]
  $region26: #{bio_vae_forward.12} parent=0
    _
  %s7 = ssub.s32 1, %s5
  %s8 = scalar_select 0, %s7, %s5
  // Predicated region
  $region2: #{bio_vae_forward.12} parent=0 // pred_check
    _
  $region3: #{bio_vae_forward.12} parent=0 // pred_check_branch
    %10 = sbr.rel (0) target = $region5
  $region4: #{bio_vae_forward.12} parent=0 // pred_region
    _
  $region5: #{bio_vae_forward.12} parent=0 // pred_fallthru
    _
  // Predicated region
  $region6: #{bio_vae_forward.12} parent=0 // pred_check
    _
  $region7: #{bio_vae_forward.12} parent=0 // pred_check_branch
    %12 = sbr.rel (0) target = $region9
  $region8: #{bio_vae_forward.12} parent=0 // pred_region
    _
  $region9: #{bio_vae_forward.12} parent=0 // pred_fallthru
    _
  // Predicated region
  $region10: #{bio_vae_forward.12} parent=0 // pred_check
    _
  $region11: #{bio_vae_forward.12} parent=0 // pred_check_branch
    %14 = sbr.rel (0) target = $region13
  $region12: #{bio_vae_forward.12} parent=0 // pred_region
    _
  $region13: #{bio_vae_forward.12} parent=0 // pred_fallthru
    _
  // Predicated region
  $region14: #{bio_vae_forward.12} parent=0 // pred_check
    _
  $region15: #{bio_vae_forward.12} parent=0 // pred_check_branch
    %16 = sbr.rel (0) target = $region17
  $region16: #{bio_vae_forward.12} parent=0 // pred_region
    _
  $region17: #{bio_vae_forward.12} parent=0 // pred_fallthru
    _
  %v18 = vld [vmem:[%s0] sm:$0xf]
  %v19 = vld [vmem:[%s0 + $0x4] sm:$0xf]
  %v20 = vld [vmem:[%s0 + $0x8] sm:$0xf]
  %v21 = vld [vmem:[%s0 + $0xc] sm:$0xf]
  %v22 = vunpack.c.l.bf16 %v18
  %v23 = vunpack.c.l.bf16 %v19
  %v24 = vunpack.c.l.bf16 %v20
  %v25 = vunpack.c.l.bf16 %v21
  %v26 = vmax.f32 %v22, 0.0
  %v27 = vmax.f32 %v23, 0.0
  %v28 = vmax.f32 %v24, 0.0
  %v29 = vmax.f32 %v25, 0.0
  %v30 = vpack.c.bf16 %v27, %v26
  %v31 = vpack.c.bf16 %v29, %v28
  %v32 = vld [vmem:[%s1] sm:$0xf]
  %v33 = vld [vmem:[%s1 + $0x4] sm:$0xf]
  %v34 = vld [vmem:[%s1 + $0x8] sm:$0xf]
  %v35 = vld [vmem:[%s1 + $0xc] sm:$0xf]
  %v40 = vunpack.c.l.b16 %v32
  %v41 = vunpack.c.l.b16 %v33
  %v42 = vunpack.c.l.b16 %v34
  %v43 = vunpack.c.l.b16 %v35
  %v44 = vpack.c.b16 %v41, %v40
  %v45 = vpack.c.b16 %v43, %v42
  %vm46 = vcmask 261120
  %v48 = vsel %vm46, %v44, 0
  %v51 = vsel %vm46, %v45, 0
  %53 = vmatpush.bf16.msra.mxu0 0
  %54 = vmatpush.bf16.msra.mxu0 0
  %55 = vmatpush.bf16.msra.mxu0 0
  %56 = vmatpush.bf16.msra.mxu0 0
  %57 = vmatpush.bf16.msra.mxu0 0
  %58 = vmatpush.bf16.msra.mxu0 0
  %59 = vmatpush.bf16.msra.mxu0 %v31
  %60 = vmatpush.bf16.msra.mxu0 %v30
  %61 = vmatmul.bf16.gmra.mxu0 %v48
  %v62 = vpop.f32.mrf.mxu0
  %v63 = vadd.f32 0.0, %v62
  %v64 = vpop.f32.mrf.mxu0
  %v65 = vadd.f32 0.0, %v64
  %66 = vmatmul.bf16.gmra.mxu0 %v51
  %v67 = vpop.f32.mrf.mxu0
  %v68 = vadd.f32 0.0, %v67
  %v69 = vpop.f32.mrf.mxu0
  %v70 = vadd.f32 0.0, %v69
  %71 = vdwg.mxu0
  %v72 = vld [vmem:[%s2] sm:$0xf]
  %v73 = vld [vmem:[%s2 + $0x4] sm:$0xf]
  %v74 = vld [vmem:[%s2 + $0x8] sm:$0xf]
  %v75 = vld [vmem:[%s2 + $0xc] sm:$0xf]
  %v76 = vld [vmem:[%s2 + $0x10] sm:$0xf]
  %v77 = vld [vmem:[%s2 + $0x14] sm:$0xf]
  %v78 = vld [vmem:[%s2 + $0x18] sm:$0xf]
  %v79 = vld [vmem:[%s2 + $0x1c] sm:$0xf]
  %v80 = vld [vmem:[%s2 + $0x20] sm:$0xf]
  %v81 = vld [vmem:[%s2 + $0x24] sm:$0xf]
  %v82 = vld [vmem:[%s2 + $0x28] sm:$0xf]
  %v83 = vld [vmem:[%s2 + $0x2c] sm:$0xf]
  %v84 = vld [vmem:[%s2 + $0x30] sm:$0xf]
  %v85 = vld [vmem:[%s2 + $0x34] sm:$0xf]
  %v86 = vld [vmem:[%s2 + $0x38] sm:$0xf]
  %v87 = vld [vmem:[%s2 + $0x3c] sm:$0xf]
  %v88 = vpack.c.bf16 %v65, %v63
  %v89 = vpack.c.bf16 %v70, %v68
  %v90 = vld [vmem:[%s1 + $0x10] sm:$0xf]
  %v91 = vld [vmem:[%s1 + $0x14] sm:$0xf]
  %v92 = vld [vmem:[%s1 + $0x18] sm:$0xf]
  %v93 = vld [vmem:[%s1 + $0x1c] sm:$0xf]
  %v98 = vunpack.c.l.b16 %v90
  %v99 = vunpack.c.l.b16 %v91
  %v100 = vunpack.c.l.b16 %v92
  %v101 = vunpack.c.l.b16 %v93
  %v102 = vpack.c.b16 %v99, %v98
  %v103 = vpack.c.b16 %v101, %v100
  %v105 = vsel %vm46, %v102, 0
  %v108 = vsel %vm46, %v103, 0
  %110 = vmatpush.bf16.msra.mxu0 0
  %111 = vmatpush.bf16.msra.mxu0 0
  %112 = vmatpush.bf16.msra.mxu0 0
  %113 = vmatpush.bf16.msra.mxu0 0
  %114 = vmatpush.bf16.msra.mxu0 0
  %115 = vmatpush.bf16.msra.mxu0 0
  %116 = vmatpush.bf16.msra.mxu0 %v31
  %117 = vmatpush.bf16.msra.mxu0 %v30
  %118 = vmatmul.bf16.gmra.mxu0 %v105
  %v119 = vpop.f32.mrf.mxu0
  %v120 = vadd.f32 0.0, %v119
  %v121 = vpop.f32.mrf.mxu0
  %v122 = vadd.f32 0.0, %v121
  %123 = vmatmul.bf16.gmra.mxu0 %v108
  %v124 = vpop.f32.mrf.mxu0
  %v125 = vadd.f32 0.0, %v124
  %v126 = vpop.f32.mrf.mxu0
  %v127 = vadd.f32 0.0, %v126
  %128 = vdwg.mxu0
  %v129 = vld [vmem:[%s2 + $0x40] sm:$0xf]
  %v130 = vld [vmem:[%s2 + $0x44] sm:$0xf]
  %v131 = vld [vmem:[%s2 + $0x48] sm:$0xf]
  %v132 = vld [vmem:[%s2 + $0x4c] sm:$0xf]
  %v133 = vld [vmem:[%s2 + $0x50] sm:$0xf]
  %v134 = vld [vmem:[%s2 + $0x54] sm:$0xf]
  %v135 = vld [vmem:[%s2 + $0x58] sm:$0xf]
  %v136 = vld [vmem:[%s2 + $0x5c] sm:$0xf]
  %v137 = vld [vmem:[%s2 + $0x60] sm:$0xf]
  %v138 = vld [vmem:[%s2 + $0x64] sm:$0xf]
  %v139 = vld [vmem:[%s2 + $0x68] sm:$0xf]
  %v140 = vld [vmem:[%s2 + $0x6c] sm:$0xf]
  %v141 = vld [vmem:[%s2 + $0x70] sm:$0xf]
  %v142 = vld [vmem:[%s2 + $0x74] sm:$0xf]
  %v143 = vld [vmem:[%s2 + $0x78] sm:$0xf]
  %v144 = vld [vmem:[%s2 + $0x7c] sm:$0xf]
  %v145 = vpack.c.bf16 %v122, %v120
  %v146 = vpack.c.bf16 %v127, %v125
  %v163 = vunpack.c.l.b16 %v129
  %v164 = vunpack.c.l.b16 %v130
  %v165 = vunpack.c.l.b16 %v131
  %v166 = vunpack.c.l.b16 %v132
  %v167 = vunpack.c.l.b16 %v133
  %v168 = vunpack.c.l.b16 %v134
  %v169 = vunpack.c.l.b16 %v135
  %v170 = vunpack.c.l.b16 %v136
  %v171 = vunpack.c.l.b16 %v137
  %v172 = vunpack.c.l.b16 %v138
  %v173 = vunpack.c.l.b16 %v139
  %v174 = vunpack.c.l.b16 %v140
  %v175 = vunpack.c.l.b16 %v141
  %v176 = vunpack.c.l.b16 %v142
  %v177 = vunpack.c.l.b16 %v143
  %v178 = vunpack.c.l.b16 %v144
  %v179 = vpack.c.b16 %v164, %v163
  %v180 = vpack.c.b16 %v166, %v165
  %v181 = vpack.c.b16 %v168, %v167
  %v182 = vpack.c.b16 %v170, %v169
  %v183 = vpack.c.b16 %v172, %v171
  %v184 = vpack.c.b16 %v174, %v173
  %v185 = vpack.c.b16 %v176, %v175
  %v186 = vpack.c.b16 %v178, %v177
  %195 = vmatpush.bf16.msra.mxu0 %v186
  %196 = vmatpush.bf16.msra.mxu0 %v185
  %197 = vmatpush.bf16.msra.mxu0 %v184
  %198 = vmatpush.bf16.msra.mxu0 %v183
  %199 = vmatpush.bf16.msra.mxu0 %v182
  %200 = vmatpush.bf16.msra.mxu0 %v181
  %201 = vmatpush.bf16.msra.mxu0 %v180
  %202 = vmatpush.bf16.msra.mxu0 %v179
  %203 = vmatmul.bf16.gmra.mxu0 %v145
  %v204 = vpop.f32.mrf.mxu0
  %v205 = vadd.f32 0.0, %v204
  %v206 = vpop.f32.mrf.mxu0
  %v207 = vadd.f32 0.0, %v206
  %208 = vmatmul.bf16.gmra.mxu0 %v146
  %v209 = vpop.f32.mrf.mxu0
  %v210 = vadd.f32 0.0, %v209
  %v211 = vpop.f32.mrf.mxu0
  %v212 = vadd.f32 0.0, %v211
  %213 = vdwg.mxu0
  %v230 = vunpack.c.l.b16 %v72
  %v231 = vunpack.c.l.b16 %v73
  %v232 = vunpack.c.l.b16 %v74
  %v233 = vunpack.c.l.b16 %v75
  %v234 = vunpack.c.l.b16 %v76
  %v235 = vunpack.c.l.b16 %v77
  %v236 = vunpack.c.l.b16 %v78
  %v237 = vunpack.c.l.b16 %v79
  %v238 = vunpack.c.l.b16 %v80
  %v239 = vunpack.c.l.b16 %v81
  %v240 = vunpack.c.l.b16 %v82
  %v241 = vunpack.c.l.b16 %v83
  %v242 = vunpack.c.l.b16 %v84
  %v243 = vunpack.c.l.b16 %v85
  %v244 = vunpack.c.l.b16 %v86
  %v245 = vunpack.c.l.b16 %v87
  %v246 = vpack.c.b16 %v231, %v230
  %v247 = vpack.c.b16 %v233, %v232
  %v248 = vpack.c.b16 %v235, %v234
  %v249 = vpack.c.b16 %v237, %v236
  %v250 = vpack.c.b16 %v239, %v238
  %v251 = vpack.c.b16 %v241, %v240
  %v252 = vpack.c.b16 %v243, %v242
  %v253 = vpack.c.b16 %v245, %v244
  %262 = vmatpush.bf16.msra.mxu0 %v253
  %263 = vmatpush.bf16.msra.mxu0 %v252
  %264 = vmatpush.bf16.msra.mxu0 %v251
  %265 = vmatpush.bf16.msra.mxu0 %v250
  %266 = vmatpush.bf16.msra.mxu0 %v249
  %267 = vmatpush.bf16.msra.mxu0 %v248
  %268 = vmatpush.bf16.msra.mxu0 %v247
  %269 = vmatpush.bf16.msra.mxu0 %v246
  %270 = vmatmul.bf16.gmra.mxu0 %v88
  %v271 = vpop.f32.mrf.mxu0
  %v272 = vadd.f32 %v205, %v271
  %v273 = vpop.f32.mrf.mxu0
  %v274 = vadd.f32 %v207, %v273
  %275 = vmatmul.bf16.gmra.mxu0 %v89
  %v276 = vpop.f32.mrf.mxu0
  %v277 = vadd.f32 %v210, %v276
  %v278 = vpop.f32.mrf.mxu0
  %v279 = vadd.f32 %v212, %v278
  %280 = vdwg.mxu0
  %v281 = vld [vmem:[%s1 + $0x20] sm:$0xf]
  %v282 = vld [vmem:[%s1 + $0x24] sm:$0xf]
  %v283 = vld [vmem:[%s1 + $0x28] sm:$0xf]
  %v284 = vld [vmem:[%s1 + $0x2c] sm:$0xf]
  %v289 = vunpack.c.l.b16 %v281
  %v290 = vunpack.c.l.b16 %v282
  %v291 = vunpack.c.l.b16 %v283
  %v292 = vunpack.c.l.b16 %v284
  %v293 = vpack.c.b16 %v290, %v289
  %v294 = vpack.c.b16 %v292, %v291
  %v296 = vsel %vm46, %v293, 0
  %v299 = vsel %vm46, %v294, 0
  %301 = vmatpush.bf16.msra.mxu0 0
  %302 = vmatpush.bf16.msra.mxu0 0
  %303 = vmatpush.bf16.msra.mxu0 0
  %304 = vmatpush.bf16.msra.mxu0 0
  %305 = vmatpush.bf16.msra.mxu0 0
  %306 = vmatpush.bf16.msra.mxu0 0
  %307 = vmatpush.bf16.msra.mxu0 %v31
  %308 = vmatpush.bf16.msra.mxu0 %v30
  %309 = vmatmul.bf16.gmra.mxu0 %v296
  %v310 = vpop.f32.mrf.mxu0
  %v311 = vadd.f32 0.0, %v310
  %v312 = vpop.f32.mrf.mxu0
  %v313 = vadd.f32 0.0, %v312
  %314 = vmatmul.bf16.gmra.mxu0 %v299
  %v315 = vpop.f32.mrf.mxu0
  %v316 = vadd.f32 0.0, %v315
  %v317 = vpop.f32.mrf.mxu0
  %v318 = vadd.f32 0.0, %v317
  %319 = vdwg.mxu0
  %v320 = vld [vmem:[%s2 + $0x80] sm:$0xf]
  %v321 = vld [vmem:[%s2 + $0x84] sm:$0xf]
  %v322 = vld [vmem:[%s2 + $0x88] sm:$0xf]
  %v323 = vld [vmem:[%s2 + $0x8c] sm:$0xf]
  %v324 = vld [vmem:[%s2 + $0x90] sm:$0xf]
  %v325 = vld [vmem:[%s2 + $0x94] sm:$0xf]
  %v326 = vld [vmem:[%s2 + $0x98] sm:$0xf]
  %v327 = vld [vmem:[%s2 + $0x9c] sm:$0xf]
  %v328 = vld [vmem:[%s2 + $0xa0] sm:$0xf]
  %v329 = vld [vmem:[%s2 + $0xa4] sm:$0xf]
  %v330 = vld [vmem:[%s2 + $0xa8] sm:$0xf]
  %v331 = vld [vmem:[%s2 + $0xac] sm:$0xf]
  %v332 = vld [vmem:[%s2 + $0xb0] sm:$0xf]
  %v333 = vld [vmem:[%s2 + $0xb4] sm:$0xf]
  %v334 = vld [vmem:[%s2 + $0xb8] sm:$0xf]
  %v335 = vld [vmem:[%s2 + $0xbc] sm:$0xf]
  %v336 = vpack.c.bf16 %v313, %v311
  %v337 = vpack.c.bf16 %v318, %v316
  %v354 = vunpack.c.l.b16 %v320
  %v355 = vunpack.c.l.b16 %v321
  %v356 = vunpack.c.l.b16 %v322
  %v357 = vunpack.c.l.b16 %v323
  %v358 = vunpack.c.l.b16 %v324
  %v359 = vunpack.c.l.b16 %v325
  %v360 = vunpack.c.l.b16 %v326
  %v361 = vunpack.c.l.b16 %v327
  %v362 = vunpack.c.l.b16 %v328
  %v363 = vunpack.c.l.b16 %v329
  %v364 = vunpack.c.l.b16 %v330
  %v365 = vunpack.c.l.b16 %v331
  %v366 = vunpack.c.l.b16 %v332
  %v367 = vunpack.c.l.b16 %v333
  %v368 = vunpack.c.l.b16 %v334
  %v369 = vunpack.c.l.b16 %v335
  %v370 = vpack.c.b16 %v355, %v354
  %v371 = vpack.c.b16 %v357, %v356
  %v372 = vpack.c.b16 %v359, %v358
  %v373 = vpack.c.b16 %v361, %v360
  %v374 = vpack.c.b16 %v363, %v362
  %v375 = vpack.c.b16 %v365, %v364
  %v376 = vpack.c.b16 %v367, %v366
  %v377 = vpack.c.b16 %v369, %v368
  %386 = vmatpush.bf16.msra.mxu0 %v377
  %387 = vmatpush.bf16.msra.mxu0 %v376
  %388 = vmatpush.bf16.msra.mxu0 %v375
  %389 = vmatpush.bf16.msra.mxu0 %v374
  %390 = vmatpush.bf16.msra.mxu0 %v373
  %391 = vmatpush.bf16.msra.mxu0 %v372
  %392 = vmatpush.bf16.msra.mxu0 %v371
  %393 = vmatpush.bf16.msra.mxu0 %v370
  %394 = vmatmul.bf16.gmra.mxu0 %v336
  %v395 = vpop.f32.mrf.mxu0
  %v396 = vadd.f32 0.0, %v395
  %v397 = vpop.f32.mrf.mxu0
  %v398 = vadd.f32 0.0, %v397
  %399 = vmatmul.bf16.gmra.mxu0 %v337
  %v400 = vpop.f32.mrf.mxu0
  %v401 = vadd.f32 0.0, %v400
  %v402 = vpop.f32.mrf.mxu0
  %v403 = vadd.f32 0.0, %v402
  %404 = vdwg.mxu0
  %v405 = vadd.f32 %v272, %v396
  %v406 = vadd.f32 %v274, %v398
  %v407 = vadd.f32 %v277, %v401
  %v408 = vadd.f32 %v279, %v403
  %v409 = vld [vmem:[%s1 + $0x30] sm:$0xf]
  %v410 = vld [vmem:[%s1 + $0x34] sm:$0xf]
  %v411 = vld [vmem:[%s1 + $0x38] sm:$0xf]
  %v412 = vld [vmem:[%s1 + $0x3c] sm:$0xf]
  %v417 = vunpack.c.l.b16 %v409
  %v418 = vunpack.c.l.b16 %v410
  %v419 = vunpack.c.l.b16 %v411
  %v420 = vunpack.c.l.b16 %v412
  %v421 = vpack.c.b16 %v418, %v417
  %v422 = vpack.c.b16 %v420, %v419
  %v424 = vsel %vm46, %v421, 0
  %v427 = vsel %vm46, %v422, 0
  %429 = vmatpush.bf16.msra.mxu0 0
  %430 = vmatpush.bf16.msra.mxu0 0
  %431 = vmatpush.bf16.msra.mxu0 0
  %432 = vmatpush.bf16.msra.mxu0 0
  %433 = vmatpush.bf16.msra.mxu0 0
  %434 = vmatpush.bf16.msra.mxu0 0
  %435 = vmatpush.bf16.msra.mxu0 %v31
  %436 = vmatpush.bf16.msra.mxu0 %v30
  %437 = vmatmul.bf16.gmra.mxu0 %v424
  %v438 = vpop.f32.mrf.mxu0
  %v439 = vadd.f32 0.0, %v438
  %v440 = vpop.f32.mrf.mxu0
  %v441 = vadd.f32 0.0, %v440
  %442 = vmatmul.bf16.gmra.mxu0 %v427
  %v443 = vpop.f32.mrf.mxu0
  %v444 = vadd.f32 0.0, %v443
  %v445 = vpop.f32.mrf.mxu0
  %v446 = vadd.f32 0.0, %v445
  %447 = vdwg.mxu0
  %v448 = vld [vmem:[%s2 + $0xc0] sm:$0xf]
  %v449 = vld [vmem:[%s2 + $0xc4] sm:$0xf]
  %v450 = vld [vmem:[%s2 + $0xc8] sm:$0xf]
  %v451 = vld [vmem:[%s2 + $0xcc] sm:$0xf]
  %v452 = vld [vmem:[%s2 + $0xd0] sm:$0xf]
  %v453 = vld [vmem:[%s2 + $0xd4] sm:$0xf]
  %v454 = vld [vmem:[%s2 + $0xd8] sm:$0xf]
  %v455 = vld [vmem:[%s2 + $0xdc] sm:$0xf]
  %v456 = vld [vmem:[%s2 + $0xe0] sm:$0xf]
  %v457 = vld [vmem:[%s2 + $0xe4] sm:$0xf]
  %v458 = vld [vmem:[%s2 + $0xe8] sm:$0xf]
  %v459 = vld [vmem:[%s2 + $0xec] sm:$0xf]
  %v460 = vld [vmem:[%s2 + $0xf0] sm:$0xf]
  %v461 = vld [vmem:[%s2 + $0xf4] sm:$0xf]
  %v462 = vld [vmem:[%s2 + $0xf8] sm:$0xf]
  %v463 = vld [vmem:[%s2 + $0xfc] sm:$0xf]
  %v464 = vpack.c.bf16 %v441, %v439
  %v465 = vpack.c.bf16 %v446, %v444
  %v482 = vunpack.c.l.b16 %v448
  %v483 = vunpack.c.l.b16 %v449
  %v484 = vunpack.c.l.b16 %v450
  %v485 = vunpack.c.l.b16 %v451
  %v486 = vunpack.c.l.b16 %v452
  %v487 = vunpack.c.l.b16 %v453
  %v488 = vunpack.c.l.b16 %v454
  %v489 = vunpack.c.l.b16 %v455
  %v490 = vunpack.c.l.b16 %v456
  %v491 = vunpack.c.l.b16 %v457
  %v492 = vunpack.c.l.b16 %v458
  %v493 = vunpack.c.l.b16 %v459
  %v494 = vunpack.c.l.b16 %v460
  %v495 = vunpack.c.l.b16 %v461
  %v496 = vunpack.c.l.b16 %v462
  %v497 = vunpack.c.l.b16 %v463
  %v498 = vpack.c.b16 %v483, %v482
  %v499 = vpack.c.b16 %v485, %v484
  %v500 = vpack.c.b16 %v487, %v486
  %v501 = vpack.c.b16 %v489, %v488
  %v502 = vpack.c.b16 %v491, %v490
  %v503 = vpack.c.b16 %v493, %v492
  %v504 = vpack.c.b16 %v495, %v494
  %v505 = vpack.c.b16 %v497, %v496
  %514 = vmatpush.bf16.msra.mxu0 %v505
  %515 = vmatpush.bf16.msra.mxu0 %v504
  %516 = vmatpush.bf16.msra.mxu0 %v503
  %517 = vmatpush.bf16.msra.mxu0 %v502
  %518 = vmatpush.bf16.msra.mxu0 %v501
  %519 = vmatpush.bf16.msra.mxu0 %v500
  %520 = vmatpush.bf16.msra.mxu0 %v499
  %521 = vmatpush.bf16.msra.mxu0 %v498
  %522 = vmatmul.bf16.gmra.mxu0 %v464
  %v523 = vpop.f32.mrf.mxu0
  %v524 = vadd.f32 0.0, %v523
  %v525 = vpop.f32.mrf.mxu0
  %v526 = vadd.f32 0.0, %v525
  %527 = vmatmul.bf16.gmra.mxu0 %v465
  %v528 = vpop.f32.mrf.mxu0
  %v529 = vadd.f32 0.0, %v528
  %v530 = vpop.f32.mrf.mxu0
  %v531 = vadd.f32 0.0, %v530
  %532 = vdwg.mxu0
  %v533 = vadd.f32 %v405, %v524
  %v534 = vadd.f32 %v406, %v526
  %v535 = vadd.f32 %v407, %v529
  %v536 = vadd.f32 %v408, %v531
  %v537 = vld [vmem:[%s1 + $0x40] sm:$0xf]
  %v538 = vld [vmem:[%s1 + $0x44] sm:$0xf]
  %v539 = vld [vmem:[%s1 + $0x48] sm:$0xf]
  %v540 = vld [vmem:[%s1 + $0x4c] sm:$0xf]
  %v545 = vunpack.c.l.b16 %v537
  %v546 = vunpack.c.l.b16 %v538
  %v547 = vunpack.c.l.b16 %v539
  %v548 = vunpack.c.l.b16 %v540
  %v549 = vpack.c.b16 %v546, %v545
  %v550 = vpack.c.b16 %v548, %v547
  %v552 = vsel %vm46, %v549, 0
  %v555 = vsel %vm46, %v550, 0
  %557 = vmatpush.bf16.msra.mxu0 0
  %558 = vmatpush.bf16.msra.mxu0 0
  %559 = vmatpush.bf16.msra.mxu0 0
  %560 = vmatpush.bf16.msra.mxu0 0
  %561 = vmatpush.bf16.msra.mxu0 0
  %562 = vmatpush.bf16.msra.mxu0 0
  %563 = vmatpush.bf16.msra.mxu0 %v31
  %564 = vmatpush.bf16.msra.mxu0 %v30
  %565 = vmatmul.bf16.gmra.mxu0 %v552
  %v566 = vpop.f32.mrf.mxu0
  %v567 = vadd.f32 0.0, %v566
  %v568 = vpop.f32.mrf.mxu0
  %v569 = vadd.f32 0.0, %v568
  %570 = vmatmul.bf16.gmra.mxu0 %v555
  %v571 = vpop.f32.mrf.mxu0
  %v572 = vadd.f32 0.0, %v571
  %v573 = vpop.f32.mrf.mxu0
  %v574 = vadd.f32 0.0, %v573
  %575 = vdwg.mxu0
  %v576 = vld [vmem:[%s2 + $0x100] sm:$0xf]
  %v577 = vld [vmem:[%s2 + $0x104] sm:$0xf]
  %v578 = vld [vmem:[%s2 + $0x108] sm:$0xf]
  %v579 = vld [vmem:[%s2 + $0x10c] sm:$0xf]
  %v580 = vld [vmem:[%s2 + $0x110] sm:$0xf]
  %v581 = vld [vmem:[%s2 + $0x114] sm:$0xf]
  %v582 = vld [vmem:[%s2 + $0x118] sm:$0xf]
  %v583 = vld [vmem:[%s2 + $0x11c] sm:$0xf]
  %v584 = vld [vmem:[%s2 + $0x120] sm:$0xf]
  %v585 = vld [vmem:[%s2 + $0x124] sm:$0xf]
  %v586 = vld [vmem:[%s2 + $0x128] sm:$0xf]
  %v587 = vld [vmem:[%s2 + $0x12c] sm:$0xf]
  %v588 = vld [vmem:[%s2 + $0x130] sm:$0xf]
  %v589 = vld [vmem:[%s2 + $0x134] sm:$0xf]
  %v590 = vld [vmem:[%s2 + $0x138] sm:$0xf]
  %v591 = vld [vmem:[%s2 + $0x13c] sm:$0xf]
  %v592 = vpack.c.bf16 %v569, %v567
  %v593 = vpack.c.bf16 %v574, %v572
  %v610 = vunpack.c.l.b16 %v576
  %v611 = vunpack.c.l.b16 %v577
  %v612 = vunpack.c.l.b16 %v578
  %v613 = vunpack.c.l.b16 %v579
  %v614 = vunpack.c.l.b16 %v580
  %v615 = vunpack.c.l.b16 %v581
  %v616 = vunpack.c.l.b16 %v582
  %v617 = vunpack.c.l.b16 %v583
  %v618 = vunpack.c.l.b16 %v584
  %v619 = vunpack.c.l.b16 %v585
  %v620 = vunpack.c.l.b16 %v586
  %v621 = vunpack.c.l.b16 %v587
  %v622 = vunpack.c.l.b16 %v588
  %v623 = vunpack.c.l.b16 %v589
  %v624 = vunpack.c.l.b16 %v590
  %v625 = vunpack.c.l.b16 %v591
  %v626 = vpack.c.b16 %v611, %v610
  %v627 = vpack.c.b16 %v613, %v612
  %v628 = vpack.c.b16 %v615, %v614
  %v629 = vpack.c.b16 %v617, %v616
  %v630 = vpack.c.b16 %v619, %v618
  %v631 = vpack.c.b16 %v621, %v620
  %v632 = vpack.c.b16 %v623, %v622
  %v633 = vpack.c.b16 %v625, %v624
  %642 = vmatpush.bf16.msra.mxu0 %v633
  %643 = vmatpush.bf16.msra.mxu0 %v632
  %644 = vmatpush.bf16.msra.mxu0 %v631
  %645 = vmatpush.bf16.msra.mxu0 %v630
  %646 = vmatpush.bf16.msra.mxu0 %v629
  %647 = vmatpush.bf16.msra.mxu0 %v628
  %648 = vmatpush.bf16.msra.mxu0 %v627
  %649 = vmatpush.bf16.msra.mxu0 %v626
  %650 = vmatmul.bf16.gmra.mxu0 %v592
  %v651 = vpop.f32.mrf.mxu0
  %v652 = vadd.f32 0.0, %v651
  %v653 = vpop.f32.mrf.mxu0
  %v654 = vadd.f32 0.0, %v653
  %655 = vmatmul.bf16.gmra.mxu0 %v593
  %v656 = vpop.f32.mrf.mxu0
  %v657 = vadd.f32 0.0, %v656
  %v658 = vpop.f32.mrf.mxu0
  %v659 = vadd.f32 0.0, %v658
  %660 = vdwg.mxu0
  %v661 = vadd.f32 %v533, %v652
  %v662 = vadd.f32 %v534, %v654
  %v663 = vadd.f32 %v535, %v657
  %v664 = vadd.f32 %v536, %v659
  %v665 = vld [vmem:[%s1 + $0x50] sm:$0xf]
  %v666 = vld [vmem:[%s1 + $0x54] sm:$0xf]
  %v667 = vld [vmem:[%s1 + $0x58] sm:$0xf]
  %v668 = vld [vmem:[%s1 + $0x5c] sm:$0xf]
  %v673 = vunpack.c.l.b16 %v665
  %v674 = vunpack.c.l.b16 %v666
  %v675 = vunpack.c.l.b16 %v667
  %v676 = vunpack.c.l.b16 %v668
  %v677 = vpack.c.b16 %v674, %v673
  %v678 = vpack.c.b16 %v676, %v675
  %v680 = vsel %vm46, %v677, 0
  %v683 = vsel %vm46, %v678, 0
  %685 = vmatpush.bf16.msra.mxu0 0
  %686 = vmatpush.bf16.msra.mxu0 0
  %687 = vmatpush.bf16.msra.mxu0 0
  %688 = vmatpush.bf16.msra.mxu0 0
  %689 = vmatpush.bf16.msra.mxu0 0
  %690 = vmatpush.bf16.msra.mxu0 0
  %691 = vmatpush.bf16.msra.mxu0 %v31
  %692 = vmatpush.bf16.msra.mxu0 %v30
  %693 = vmatmul.bf16.gmra.mxu0 %v680
  %v694 = vpop.f32.mrf.mxu0
  %v695 = vadd.f32 0.0, %v694
  %v696 = vpop.f32.mrf.mxu0
  %v697 = vadd.f32 0.0, %v696
  %698 = vmatmul.bf16.gmra.mxu0 %v683
  %v699 = vpop.f32.mrf.mxu0
  %v700 = vadd.f32 0.0, %v699
  %v701 = vpop.f32.mrf.mxu0
  %v702 = vadd.f32 0.0, %v701
  %703 = vdwg.mxu0
  %v704 = vld [vmem:[%s2 + $0x140] sm:$0xf]
  %v705 = vld [vmem:[%s2 + $0x144] sm:$0xf]
  %v706 = vld [vmem:[%s2 + $0x148] sm:$0xf]
  %v707 = vld [vmem:[%s2 + $0x14c] sm:$0xf]
  %v708 = vld [vmem:[%s2 + $0x150] sm:$0xf]
  %v709 = vld [vmem:[%s2 + $0x154] sm:$0xf]
  %v710 = vld [vmem:[%s2 + $0x158] sm:$0xf]
  %v711 = vld [vmem:[%s2 + $0x15c] sm:$0xf]
  %v712 = vld [vmem:[%s2 + $0x160] sm:$0xf]
  %v713 = vld [vmem:[%s2 + $0x164] sm:$0xf]
  %v714 = vld [vmem:[%s2 + $0x168] sm:$0xf]
  %v715 = vld [vmem:[%s2 + $0x16c] sm:$0xf]
  %v716 = vld [vmem:[%s2 + $0x170] sm:$0xf]
  %v717 = vld [vmem:[%s2 + $0x174] sm:$0xf]
  %v718 = vld [vmem:[%s2 + $0x178] sm:$0xf]
  %v719 = vld [vmem:[%s2 + $0x17c] sm:$0xf]
  %v720 = vpack.c.bf16 %v697, %v695
  %v721 = vpack.c.bf16 %v702, %v700
  %v738 = vunpack.c.l.b16 %v704
  %v739 = vunpack.c.l.b16 %v705
  %v740 = vunpack.c.l.b16 %v706
  %v741 = vunpack.c.l.b16 %v707
  %v742 = vunpack.c.l.b16 %v708
  %v743 = vunpack.c.l.b16 %v709
  %v744 = vunpack.c.l.b16 %v710
  %v745 = vunpack.c.l.b16 %v711
  %v746 = vunpack.c.l.b16 %v712
  %v747 = vunpack.c.l.b16 %v713
  %v748 = vunpack.c.l.b16 %v714
  %v749 = vunpack.c.l.b16 %v715
  %v750 = vunpack.c.l.b16 %v716
  %v751 = vunpack.c.l.b16 %v717
  %v752 = vunpack.c.l.b16 %v718
  %v753 = vunpack.c.l.b16 %v719
  %v754 = vpack.c.b16 %v739, %v738
  %v755 = vpack.c.b16 %v741, %v740
  %v756 = vpack.c.b16 %v743, %v742
  %v757 = vpack.c.b16 %v745, %v744
  %v758 = vpack.c.b16 %v747, %v746
  %v759 = vpack.c.b16 %v749, %v748
  %v760 = vpack.c.b16 %v751, %v750
  %v761 = vpack.c.b16 %v753, %v752
  %770 = vmatpush.bf16.msra.mxu0 %v761
  %771 = vmatpush.bf16.msra.mxu0 %v760
  %772 = vmatpush.bf16.msra.mxu0 %v759
  %773 = vmatpush.bf16.msra.mxu0 %v758
  %774 = vmatpush.bf16.msra.mxu0 %v757
  %775 = vmatpush.bf16.msra.mxu0 %v756
  %776 = vmatpush.bf16.msra.mxu0 %v755
  %777 = vmatpush.bf16.msra.mxu0 %v754
  %778 = vmatmul.bf16.gmra.mxu0 %v720
  %v779 = vpop.f32.mrf.mxu0
  %v780 = vadd.f32 0.0, %v779
  %v781 = vpop.f32.mrf.mxu0
  %v782 = vadd.f32 0.0, %v781
  %783 = vmatmul.bf16.gmra.mxu0 %v721
  %v784 = vpop.f32.mrf.mxu0
  %v785 = vadd.f32 0.0, %v784
  %v786 = vpop.f32.mrf.mxu0
  %v787 = vadd.f32 0.0, %v786
  %788 = vdwg.mxu0
  %v789 = vadd.f32 %v661, %v780
  %v790 = vadd.f32 %v662, %v782
  %v791 = vadd.f32 %v663, %v785
  %v792 = vadd.f32 %v664, %v787
  %v793 = vld [vmem:[%s1 + $0x60] sm:$0xf]
  %v794 = vld [vmem:[%s1 + $0x64] sm:$0xf]
  %v795 = vld [vmem:[%s1 + $0x68] sm:$0xf]
  %v796 = vld [vmem:[%s1 + $0x6c] sm:$0xf]
  %v801 = vunpack.c.l.b16 %v793
  %v802 = vunpack.c.l.b16 %v794
  %v803 = vunpack.c.l.b16 %v795
  %v804 = vunpack.c.l.b16 %v796
  %v805 = vpack.c.b16 %v802, %v801
  %v806 = vpack.c.b16 %v804, %v803
  %v808 = vsel %vm46, %v805, 0
  %v811 = vsel %vm46, %v806, 0
  %813 = vmatpush.bf16.msra.mxu0 0
  %814 = vmatpush.bf16.msra.mxu0 0
  %815 = vmatpush.bf16.msra.mxu0 0
  %816 = vmatpush.bf16.msra.mxu0 0
  %817 = vmatpush.bf16.msra.mxu0 0
  %818 = vmatpush.bf16.msra.mxu0 0
  %819 = vmatpush.bf16.msra.mxu0 %v31
  %820 = vmatpush.bf16.msra.mxu0 %v30
  %821 = vmatmul.bf16.gmra.mxu0 %v808
  %v822 = vpop.f32.mrf.mxu0
  %v823 = vadd.f32 0.0, %v822
  %v824 = vpop.f32.mrf.mxu0
  %v825 = vadd.f32 0.0, %v824
  %826 = vmatmul.bf16.gmra.mxu0 %v811
  %v827 = vpop.f32.mrf.mxu0
  %v828 = vadd.f32 0.0, %v827
  %v829 = vpop.f32.mrf.mxu0
  %v830 = vadd.f32 0.0, %v829
  %831 = vdwg.mxu0
  %v832 = vld [vmem:[%s2 + $0x180] sm:$0xf]
  %v833 = vld [vmem:[%s2 + $0x184] sm:$0xf]
  %v834 = vld [vmem:[%s2 + $0x188] sm:$0xf]
  %v835 = vld [vmem:[%s2 + $0x18c] sm:$0xf]
  %v836 = vld [vmem:[%s2 + $0x190] sm:$0xf]
  %v837 = vld [vmem:[%s2 + $0x194] sm:$0xf]
  %v838 = vld [vmem:[%s2 + $0x198] sm:$0xf]
  %v839 = vld [vmem:[%s2 + $0x19c] sm:$0xf]
  %v840 = vld [vmem:[%s2 + $0x1a0] sm:$0xf]
  %v841 = vld [vmem:[%s2 + $0x1a4] sm:$0xf]
  %v842 = vld [vmem:[%s2 + $0x1a8] sm:$0xf]
  %v843 = vld [vmem:[%s2 + $0x1ac] sm:$0xf]
  %v844 = vld [vmem:[%s2 + $0x1b0] sm:$0xf]
  %v845 = vld [vmem:[%s2 + $0x1b4] sm:$0xf]
  %v846 = vld [vmem:[%s2 + $0x1b8] sm:$0xf]
  %v847 = vld [vmem:[%s2 + $0x1bc] sm:$0xf]
  %v848 = vpack.c.bf16 %v825, %v823
  %v849 = vpack.c.bf16 %v830, %v828
  %v866 = vunpack.c.l.b16 %v832
  %v867 = vunpack.c.l.b16 %v833
  %v868 = vunpack.c.l.b16 %v834
  %v869 = vunpack.c.l.b16 %v835
  %v870 = vunpack.c.l.b16 %v836
  %v871 = vunpack.c.l.b16 %v837
  %v872 = vunpack.c.l.b16 %v838
  %v873 = vunpack.c.l.b16 %v839
  %v874 = vunpack.c.l.b16 %v840
  %v875 = vunpack.c.l.b16 %v841
  %v876 = vunpack.c.l.b16 %v842
  %v877 = vunpack.c.l.b16 %v843
  %v878 = vunpack.c.l.b16 %v844
  %v879 = vunpack.c.l.b16 %v845
  %v880 = vunpack.c.l.b16 %v846
  %v881 = vunpack.c.l.b16 %v847
  %v882 = vpack.c.b16 %v867, %v866
  %v883 = vpack.c.b16 %v869, %v868
  %v884 = vpack.c.b16 %v871, %v870
  %v885 = vpack.c.b16 %v873, %v872
  %v886 = vpack.c.b16 %v875, %v874
  %v887 = vpack.c.b16 %v877, %v876
  %v888 = vpack.c.b16 %v879, %v878
  %v889 = vpack.c.b16 %v881, %v880
  %898 = vmatpush.bf16.msra.mxu0 %v889
  %899 = vmatpush.bf16.msra.mxu0 %v888
  %900 = vmatpush.bf16.msra.mxu0 %v887
  %901 = vmatpush.bf16.msra.mxu0 %v886
  %902 = vmatpush.bf16.msra.mxu0 %v885
  %903 = vmatpush.bf16.msra.mxu0 %v884
  %904 = vmatpush.bf16.msra.mxu0 %v883
  %905 = vmatpush.bf16.msra.mxu0 %v882
  %906 = vmatmul.bf16.gmra.mxu0 %v848
  %v907 = vpop.f32.mrf.mxu0
  %v908 = vadd.f32 0.0, %v907
  %v909 = vpop.f32.mrf.mxu0
  %v910 = vadd.f32 0.0, %v909
  %911 = vmatmul.bf16.gmra.mxu0 %v849
  %v912 = vpop.f32.mrf.mxu0
  %v913 = vadd.f32 0.0, %v912
  %v914 = vpop.f32.mrf.mxu0
  %v915 = vadd.f32 0.0, %v914
  %916 = vdwg.mxu0
  %v917 = vadd.f32 %v789, %v908
  %v918 = vadd.f32 %v790, %v910
  %v919 = vadd.f32 %v791, %v913
  %v920 = vadd.f32 %v792, %v915
  %v921 = vld [vmem:[%s1 + $0x70] sm:$0xf]
  %v922 = vld [vmem:[%s1 + $0x74] sm:$0xf]
  %v923 = vld [vmem:[%s1 + $0x78] sm:$0xf]
  %v924 = vld [vmem:[%s1 + $0x7c] sm:$0xf]
  %v929 = vunpack.c.l.b16 %v921
  %v930 = vunpack.c.l.b16 %v922
  %v931 = vunpack.c.l.b16 %v923
  %v932 = vunpack.c.l.b16 %v924
  %v933 = vpack.c.b16 %v930, %v929
  %v934 = vpack.c.b16 %v932, %v931
  %v936 = vsel %vm46, %v933, 0
  %v939 = vsel %vm46, %v934, 0
  %941 = vmatpush.bf16.msra.mxu0 0
  %942 = vmatpush.bf16.msra.mxu0 0
  %943 = vmatpush.bf16.msra.mxu0 0
  %944 = vmatpush.bf16.msra.mxu0 0
  %945 = vmatpush.bf16.msra.mxu0 0
  %946 = vmatpush.bf16.msra.mxu0 0
  %947 = vmatpush.bf16.msra.mxu0 %v31
  %948 = vmatpush.bf16.msra.mxu0 %v30
  %949 = vmatmul.bf16.gmra.mxu0 %v936
  %v950 = vpop.f32.mrf.mxu0
  %v951 = vadd.f32 0.0, %v950
  %v952 = vpop.f32.mrf.mxu0
  %v953 = vadd.f32 0.0, %v952
  %954 = vmatmul.bf16.gmra.mxu0 %v939
  %v955 = vpop.f32.mrf.mxu0
  %v956 = vadd.f32 0.0, %v955
  %v957 = vpop.f32.mrf.mxu0
  %v958 = vadd.f32 0.0, %v957
  %959 = vdwg.mxu0
  %v960 = vld [vmem:[%s2 + $0x1c0] sm:$0xf]
  %v961 = vld [vmem:[%s2 + $0x1c4] sm:$0xf]
  %v962 = vld [vmem:[%s2 + $0x1c8] sm:$0xf]
  %v963 = vld [vmem:[%s2 + $0x1cc] sm:$0xf]
  %v964 = vld [vmem:[%s2 + $0x1d0] sm:$0xf]
  %v965 = vld [vmem:[%s2 + $0x1d4] sm:$0xf]
  %v966 = vld [vmem:[%s2 + $0x1d8] sm:$0xf]
  %v967 = vld [vmem:[%s2 + $0x1dc] sm:$0xf]
  %v968 = vld [vmem:[%s2 + $0x1e0] sm:$0xf]
  %v969 = vld [vmem:[%s2 + $0x1e4] sm:$0xf]
  %v970 = vld [vmem:[%s2 + $0x1e8] sm:$0xf]
  %v971 = vld [vmem:[%s2 + $0x1ec] sm:$0xf]
  %v972 = vld [vmem:[%s2 + $0x1f0] sm:$0xf]
  %v973 = vld [vmem:[%s2 + $0x1f4] sm:$0xf]
  %v974 = vld [vmem:[%s2 + $0x1f8] sm:$0xf]
  %v975 = vld [vmem:[%s2 + $0x1fc] sm:$0xf]
  %v976 = vpack.c.bf16 %v953, %v951
  %v977 = vpack.c.bf16 %v958, %v956
  %v994 = vunpack.c.l.b16 %v960
  %v995 = vunpack.c.l.b16 %v961
  %v996 = vunpack.c.l.b16 %v962
  %v997 = vunpack.c.l.b16 %v963
  %v998 = vunpack.c.l.b16 %v964
  %v999 = vunpack.c.l.b16 %v965
  %v1000 = vunpack.c.l.b16 %v966
  %v1001 = vunpack.c.l.b16 %v967
  %v1002 = vunpack.c.l.b16 %v968
  %v1003 = vunpack.c.l.b16 %v969
  %v1004 = vunpack.c.l.b16 %v970
  %v1005 = vunpack.c.l.b16 %v971
  %v1006 = vunpack.c.l.b16 %v972
  %v1007 = vunpack.c.l.b16 %v973
  %v1008 = vunpack.c.l.b16 %v974
  %v1009 = vunpack.c.l.b16 %v975
  %v1010 = vpack.c.b16 %v995, %v994
  %v1011 = vpack.c.b16 %v997, %v996
  %v1012 = vpack.c.b16 %v999, %v998
  %v1013 = vpack.c.b16 %v1001, %v1000
  %v1014 = vpack.c.b16 %v1003, %v1002
  %v1015 = vpack.c.b16 %v1005, %v1004
  %v1016 = vpack.c.b16 %v1007, %v1006
  %v1017 = vpack.c.b16 %v1009, %v1008
  %1026 = vmatpush.bf16.msra.mxu0 %v1017
  %1027 = vmatpush.bf16.msra.mxu0 %v1016
  %1028 = vmatpush.bf16.msra.mxu0 %v1015
  %1029 = vmatpush.bf16.msra.mxu0 %v1014
  %1030 = vmatpush.bf16.msra.mxu0 %v1013
  %1031 = vmatpush.bf16.msra.mxu0 %v1012
  %1032 = vmatpush.bf16.msra.mxu0 %v1011
  %1033 = vmatpush.bf16.msra.mxu0 %v1010
  %1034 = vmatmul.bf16.gmra.mxu0 %v976
  %v1035 = vpop.f32.mrf.mxu0
  %v1036 = vadd.f32 0.0, %v1035
  %v1037 = vpop.f32.mrf.mxu0
  %v1038 = vadd.f32 0.0, %v1037
  %1039 = vmatmul.bf16.gmra.mxu0 %v977
  %v1040 = vpop.f32.mrf.mxu0
  %v1041 = vadd.f32 0.0, %v1040
  %v1042 = vpop.f32.mrf.mxu0
  %v1043 = vadd.f32 0.0, %v1042
  %1044 = vdwg.mxu0
  %v1045 = vadd.f32 %v917, %v1036
  %v1046 = vadd.f32 %v918, %v1038
  %v1047 = vadd.f32 %v919, %v1041
  %v1048 = vadd.f32 %v920, %v1043
  %v1049 = vld [vmem:[%s1 + $0x80] sm:$0xf]
  %v1050 = vld [vmem:[%s1 + $0x84] sm:$0xf]
  %v1051 = vld [vmem:[%s1 + $0x88] sm:$0xf]
  %v1052 = vld [vmem:[%s1 + $0x8c] sm:$0xf]
  %v1057 = vunpack.c.l.b16 %v1049
  %v1058 = vunpack.c.l.b16 %v1050
  %v1059 = vunpack.c.l.b16 %v1051
  %v1060 = vunpack.c.l.b16 %v1052
  %v1061 = vpack.c.b16 %v1058, %v1057
  %v1062 = vpack.c.b16 %v1060, %v1059
  %v1064 = vsel %vm46, %v1061, 0
  %v1067 = vsel %vm46, %v1062, 0
  %1069 = vmatpush.bf16.msra.mxu0 0
  %1070 = vmatpush.bf16.msra.mxu0 0
  %1071 = vmatpush.bf16.msra.mxu0 0
  %1072 = vmatpush.bf16.msra.mxu0 0
  %1073 = vmatpush.bf16.msra.mxu0 0
  %1074 = vmatpush.bf16.msra.mxu0 0
  %1075 = vmatpush.bf16.msra.mxu0 %v31
  %1076 = vmatpush.bf16.msra.mxu0 %v30
  %1077 = vmatmul.bf16.gmra.mxu0 %v1064
  %v1078 = vpop.f32.mrf.mxu0
  %v1079 = vadd.f32 0.0, %v1078
  %v1080 = vpop.f32.mrf.mxu0
  %v1081 = vadd.f32 0.0, %v1080
  %1082 = vmatmul.bf16.gmra.mxu0 %v1067
  %v1083 = vpop.f32.mrf.mxu0
  %v1084 = vadd.f32 0.0, %v1083
  %v1085 = vpop.f32.mrf.mxu0
  %v1086 = vadd.f32 0.0, %v1085
  %1087 = vdwg.mxu0
  %v1088 = vld [vmem:[%s2 + $0x200] sm:$0xf]
  %v1089 = vld [vmem:[%s2 + $0x204] sm:$0xf]
  %v1090 = vld [vmem:[%s2 + $0x208] sm:$0xf]
  %v1091 = vld [vmem:[%s2 + $0x20c] sm:$0xf]
  %v1092 = vld [vmem:[%s2 + $0x210] sm:$0xf]
  %v1093 = vld [vmem:[%s2 + $0x214] sm:$0xf]
  %v1094 = vld [vmem:[%s2 + $0x218] sm:$0xf]
  %v1095 = vld [vmem:[%s2 + $0x21c] sm:$0xf]
  %v1096 = vld [vmem:[%s2 + $0x220] sm:$0xf]
  %v1097 = vld [vmem:[%s2 + $0x224] sm:$0xf]
  %v1098 = vld [vmem:[%s2 + $0x228] sm:$0xf]
  %v1099 = vld [vmem:[%s2 + $0x22c] sm:$0xf]
  %v1100 = vld [vmem:[%s2 + $0x230] sm:$0xf]
  %v1101 = vld [vmem:[%s2 + $0x234] sm:$0xf]
  %v1102 = vld [vmem:[%s2 + $0x238] sm:$0xf]
  %v1103 = vld [vmem:[%s2 + $0x23c] sm:$0xf]
  %v1104 = vpack.c.bf16 %v1081, %v1079
  %v1105 = vpack.c.bf16 %v1086, %v1084
  %v1122 = vunpack.c.l.b16 %v1088
  %v1123 = vunpack.c.l.b16 %v1089
  %v1124 = vunpack.c.l.b16 %v1090
  %v1125 = vunpack.c.l.b16 %v1091
  %v1126 = vunpack.c.l.b16 %v1092
  %v1127 = vunpack.c.l.b16 %v1093
  %v1128 = vunpack.c.l.b16 %v1094
  %v1129 = vunpack.c.l.b16 %v1095
  %v1130 = vunpack.c.l.b16 %v1096
  %v1131 = vunpack.c.l.b16 %v1097
  %v1132 = vunpack.c.l.b16 %v1098
  %v1133 = vunpack.c.l.b16 %v1099
  %v1134 = vunpack.c.l.b16 %v1100
  %v1135 = vunpack.c.l.b16 %v1101
  %v1136 = vunpack.c.l.b16 %v1102
  %v1137 = vunpack.c.l.b16 %v1103
  %v1138 = vpack.c.b16 %v1123, %v1122
  %v1139 = vpack.c.b16 %v1125, %v1124
  %v1140 = vpack.c.b16 %v1127, %v1126
  %v1141 = vpack.c.b16 %v1129, %v1128
  %v1142 = vpack.c.b16 %v1131, %v1130
  %v1143 = vpack.c.b16 %v1133, %v1132
  %v1144 = vpack.c.b16 %v1135, %v1134
  %v1145 = vpack.c.b16 %v1137, %v1136
  %1154 = vmatpush.bf16.msra.mxu0 %v1145
  %1155 = vmatpush.bf16.msra.mxu0 %v1144
  %1156 = vmatpush.bf16.msra.mxu0 %v1143
  %1157 = vmatpush.bf16.msra.mxu0 %v1142
  %1158 = vmatpush.bf16.msra.mxu0 %v1141
  %1159 = vmatpush.bf16.msra.mxu0 %v1140
  %1160 = vmatpush.bf16.msra.mxu0 %v1139
  %1161 = vmatpush.bf16.msra.mxu0 %v1138
  %1162 = vmatmul.bf16.gmra.mxu0 %v1104
  %v1163 = vpop.f32.mrf.mxu0
  %v1164 = vadd.f32 0.0, %v1163
  %v1165 = vpop.f32.mrf.mxu0
  %v1166 = vadd.f32 0.0, %v1165
  %1167 = vmatmul.bf16.gmra.mxu0 %v1105
  %v1168 = vpop.f32.mrf.mxu0
  %v1169 = vadd.f32 0.0, %v1168
  %v1170 = vpop.f32.mrf.mxu0
  %v1171 = vadd.f32 0.0, %v1170
  %1172 = vdwg.mxu0
  %v1173 = vadd.f32 %v1045, %v1164
  %v1174 = vadd.f32 %v1046, %v1166
  %v1175 = vadd.f32 %v1047, %v1169
  %v1176 = vadd.f32 %v1048, %v1171
  %v1177 = vmax.f32 %v1173, 0.0
  %v1178 = vmax.f32 %v1174, 0.0
  %v1179 = vmax.f32 %v1175, 0.0
  %v1180 = vmax.f32 %v1176, 0.0
  %v1181 = vpack.c.bf16 %v1178, %v1177
  %v1182 = vpack.c.bf16 %v1180, %v1179
  %v1183 = vld [vmem:[%s3] sm:$0xf]
  %v1184 = vld [vmem:[%s3 + $0x4] sm:$0xf]
  %v1185 = vld [vmem:[%s3 + $0x8] sm:$0xf]
  %v1186 = vld [vmem:[%s3 + $0xc] sm:$0xf]
  %v1187 = vld [vmem:[%s3 + $0x10] sm:$0xf]
  %v1188 = vld [vmem:[%s3 + $0x14] sm:$0xf]
  %v1189 = vld [vmem:[%s3 + $0x18] sm:$0xf]
  %v1190 = vld [vmem:[%s3 + $0x1c] sm:$0xf]
  %v1191 = vld [vmem:[%s3 + $0x20] sm:$0xf]
  %v1192 = vld [vmem:[%s3 + $0x24] sm:$0xf]
  %v1193 = vld [vmem:[%s3 + $0x28] sm:$0xf]
  %v1194 = vld [vmem:[%s3 + $0x2c] sm:$0xf]
  %v1195 = vld [vmem:[%s3 + $0x30] sm:$0xf]
  %v1196 = vld [vmem:[%s3 + $0x34] sm:$0xf]
  %v1197 = vld [vmem:[%s3 + $0x38] sm:$0xf]
  %v1198 = vld [vmem:[%s3 + $0x3c] sm:$0xf]
  %v1215 = vunpack.c.l.b16 %v1183
  %v1216 = vunpack.c.l.b16 %v1184
  %v1217 = vunpack.c.l.b16 %v1185
  %v1218 = vunpack.c.l.b16 %v1186
  %v1219 = vunpack.c.l.b16 %v1187
  %v1220 = vunpack.c.l.b16 %v1188
  %v1221 = vunpack.c.l.b16 %v1189
  %v1222 = vunpack.c.l.b16 %v1190
  %v1223 = vunpack.c.l.b16 %v1191
  %v1224 = vunpack.c.l.b16 %v1192
  %v1225 = vunpack.c.l.b16 %v1193
  %v1226 = vunpack.c.l.b16 %v1194
  %v1227 = vunpack.c.l.b16 %v1195
  %v1228 = vunpack.c.l.b16 %v1196
  %v1229 = vunpack.c.l.b16 %v1197
  %v1230 = vunpack.c.l.b16 %v1198
  %v1231 = vpack.c.b16 %v1216, %v1215
  %v1232 = vpack.c.b16 %v1218, %v1217
  %v1233 = vpack.c.b16 %v1220, %v1219
  %v1234 = vpack.c.b16 %v1222, %v1221
  %v1235 = vpack.c.b16 %v1224, %v1223
  %v1236 = vpack.c.b16 %v1226, %v1225
  %v1237 = vpack.c.b16 %v1228, %v1227
  %v1238 = vpack.c.b16 %v1230, %v1229
  %1247 = vmatpush.bf16.msra.mxu0 %v1238
  %1248 = vmatpush.bf16.msra.mxu0 %v1237
  %1249 = vmatpush.bf16.msra.mxu0 %v1236
  %1250 = vmatpush.bf16.msra.mxu0 %v1235
  %1251 = vmatpush.bf16.msra.mxu0 %v1234
  %1252 = vmatpush.bf16.msra.mxu0 %v1233
  %1253 = vmatpush.bf16.msra.mxu0 %v1232
  %1254 = vmatpush.bf16.msra.mxu0 %v1231
  %1255 = vmatmul.bf16.gmra.mxu0 %v1181
  %v1256 = vpop.f32.mrf.mxu0
  %v1257 = vadd.f32 0.0, %v1256
  %v1258 = vpop.f32.mrf.mxu0
  %v1259 = vadd.f32 0.0, %v1258
  %1260 = vmatmul.bf16.gmra.mxu0 %v1182
  %v1261 = vpop.f32.mrf.mxu0
  %v1262 = vadd.f32 0.0, %v1261
  %v1263 = vpop.f32.mrf.mxu0
  %v1264 = vadd.f32 0.0, %v1263
  %1265 = vdwg.mxu0
  %v1266 = vadd.f32 %v22, %v1257
  %v1267 = vadd.f32 %v23, %v1259
  %v1268 = vadd.f32 %v24, %v1262
  %v1269 = vadd.f32 %v25, %v1264
  %v1270 = vmax.f32 %v1266, 0.0
  %v1271 = vmax.f32 %v1267, 0.0
  %v1272 = vmax.f32 %v1268, 0.0
  %v1273 = vmax.f32 %v1269, 0.0
  %v1274 = vpack.c.bf16 %v1271, %v1270
  %v1275 = vpack.c.bf16 %v1273, %v1272
  %1276 = vmatpush.bf16.msra.mxu0 0
  %1277 = vmatpush.bf16.msra.mxu0 0
  %1278 = vmatpush.bf16.msra.mxu0 0
  %1279 = vmatpush.bf16.msra.mxu0 0
  %1280 = vmatpush.bf16.msra.mxu0 0
  %1281 = vmatpush.bf16.msra.mxu0 0
  %1282 = vmatpush.bf16.msra.mxu0 %v1275
  %1283 = vmatpush.bf16.msra.mxu0 %v1274
  %1284 = vmatmul.bf16.gmra.mxu0 %v48
  %v1285 = vpop.f32.mrf.mxu0
  %v1286 = vadd.f32 0.0, %v1285
  %v1287 = vpop.f32.mrf.mxu0
  %v1288 = vadd.f32 0.0, %v1287
  %1289 = vmatmul.bf16.gmra.mxu0 %v51
  %v1290 = vpop.f32.mrf.mxu0
  %v1291 = vadd.f32 0.0, %v1290
  %v1292 = vpop.f32.mrf.mxu0
  %v1293 = vadd.f32 0.0, %v1292
  %1294 = vdwg.mxu0
  %v1295 = vld [vmem:[%s2 + $0x240] sm:$0xf]
  %v1296 = vld [vmem:[%s2 + $0x244] sm:$0xf]
  %v1297 = vld [vmem:[%s2 + $0x248] sm:$0xf]
  %v1298 = vld [vmem:[%s2 + $0x24c] sm:$0xf]
  %v1299 = vld [vmem:[%s2 + $0x250] sm:$0xf]
  %v1300 = vld [vmem:[%s2 + $0x254] sm:$0xf]
  %v1301 = vld [vmem:[%s2 + $0x258] sm:$0xf]
  %v1302 = vld [vmem:[%s2 + $0x25c] sm:$0xf]
  %v1303 = vld [vmem:[%s2 + $0x260] sm:$0xf]
  %v1304 = vld [vmem:[%s2 + $0x264] sm:$0xf]
  %v1305 = vld [vmem:[%s2 + $0x268] sm:$0xf]
  %v1306 = vld [vmem:[%s2 + $0x26c] sm:$0xf]
  %v1307 = vld [vmem:[%s2 + $0x270] sm:$0xf]
  %v1308 = vld [vmem:[%s2 + $0x274] sm:$0xf]
  %v1309 = vld [vmem:[%s2 + $0x278] sm:$0xf]
  %v1310 = vld [vmem:[%s2 + $0x27c] sm:$0xf]
  %v1311 = vpack.c.bf16 %v1288, %v1286
  %v1312 = vpack.c.bf16 %v1293, %v1291
  %1313 = vmatpush.bf16.msra.mxu0 0
  %1314 = vmatpush.bf16.msra.mxu0 0
  %1315 = vmatpush.bf16.msra.mxu0 0
  %1316 = vmatpush.bf16.msra.mxu0 0
  %1317 = vmatpush.bf16.msra.mxu0 0
  %1318 = vmatpush.bf16.msra.mxu0 0
  %1319 = vmatpush.bf16.msra.mxu0 %v1275
  %1320 = vmatpush.bf16.msra.mxu0 %v1274
  %1321 = vmatmul.bf16.gmra.mxu0 %v105
  %v1322 = vpop.f32.mrf.mxu0
  %v1323 = vadd.f32 0.0, %v1322
  %v1324 = vpop.f32.mrf.mxu0
  %v1325 = vadd.f32 0.0, %v1324
  %1326 = vmatmul.bf16.gmra.mxu0 %v108
  %v1327 = vpop.f32.mrf.mxu0
  %v1328 = vadd.f32 0.0, %v1327
  %v1329 = vpop.f32.mrf.mxu0
  %v1330 = vadd.f32 0.0, %v1329
  %1331 = vdwg.mxu0
  %v1332 = vld [vmem:[%s2 + $0x280] sm:$0xf]
  %v1333 = vld [vmem:[%s2 + $0x284] sm:$0xf]
  %v1334 = vld [vmem:[%s2 + $0x288] sm:$0xf]
  %v1335 = vld [vmem:[%s2 + $0x28c] sm:$0xf]
  %v1336 = vld [vmem:[%s2 + $0x290] sm:$0xf]
  %v1337 = vld [vmem:[%s2 + $0x294] sm:$0xf]
  %v1338 = vld [vmem:[%s2 + $0x298] sm:$0xf]
  %v1339 = vld [vmem:[%s2 + $0x29c] sm:$0xf]
  %v1340 = vld [vmem:[%s2 + $0x2a0] sm:$0xf]
  %v1341 = vld [vmem:[%s2 + $0x2a4] sm:$0xf]
  %v1342 = vld [vmem:[%s2 + $0x2a8] sm:$0xf]
  %v1343 = vld [vmem:[%s2 + $0x2ac] sm:$0xf]
  %v1344 = vld [vmem:[%s2 + $0x2b0] sm:$0xf]
  %v1345 = vld [vmem:[%s2 + $0x2b4] sm:$0xf]
  %v1346 = vld [vmem:[%s2 + $0x2b8] sm:$0xf]
  %v1347 = vld [vmem:[%s2 + $0x2bc] sm:$0xf]
  %v1348 = vpack.c.bf16 %v1325, %v1323
  %v1349 = vpack.c.bf16 %v1330, %v1328
  %v1366 = vunpack.c.l.b16 %v1332
  %v1367 = vunpack.c.l.b16 %v1333
  %v1368 = vunpack.c.l.b16 %v1334
  %v1369 = vunpack.c.l.b16 %v1335
  %v1370 = vunpack.c.l.b16 %v1336
  %v1371 = vunpack.c.l.b16 %v1337
  %v1372 = vunpack.c.l.b16 %v1338
  %v1373 = vunpack.c.l.b16 %v1339
  %v1374 = vunpack.c.l.b16 %v1340
  %v1375 = vunpack.c.l.b16 %v1341
  %v1376 = vunpack.c.l.b16 %v1342
  %v1377 = vunpack.c.l.b16 %v1343
  %v1378 = vunpack.c.l.b16 %v1344
  %v1379 = vunpack.c.l.b16 %v1345
  %v1380 = vunpack.c.l.b16 %v1346
  %v1381 = vunpack.c.l.b16 %v1347
  %v1382 = vpack.c.b16 %v1367, %v1366
  %v1383 = vpack.c.b16 %v1369, %v1368
  %v1384 = vpack.c.b16 %v1371, %v1370
  %v1385 = vpack.c.b16 %v1373, %v1372
  %v1386 = vpack.c.b16 %v1375, %v1374
  %v1387 = vpack.c.b16 %v1377, %v1376
  %v1388 = vpack.c.b16 %v1379, %v1378
  %v1389 = vpack.c.b16 %v1381, %v1380
  %1398 = vmatpush.bf16.msra.mxu0 %v1389
  %1399 = vmatpush.bf16.msra.mxu0 %v1388
  %1400 = vmatpush.bf16.msra.mxu0 %v1387
  %1401 = vmatpush.bf16.msra.mxu0 %v1386
  %1402 = vmatpush.bf16.msra.mxu0 %v1385
  %1403 = vmatpush.bf16.msra.mxu0 %v1384
  %1404 = vmatpush.bf16.msra.mxu0 %v1383
  %1405 = vmatpush.bf16.msra.mxu0 %v1382
  %1406 = vmatmul.bf16.gmra.mxu0 %v1348
  %v1407 = vpop.f32.mrf.mxu0
  %v1408 = vadd.f32 0.0, %v1407
  %v1409 = vpop.f32.mrf.mxu0
  %v1410 = vadd.f32 0.0, %v1409
  %1411 = vmatmul.bf16.gmra.mxu0 %v1349
  %v1412 = vpop.f32.mrf.mxu0
  %v1413 = vadd.f32 0.0, %v1412
  %v1414 = vpop.f32.mrf.mxu0
  %v1415 = vadd.f32 0.0, %v1414
  %1416 = vdwg.mxu0
  %v1433 = vunpack.c.l.b16 %v1295
  %v1434 = vunpack.c.l.b16 %v1296
  %v1435 = vunpack.c.l.b16 %v1297
  %v1436 = vunpack.c.l.b16 %v1298
  %v1437 = vunpack.c.l.b16 %v1299
  %v1438 = vunpack.c.l.b16 %v1300
  %v1439 = vunpack.c.l.b16 %v1301
  %v1440 = vunpack.c.l.b16 %v1302
  %v1441 = vunpack.c.l.b16 %v1303
  %v1442 = vunpack.c.l.b16 %v1304
  %v1443 = vunpack.c.l.b16 %v1305
  %v1444 = vunpack.c.l.b16 %v1306
  %v1445 = vunpack.c.l.b16 %v1307
  %v1446 = vunpack.c.l.b16 %v1308
  %v1447 = vunpack.c.l.b16 %v1309
  %v1448 = vunpack.c.l.b16 %v1310
  %v1449 = vpack.c.b16 %v1434, %v1433
  %v1450 = vpack.c.b16 %v1436, %v1435
  %v1451 = vpack.c.b16 %v1438, %v1437
  %v1452 = vpack.c.b16 %v1440, %v1439
  %v1453 = vpack.c.b16 %v1442, %v1441
  %v1454 = vpack.c.b16 %v1444, %v1443
  %v1455 = vpack.c.b16 %v1446, %v1445
  %v1456 = vpack.c.b16 %v1448, %v1447
  %1465 = vmatpush.bf16.msra.mxu0 %v1456
  %1466 = vmatpush.bf16.msra.mxu0 %v1455
  %1467 = vmatpush.bf16.msra.mxu0 %v1454
  %1468 = vmatpush.bf16.msra.mxu0 %v1453
  %1469 = vmatpush.bf16.msra.mxu0 %v1452
  %1470 = vmatpush.bf16.msra.mxu0 %v1451
  %1471 = vmatpush.bf16.msra.mxu0 %v1450
  %1472 = vmatpush.bf16.msra.mxu0 %v1449
  %1473 = vmatmul.bf16.gmra.mxu0 %v1311
  %v1474 = vpop.f32.mrf.mxu0
  %v1475 = vadd.f32 %v1408, %v1474
  %v1476 = vpop.f32.mrf.mxu0
  %v1477 = vadd.f32 %v1410, %v1476
  %1478 = vmatmul.bf16.gmra.mxu0 %v1312
  %v1479 = vpop.f32.mrf.mxu0
  %v1480 = vadd.f32 %v1413, %v1479
  %v1481 = vpop.f32.mrf.mxu0
  %v1482 = vadd.f32 %v1415, %v1481
  %1483 = vdwg.mxu0
  %1484 = vmatpush.bf16.msra.mxu0 0
  %1485 = vmatpush.bf16.msra.mxu0 0
  %1486 = vmatpush.bf16.msra.mxu0 0
  %1487 = vmatpush.bf16.msra.mxu0 0
  %1488 = vmatpush.bf16.msra.mxu0 0
  %1489 = vmatpush.bf16.msra.mxu0 0
  %1490 = vmatpush.bf16.msra.mxu0 %v1275
  %1491 = vmatpush.bf16.msra.mxu0 %v1274
  %1492 = vmatmul.bf16.gmra.mxu0 %v296
  %v1493 = vpop.f32.mrf.mxu0
  %v1494 = vadd.f32 0.0, %v1493
  %v1495 = vpop.f32.mrf.mxu0
  %v1496 = vadd.f32 0.0, %v1495
  %1497 = vmatmul.bf16.gmra.mxu0 %v299
  %v1498 = vpop.f32.mrf.mxu0
  %v1499 = vadd.f32 0.0, %v1498
  %v1500 = vpop.f32.mrf.mxu0
  %v1501 = vadd.f32 0.0, %v1500
  %1502 = vdwg.mxu0
  %v1503 = vld [vmem:[%s2 + $0x2c0] sm:$0xf]
  %v1504 = vld [vmem:[%s2 + $0x2c4] sm:$0xf]
  %v1505 = vld [vmem:[%s2 + $0x2c8] sm:$0xf]
  %v1506 = vld [vmem:[%s2 + $0x2cc] sm:$0xf]
  %v1507 = vld [vmem:[%s2 + $0x2d0] sm:$0xf]
  %v1508 = vld [vmem:[%s2 + $0x2d4] sm:$0xf]
  %v1509 = vld [vmem:[%s2 + $0x2d8] sm:$0xf]
  %v1510 = vld [vmem:[%s2 + $0x2dc] sm:$0xf]
  %v1511 = vld [vmem:[%s2 + $0x2e0] sm:$0xf]
  %v1512 = vld [vmem:[%s2 + $0x2e4] sm:$0xf]
  %v1513 = vld [vmem:[%s2 + $0x2e8] sm:$0xf]
  %v1514 = vld [vmem:[%s2 + $0x2ec] sm:$0xf]
  %v1515 = vld [vmem:[%s2 + $0x2f0] sm:$0xf]
  %v1516 = vld [vmem:[%s2 + $0x2f4] sm:$0xf]
  %v1517 = vld [vmem:[%s2 + $0x2f8] sm:$0xf]
  %v1518 = vld [vmem:[%s2 + $0x2fc] sm:$0xf]
  %v1519 = vpack.c.bf16 %v1496, %v1494
  %v1520 = vpack.c.bf16 %v1501, %v1499
  %v1537 = vunpack.c.l.b16 %v1503
  %v1538 = vunpack.c.l.b16 %v1504
  %v1539 = vunpack.c.l.b16 %v1505
  %v1540 = vunpack.c.l.b16 %v1506
  %v1541 = vunpack.c.l.b16 %v1507
  %v1542 = vunpack.c.l.b16 %v1508
  %v1543 = vunpack.c.l.b16 %v1509
  %v1544 = vunpack.c.l.b16 %v1510
  %v1545 = vunpack.c.l.b16 %v1511
  %v1546 = vunpack.c.l.b16 %v1512
  %v1547 = vunpack.c.l.b16 %v1513
  %v1548 = vunpack.c.l.b16 %v1514
  %v1549 = vunpack.c.l.b16 %v1515
  %v1550 = vunpack.c.l.b16 %v1516
  %v1551 = vunpack.c.l.b16 %v1517
  %v1552 = vunpack.c.l.b16 %v1518
  %v1553 = vpack.c.b16 %v1538, %v1537
  %v1554 = vpack.c.b16 %v1540, %v1539
  %v1555 = vpack.c.b16 %v1542, %v1541
  %v1556 = vpack.c.b16 %v1544, %v1543
  %v1557 = vpack.c.b16 %v1546, %v1545
  %v1558 = vpack.c.b16 %v1548, %v1547
  %v1559 = vpack.c.b16 %v1550, %v1549
  %v1560 = vpack.c.b16 %v1552, %v1551
  %1569 = vmatpush.bf16.msra.mxu0 %v1560
  %1570 = vmatpush.bf16.msra.mxu0 %v1559
  %1571 = vmatpush.bf16.msra.mxu0 %v1558
  %1572 = vmatpush.bf16.msra.mxu0 %v1557
  %1573 = vmatpush.bf16.msra.mxu0 %v1556
  %1574 = vmatpush.bf16.msra.mxu0 %v1555
  %1575 = vmatpush.bf16.msra.mxu0 %v1554
  %1576 = vmatpush.bf16.msra.mxu0 %v1553
  %1577 = vmatmul.bf16.gmra.mxu0 %v1519
  %v1578 = vpop.f32.mrf.mxu0
  %v1579 = vadd.f32 0.0, %v1578
  %v1580 = vpop.f32.mrf.mxu0
  %v1581 = vadd.f32 0.0, %v1580
  %1582 = vmatmul.bf16.gmra.mxu0 %v1520
  %v1583 = vpop.f32.mrf.mxu0
  %v1584 = vadd.f32 0.0, %v1583
  %v1585 = vpop.f32.mrf.mxu0
  %v1586 = vadd.f32 0.0, %v1585
  %1587 = vdwg.mxu0
  %v1588 = vadd.f32 %v1475, %v1579
  %v1589 = vadd.f32 %v1477, %v1581
  %v1590 = vadd.f32 %v1480, %v1584
  %v1591 = vadd.f32 %v1482, %v1586
  %1592 = vmatpush.bf16.msra.mxu0 0
  %1593 = vmatpush.bf16.msra.mxu0 0
  %1594 = vmatpush.bf16.msra.mxu0 0
  %1595 = vmatpush.bf16.msra.mxu0 0
  %1596 = vmatpush.bf16.msra.mxu0 0
  %1597 = vmatpush.bf16.msra.mxu0 0
  %1598 = vmatpush.bf16.msra.mxu0 %v1275
  %1599 = vmatpush.bf16.msra.mxu0 %v1274
  %1600 = vmatmul.bf16.gmra.mxu0 %v424
  %v1601 = vpop.f32.mrf.mxu0
  %v1602 = vadd.f32 0.0, %v1601
  %v1603 = vpop.f32.mrf.mxu0
  %v1604 = vadd.f32 0.0, %v1603
  %1605 = vmatmul.bf16.gmra.mxu0 %v427
  %v1606 = vpop.f32.mrf.mxu0
  %v1607 = vadd.f32 0.0, %v1606
  %v1608 = vpop.f32.mrf.mxu0
  %v1609 = vadd.f32 0.0, %v1608
  %1610 = vdwg.mxu0
  %v1611 = vld [vmem:[%s2 + $0x300] sm:$0xf]
  %v1612 = vld [vmem:[%s2 + $0x304] sm:$0xf]
  %v1613 = vld [vmem:[%s2 + $0x308] sm:$0xf]
  %v1614 = vld [vmem:[%s2 + $0x30c] sm:$0xf]
  %v1615 = vld [vmem:[%s2 + $0x310] sm:$0xf]
  %v1616 = vld [vmem:[%s2 + $0x314] sm:$0xf]
  %v1617 = vld [vmem:[%s2 + $0x318] sm:$0xf]
  %v1618 = vld [vmem:[%s2 + $0x31c] sm:$0xf]
  %v1619 = vld [vmem:[%s2 + $0x320] sm:$0xf]
  %v1620 = vld [vmem:[%s2 + $0x324] sm:$0xf]
  %v1621 = vld [vmem:[%s2 + $0x328] sm:$0xf]
  %v1622 = vld [vmem:[%s2 + $0x32c] sm:$0xf]
  %v1623 = vld [vmem:[%s2 + $0x330] sm:$0xf]
  %v1624 = vld [vmem:[%s2 + $0x334] sm:$0xf]
  %v1625 = vld [vmem:[%s2 + $0x338] sm:$0xf]
  %v1626 = vld [vmem:[%s2 + $0x33c] sm:$0xf]
  %v1627 = vpack.c.bf16 %v1604, %v1602
  %v1628 = vpack.c.bf16 %v1609, %v1607
  %v1645 = vunpack.c.l.b16 %v1611
  %v1646 = vunpack.c.l.b16 %v1612
  %v1647 = vunpack.c.l.b16 %v1613
  %v1648 = vunpack.c.l.b16 %v1614
  %v1649 = vunpack.c.l.b16 %v1615
  %v1650 = vunpack.c.l.b16 %v1616
  %v1651 = vunpack.c.l.b16 %v1617
  %v1652 = vunpack.c.l.b16 %v1618
  %v1653 = vunpack.c.l.b16 %v1619
  %v1654 = vunpack.c.l.b16 %v1620
  %v1655 = vunpack.c.l.b16 %v1621
  %v1656 = vunpack.c.l.b16 %v1622
  %v1657 = vunpack.c.l.b16 %v1623
  %v1658 = vunpack.c.l.b16 %v1624
  %v1659 = vunpack.c.l.b16 %v1625
  %v1660 = vunpack.c.l.b16 %v1626
  %v1661 = vpack.c.b16 %v1646, %v1645
  %v1662 = vpack.c.b16 %v1648, %v1647
  %v1663 = vpack.c.b16 %v1650, %v1649
  %v1664 = vpack.c.b16 %v1652, %v1651
  %v1665 = vpack.c.b16 %v1654, %v1653
  %v1666 = vpack.c.b16 %v1656, %v1655
  %v1667 = vpack.c.b16 %v1658, %v1657
  %v1668 = vpack.c.b16 %v1660, %v1659
  %1677 = vmatpush.bf16.msra.mxu0 %v1668
  %1678 = vmatpush.bf16.msra.mxu0 %v1667
  %1679 = vmatpush.bf16.msra.mxu0 %v1666
  %1680 = vmatpush.bf16.msra.mxu0 %v1665
  %1681 = vmatpush.bf16.msra.mxu0 %v1664
  %1682 = vmatpush.bf16.msra.mxu0 %v1663
  %1683 = vmatpush.bf16.msra.mxu0 %v1662
  %1684 = vmatpush.bf16.msra.mxu0 %v1661
  %1685 = vmatmul.bf16.gmra.mxu0 %v1627
  %v1686 = vpop.f32.mrf.mxu0
  %v1687 = vadd.f32 0.0, %v1686
  %v1688 = vpop.f32.mrf.mxu0
  %v1689 = vadd.f32 0.0, %v1688
  %1690 = vmatmul.bf16.gmra.mxu0 %v1628
  %v1691 = vpop.f32.mrf.mxu0
  %v1692 = vadd.f32 0.0, %v1691
  %v1693 = vpop.f32.mrf.mxu0
  %v1694 = vadd.f32 0.0, %v1693
  %1695 = vdwg.mxu0
  %v1696 = vadd.f32 %v1588, %v1687
  %v1697 = vadd.f32 %v1589, %v1689
  %v1698 = vadd.f32 %v1590, %v1692
  %v1699 = vadd.f32 %v1591, %v1694
  %1700 = vmatpush.bf16.msra.mxu0 0
  %1701 = vmatpush.bf16.msra.mxu0 0
  %1702 = vmatpush.bf16.msra.mxu0 0
  %1703 = vmatpush.bf16.msra.mxu0 0
  %1704 = vmatpush.bf16.msra.mxu0 0
  %1705 = vmatpush.bf16.msra.mxu0 0
  %1706 = vmatpush.bf16.msra.mxu0 %v1275
  %1707 = vmatpush.bf16.msra.mxu0 %v1274
  %1708 = vmatmul.bf16.gmra.mxu0 %v552
  %v1709 = vpop.f32.mrf.mxu0
  %v1710 = vadd.f32 0.0, %v1709
  %v1711 = vpop.f32.mrf.mxu0
  %v1712 = vadd.f32 0.0, %v1711
  %1713 = vmatmul.bf16.gmra.mxu0 %v555
  %v1714 = vpop.f32.mrf.mxu0
  %v1715 = vadd.f32 0.0, %v1714
  %v1716 = vpop.f32.mrf.mxu0
  %v1717 = vadd.f32 0.0, %v1716
  %1718 = vdwg.mxu0
  %v1719 = vld [vmem:[%s2 + $0x340] sm:$0xf]
  %v1720 = vld [vmem:[%s2 + $0x344] sm:$0xf]
  %v1721 = vld [vmem:[%s2 + $0x348] sm:$0xf]
  %v1722 = vld [vmem:[%s2 + $0x34c] sm:$0xf]
  %v1723 = vld [vmem:[%s2 + $0x350] sm:$0xf]
  %v1724 = vld [vmem:[%s2 + $0x354] sm:$0xf]
  %v1725 = vld [vmem:[%s2 + $0x358] sm:$0xf]
  %v1726 = vld [vmem:[%s2 + $0x35c] sm:$0xf]
  %v1727 = vld [vmem:[%s2 + $0x360] sm:$0xf]
  %v1728 = vld [vmem:[%s2 + $0x364] sm:$0xf]
  %v1729 = vld [vmem:[%s2 + $0x368] sm:$0xf]
  %v1730 = vld [vmem:[%s2 + $0x36c] sm:$0xf]
  %v1731 = vld [vmem:[%s2 + $0x370] sm:$0xf]
  %v1732 = vld [vmem:[%s2 + $0x374] sm:$0xf]
  %v1733 = vld [vmem:[%s2 + $0x378] sm:$0xf]
  %v1734 = vld [vmem:[%s2 + $0x37c] sm:$0xf]
  %v1735 = vpack.c.bf16 %v1712, %v1710
  %v1736 = vpack.c.bf16 %v1717, %v1715
  %v1753 = vunpack.c.l.b16 %v1719
  %v1754 = vunpack.c.l.b16 %v1720
  %v1755 = vunpack.c.l.b16 %v1721
  %v1756 = vunpack.c.l.b16 %v1722
  %v1757 = vunpack.c.l.b16 %v1723
  %v1758 = vunpack.c.l.b16 %v1724
  %v1759 = vunpack.c.l.b16 %v1725
  %v1760 = vunpack.c.l.b16 %v1726
  %v1761 = vunpack.c.l.b16 %v1727
  %v1762 = vunpack.c.l.b16 %v1728
  %v1763 = vunpack.c.l.b16 %v1729
  %v1764 = vunpack.c.l.b16 %v1730
  %v1765 = vunpack.c.l.b16 %v1731
  %v1766 = vunpack.c.l.b16 %v1732
  %v1767 = vunpack.c.l.b16 %v1733
  %v1768 = vunpack.c.l.b16 %v1734
  %v1769 = vpack.c.b16 %v1754, %v1753
  %v1770 = vpack.c.b16 %v1756, %v1755
  %v1771 = vpack.c.b16 %v1758, %v1757
  %v1772 = vpack.c.b16 %v1760, %v1759
  %v1773 = vpack.c.b16 %v1762, %v1761
  %v1774 = vpack.c.b16 %v1764, %v1763
  %v1775 = vpack.c.b16 %v1766, %v1765
  %v1776 = vpack.c.b16 %v1768, %v1767
  %1785 = vmatpush.bf16.msra.mxu0 %v1776
  %1786 = vmatpush.bf16.msra.mxu0 %v1775
  %1787 = vmatpush.bf16.msra.mxu0 %v1774
  %1788 = vmatpush.bf16.msra.mxu0 %v1773
  %1789 = vmatpush.bf16.msra.mxu0 %v1772
  %1790 = vmatpush.bf16.msra.mxu0 %v1771
  %1791 = vmatpush.bf16.msra.mxu0 %v1770
  %1792 = vmatpush.bf16.msra.mxu0 %v1769
  %1793 = vmatmul.bf16.gmra.mxu0 %v1735
  %v1794 = vpop.f32.mrf.mxu0
  %v1795 = vadd.f32 0.0, %v1794
  %v1796 = vpop.f32.mrf.mxu0
  %v1797 = vadd.f32 0.0, %v1796
  %1798 = vmatmul.bf16.gmra.mxu0 %v1736
  %v1799 = vpop.f32.mrf.mxu0
  %v1800 = vadd.f32 0.0, %v1799
  %v1801 = vpop.f32.mrf.mxu0
  %v1802 = vadd.f32 0.0, %v1801
  %1803 = vdwg.mxu0
  %v1804 = vadd.f32 %v1696, %v1795
  %v1805 = vadd.f32 %v1697, %v1797
  %v1806 = vadd.f32 %v1698, %v1800
  %v1807 = vadd.f32 %v1699, %v1802
  %1808 = vmatpush.bf16.msra.mxu0 0
  %1809 = vmatpush.bf16.msra.mxu0 0
  %1810 = vmatpush.bf16.msra.mxu0 0
  %1811 = vmatpush.bf16.msra.mxu0 0
  %1812 = vmatpush.bf16.msra.mxu0 0
  %1813 = vmatpush.bf16.msra.mxu0 0
  %1814 = vmatpush.bf16.msra.mxu0 %v1275
  %1815 = vmatpush.bf16.msra.mxu0 %v1274
  %1816 = vmatmul.bf16.gmra.mxu0 %v680
  %v1817 = vpop.f32.mrf.mxu0
  %v1818 = vadd.f32 0.0, %v1817
  %v1819 = vpop.f32.mrf.mxu0
  %v1820 = vadd.f32 0.0, %v1819
  %1821 = vmatmul.bf16.gmra.mxu0 %v683
  %v1822 = vpop.f32.mrf.mxu0
  %v1823 = vadd.f32 0.0, %v1822
  %v1824 = vpop.f32.mrf.mxu0
  %v1825 = vadd.f32 0.0, %v1824
  %1826 = vdwg.mxu0
  %v1827 = vld [vmem:[%s2 + $0x380] sm:$0xf]
  %v1828 = vld [vmem:[%s2 + $0x384] sm:$0xf]
  %v1829 = vld [vmem:[%s2 + $0x388] sm:$0xf]
  %v1830 = vld [vmem:[%s2 + $0x38c] sm:$0xf]
  %v1831 = vld [vmem:[%s2 + $0x390] sm:$0xf]
  %v1832 = vld [vmem:[%s2 + $0x394] sm:$0xf]
  %v1833 = vld [vmem:[%s2 + $0x398] sm:$0xf]
  %v1834 = vld [vmem:[%s2 + $0x39c] sm:$0xf]
  %v1835 = vld [vmem:[%s2 + $0x3a0] sm:$0xf]
  %v1836 = vld [vmem:[%s2 + $0x3a4] sm:$0xf]
  %v1837 = vld [vmem:[%s2 + $0x3a8] sm:$0xf]
  %v1838 = vld [vmem:[%s2 + $0x3ac] sm:$0xf]
  %v1839 = vld [vmem:[%s2 + $0x3b0] sm:$0xf]
  %v1840 = vld [vmem:[%s2 + $0x3b4] sm:$0xf]
  %v1841 = vld [vmem:[%s2 + $0x3b8] sm:$0xf]
  %v1842 = vld [vmem:[%s2 + $0x3bc] sm:$0xf]
  %v1843 = vpack.c.bf16 %v1820, %v1818
  %v1844 = vpack.c.bf16 %v1825, %v1823
  %v1861 = vunpack.c.l.b16 %v1827
  %v1862 = vunpack.c.l.b16 %v1828
  %v1863 = vunpack.c.l.b16 %v1829
  %v1864 = vunpack.c.l.b16 %v1830
  %v1865 = vunpack.c.l.b16 %v1831
  %v1866 = vunpack.c.l.b16 %v1832
  %v1867 = vunpack.c.l.b16 %v1833
  %v1868 = vunpack.c.l.b16 %v1834
  %v1869 = vunpack.c.l.b16 %v1835
  %v1870 = vunpack.c.l.b16 %v1836
  %v1871 = vunpack.c.l.b16 %v1837
  %v1872 = vunpack.c.l.b16 %v1838
  %v1873 = vunpack.c.l.b16 %v1839
  %v1874 = vunpack.c.l.b16 %v1840
  %v1875 = vunpack.c.l.b16 %v1841
  %v1876 = vunpack.c.l.b16 %v1842
  %v1877 = vpack.c.b16 %v1862, %v1861
  %v1878 = vpack.c.b16 %v1864, %v1863
  %v1879 = vpack.c.b16 %v1866, %v1865
  %v1880 = vpack.c.b16 %v1868, %v1867
  %v1881 = vpack.c.b16 %v1870, %v1869
  %v1882 = vpack.c.b16 %v1872, %v1871
  %v1883 = vpack.c.b16 %v1874, %v1873
  %v1884 = vpack.c.b16 %v1876, %v1875
  %1893 = vmatpush.bf16.msra.mxu0 %v1884
  %1894 = vmatpush.bf16.msra.mxu0 %v1883
  %1895 = vmatpush.bf16.msra.mxu0 %v1882
  %1896 = vmatpush.bf16.msra.mxu0 %v1881
  %1897 = vmatpush.bf16.msra.mxu0 %v1880
  %1898 = vmatpush.bf16.msra.mxu0 %v1879
  %1899 = vmatpush.bf16.msra.mxu0 %v1878
  %1900 = vmatpush.bf16.msra.mxu0 %v1877
  %1901 = vmatmul.bf16.gmra.mxu0 %v1843
  %v1902 = vpop.f32.mrf.mxu0
  %v1903 = vadd.f32 0.0, %v1902
  %v1904 = vpop.f32.mrf.mxu0
  %v1905 = vadd.f32 0.0, %v1904
  %1906 = vmatmul.bf16.gmra.mxu0 %v1844
  %v1907 = vpop.f32.mrf.mxu0
  %v1908 = vadd.f32 0.0, %v1907
  %v1909 = vpop.f32.mrf.mxu0
  %v1910 = vadd.f32 0.0, %v1909
  %1911 = vdwg.mxu0
  %v1912 = vadd.f32 %v1804, %v1903
  %v1913 = vadd.f32 %v1805, %v1905
  %v1914 = vadd.f32 %v1806, %v1908
  %v1915 = vadd.f32 %v1807, %v1910
  %1916 = vmatpush.bf16.msra.mxu0 0
  %1917 = vmatpush.bf16.msra.mxu0 0
  %1918 = vmatpush.bf16.msra.mxu0 0
  %1919 = vmatpush.bf16.msra.mxu0 0
  %1920 = vmatpush.bf16.msra.mxu0 0
  %1921 = vmatpush.bf16.msra.mxu0 0
  %1922 = vmatpush.bf16.msra.mxu0 %v1275
  %1923 = vmatpush.bf16.msra.mxu0 %v1274
  %1924 = vmatmul.bf16.gmra.mxu0 %v808
  %v1925 = vpop.f32.mrf.mxu0
  %v1926 = vadd.f32 0.0, %v1925
  %v1927 = vpop.f32.mrf.mxu0
  %v1928 = vadd.f32 0.0, %v1927
  %1929 = vmatmul.bf16.gmra.mxu0 %v811
  %v1930 = vpop.f32.mrf.mxu0
  %v1931 = vadd.f32 0.0, %v1930
  %v1932 = vpop.f32.mrf.mxu0
  %v1933 = vadd.f32 0.0, %v1932
  %1934 = vdwg.mxu0
  %v1935 = vld [vmem:[%s2 + $0x3c0] sm:$0xf]
  %v1936 = vld [vmem:[%s2 + $0x3c4] sm:$0xf]
  %v1937 = vld [vmem:[%s2 + $0x3c8] sm:$0xf]
  %v1938 = vld [vmem:[%s2 + $0x3cc] sm:$0xf]
  %v1939 = vld [vmem:[%s2 + $0x3d0] sm:$0xf]
  %v1940 = vld [vmem:[%s2 + $0x3d4] sm:$0xf]
  %v1941 = vld [vmem:[%s2 + $0x3d8] sm:$0xf]
  %v1942 = vld [vmem:[%s2 + $0x3dc] sm:$0xf]
  %v1943 = vld [vmem:[%s2 + $0x3e0] sm:$0xf]
  %v1944 = vld [vmem:[%s2 + $0x3e4] sm:$0xf]
  %v1945 = vld [vmem:[%s2 + $0x3e8] sm:$0xf]
  %v1946 = vld [vmem:[%s2 + $0x3ec] sm:$0xf]
  %v1947 = vld [vmem:[%s2 + $0x3f0] sm:$0xf]
  %v1948 = vld [vmem:[%s2 + $0x3f4] sm:$0xf]
  %v1949 = vld [vmem:[%s2 + $0x3f8] sm:$0xf]
  %v1950 = vld [vmem:[%s2 + $0x3fc] sm:$0xf]
  %v1951 = vpack.c.bf16 %v1928, %v1926
  %v1952 = vpack.c.bf16 %v1933, %v1931
  %v1969 = vunpack.c.l.b16 %v1935
  %v1970 = vunpack.c.l.b16 %v1936
  %v1971 = vunpack.c.l.b16 %v1937
  %v1972 = vunpack.c.l.b16 %v1938
  %v1973 = vunpack.c.l.b16 %v1939
  %v1974 = vunpack.c.l.b16 %v1940
  %v1975 = vunpack.c.l.b16 %v1941
  %v1976 = vunpack.c.l.b16 %v1942
  %v1977 = vunpack.c.l.b16 %v1943
  %v1978 = vunpack.c.l.b16 %v1944
  %v1979 = vunpack.c.l.b16 %v1945
  %v1980 = vunpack.c.l.b16 %v1946
  %v1981 = vunpack.c.l.b16 %v1947
  %v1982 = vunpack.c.l.b16 %v1948
  %v1983 = vunpack.c.l.b16 %v1949
  %v1984 = vunpack.c.l.b16 %v1950
  %v1985 = vpack.c.b16 %v1970, %v1969
  %v1986 = vpack.c.b16 %v1972, %v1971
  %v1987 = vpack.c.b16 %v1974, %v1973
  %v1988 = vpack.c.b16 %v1976, %v1975
  %v1989 = vpack.c.b16 %v1978, %v1977
  %v1990 = vpack.c.b16 %v1980, %v1979
  %v1991 = vpack.c.b16 %v1982, %v1981
  %v1992 = vpack.c.b16 %v1984, %v1983
  %2001 = vmatpush.bf16.msra.mxu0 %v1992
  %2002 = vmatpush.bf16.msra.mxu0 %v1991
  %2003 = vmatpush.bf16.msra.mxu0 %v1990
  %2004 = vmatpush.bf16.msra.mxu0 %v1989
  %2005 = vmatpush.bf16.msra.mxu0 %v1988
  %2006 = vmatpush.bf16.msra.mxu0 %v1987
  %2007 = vmatpush.bf16.msra.mxu0 %v1986
  %2008 = vmatpush.bf16.msra.mxu0 %v1985
  %2009 = vmatmul.bf16.gmra.mxu0 %v1951
  %v2010 = vpop.f32.mrf.mxu0
  %v2011 = vadd.f32 0.0, %v2010
  %v2012 = vpop.f32.mrf.mxu0
  %v2013 = vadd.f32 0.0, %v2012
  %2014 = vmatmul.bf16.gmra.mxu0 %v1952
  %v2015 = vpop.f32.mrf.mxu0
  %v2016 = vadd.f32 0.0, %v2015
  %v2017 = vpop.f32.mrf.mxu0
  %v2018 = vadd.f32 0.0, %v2017
  %2019 = vdwg.mxu0
  %v2020 = vadd.f32 %v1912, %v2011
  %v2021 = vadd.f32 %v1913, %v2013
  %v2022 = vadd.f32 %v1914, %v2016
  %v2023 = vadd.f32 %v1915, %v2018
  %2024 = vmatpush.bf16.msra.mxu0 0
  %2025 = vmatpush.bf16.msra.mxu0 0
  %2026 = vmatpush.bf16.msra.mxu0 0
  %2027 = vmatpush.bf16.msra.mxu0 0
  %2028 = vmatpush.bf16.msra.mxu0 0
  %2029 = vmatpush.bf16.msra.mxu0 0
  %2030 = vmatpush.bf16.msra.mxu0 %v1275
  %2031 = vmatpush.bf16.msra.mxu0 %v1274
  %2032 = vmatmul.bf16.gmra.mxu0 %v936
  %v2033 = vpop.f32.mrf.mxu0
  %v2034 = vadd.f32 0.0, %v2033
  %v2035 = vpop.f32.mrf.mxu0
  %v2036 = vadd.f32 0.0, %v2035
  %2037 = vmatmul.bf16.gmra.mxu0 %v939
  %v2038 = vpop.f32.mrf.mxu0
  %v2039 = vadd.f32 0.0, %v2038
  %v2040 = vpop.f32.mrf.mxu0
  %v2041 = vadd.f32 0.0, %v2040
  %2042 = vdwg.mxu0
  %v2043 = vld [vmem:[%s2 + $0x400] sm:$0xf]
  %v2044 = vld [vmem:[%s2 + $0x404] sm:$0xf]
  %v2045 = vld [vmem:[%s2 + $0x408] sm:$0xf]
  %v2046 = vld [vmem:[%s2 + $0x40c] sm:$0xf]
  %v2047 = vld [vmem:[%s2 + $0x410] sm:$0xf]
  %v2048 = vld [vmem:[%s2 + $0x414] sm:$0xf]
  %v2049 = vld [vmem:[%s2 + $0x418] sm:$0xf]
  %v2050 = vld [vmem:[%s2 + $0x41c] sm:$0xf]
  %v2051 = vld [vmem:[%s2 + $0x420] sm:$0xf]
  %v2052 = vld [vmem:[%s2 + $0x424] sm:$0xf]
  %v2053 = vld [vmem:[%s2 + $0x428] sm:$0xf]
  %v2054 = vld [vmem:[%s2 + $0x42c] sm:$0xf]
  %v2055 = vld [vmem:[%s2 + $0x430] sm:$0xf]
  %v2056 = vld [vmem:[%s2 + $0x434] sm:$0xf]
  %v2057 = vld [vmem:[%s2 + $0x438] sm:$0xf]
  %v2058 = vld [vmem:[%s2 + $0x43c] sm:$0xf]
  %v2059 = vpack.c.bf16 %v2036, %v2034
  %v2060 = vpack.c.bf16 %v2041, %v2039
  %v2077 = vunpack.c.l.b16 %v2043
  %v2078 = vunpack.c.l.b16 %v2044
  %v2079 = vunpack.c.l.b16 %v2045
  %v2080 = vunpack.c.l.b16 %v2046
  %v2081 = vunpack.c.l.b16 %v2047
  %v2082 = vunpack.c.l.b16 %v2048
  %v2083 = vunpack.c.l.b16 %v2049
  %v2084 = vunpack.c.l.b16 %v2050
  %v2085 = vunpack.c.l.b16 %v2051
  %v2086 = vunpack.c.l.b16 %v2052
  %v2087 = vunpack.c.l.b16 %v2053
  %v2088 = vunpack.c.l.b16 %v2054
  %v2089 = vunpack.c.l.b16 %v2055
  %v2090 = vunpack.c.l.b16 %v2056
  %v2091 = vunpack.c.l.b16 %v2057
  %v2092 = vunpack.c.l.b16 %v2058
  %v2093 = vpack.c.b16 %v2078, %v2077
  %v2094 = vpack.c.b16 %v2080, %v2079
  %v2095 = vpack.c.b16 %v2082, %v2081
  %v2096 = vpack.c.b16 %v2084, %v2083
  %v2097 = vpack.c.b16 %v2086, %v2085
  %v2098 = vpack.c.b16 %v2088, %v2087
  %v2099 = vpack.c.b16 %v2090, %v2089
  %v2100 = vpack.c.b16 %v2092, %v2091
  %2109 = vmatpush.bf16.msra.mxu0 %v2100
  %2110 = vmatpush.bf16.msra.mxu0 %v2099
  %2111 = vmatpush.bf16.msra.mxu0 %v2098
  %2112 = vmatpush.bf16.msra.mxu0 %v2097
  %2113 = vmatpush.bf16.msra.mxu0 %v2096
  %2114 = vmatpush.bf16.msra.mxu0 %v2095
  %2115 = vmatpush.bf16.msra.mxu0 %v2094
  %2116 = vmatpush.bf16.msra.mxu0 %v2093
  %2117 = vmatmul.bf16.gmra.mxu0 %v2059
  %v2118 = vpop.f32.mrf.mxu0
  %v2119 = vadd.f32 0.0, %v2118
  %v2120 = vpop.f32.mrf.mxu0
  %v2121 = vadd.f32 0.0, %v2120
  %2122 = vmatmul.bf16.gmra.mxu0 %v2060
  %v2123 = vpop.f32.mrf.mxu0
  %v2124 = vadd.f32 0.0, %v2123
  %v2125 = vpop.f32.mrf.mxu0
  %v2126 = vadd.f32 0.0, %v2125
  %2127 = vdwg.mxu0
  %v2128 = vadd.f32 %v2020, %v2119
  %v2129 = vadd.f32 %v2021, %v2121
  %v2130 = vadd.f32 %v2022, %v2124
  %v2131 = vadd.f32 %v2023, %v2126
  %2132 = vmatpush.bf16.msra.mxu0 0
  %2133 = vmatpush.bf16.msra.mxu0 0
  %2134 = vmatpush.bf16.msra.mxu0 0
  %2135 = vmatpush.bf16.msra.mxu0 0
  %2136 = vmatpush.bf16.msra.mxu0 0
  %2137 = vmatpush.bf16.msra.mxu0 0
  %2138 = vmatpush.bf16.msra.mxu0 %v1275
  %2139 = vmatpush.bf16.msra.mxu0 %v1274
  %2140 = vmatmul.bf16.gmra.mxu0 %v1064
  %v2141 = vpop.f32.mrf.mxu0
  %v2142 = vadd.f32 0.0, %v2141
  %v2143 = vpop.f32.mrf.mxu0
  %v2144 = vadd.f32 0.0, %v2143
  %2145 = vmatmul.bf16.gmra.mxu0 %v1067
  %v2146 = vpop.f32.mrf.mxu0
  %v2147 = vadd.f32 0.0, %v2146
  %v2148 = vpop.f32.mrf.mxu0
  %v2149 = vadd.f32 0.0, %v2148
  %2150 = vdwg.mxu0
  %v2151 = vld [vmem:[%s2 + $0x440] sm:$0xf]
  %v2152 = vld [vmem:[%s2 + $0x444] sm:$0xf]
  %v2153 = vld [vmem:[%s2 + $0x448] sm:$0xf]
  %v2154 = vld [vmem:[%s2 + $0x44c] sm:$0xf]
  %v2155 = vld [vmem:[%s2 + $0x450] sm:$0xf]
  %v2156 = vld [vmem:[%s2 + $0x454] sm:$0xf]
  %v2157 = vld [vmem:[%s2 + $0x458] sm:$0xf]
  %v2158 = vld [vmem:[%s2 + $0x45c] sm:$0xf]
  %v2159 = vld [vmem:[%s2 + $0x460] sm:$0xf]
  %v2160 = vld [vmem:[%s2 + $0x464] sm:$0xf]
  %v2161 = vld [vmem:[%s2 + $0x468] sm:$0xf]
  %v2162 = vld [vmem:[%s2 + $0x46c] sm:$0xf]
  %v2163 = vld [vmem:[%s2 + $0x470] sm:$0xf]
  %v2164 = vld [vmem:[%s2 + $0x474] sm:$0xf]
  %v2165 = vld [vmem:[%s2 + $0x478] sm:$0xf]
  %v2166 = vld [vmem:[%s2 + $0x47c] sm:$0xf]
  %v2167 = vpack.c.bf16 %v2144, %v2142
  %v2168 = vpack.c.bf16 %v2149, %v2147
  %v2185 = vunpack.c.l.b16 %v2151
  %v2186 = vunpack.c.l.b16 %v2152
  %v2187 = vunpack.c.l.b16 %v2153
  %v2188 = vunpack.c.l.b16 %v2154
  %v2189 = vunpack.c.l.b16 %v2155
  %v2190 = vunpack.c.l.b16 %v2156
  %v2191 = vunpack.c.l.b16 %v2157
  %v2192 = vunpack.c.l.b16 %v2158
  %v2193 = vunpack.c.l.b16 %v2159
  %v2194 = vunpack.c.l.b16 %v2160
  %v2195 = vunpack.c.l.b16 %v2161
  %v2196 = vunpack.c.l.b16 %v2162
  %v2197 = vunpack.c.l.b16 %v2163
  %v2198 = vunpack.c.l.b16 %v2164
  %v2199 = vunpack.c.l.b16 %v2165
  %v2200 = vunpack.c.l.b16 %v2166
  %v2201 = vpack.c.b16 %v2186, %v2185
  %v2202 = vpack.c.b16 %v2188, %v2187
  %v2203 = vpack.c.b16 %v2190, %v2189
  %v2204 = vpack.c.b16 %v2192, %v2191
  %v2205 = vpack.c.b16 %v2194, %v2193
  %v2206 = vpack.c.b16 %v2196, %v2195
  %v2207 = vpack.c.b16 %v2198, %v2197
  %v2208 = vpack.c.b16 %v2200, %v2199
  %2217 = vmatpush.bf16.msra.mxu0 %v2208
  %2218 = vmatpush.bf16.msra.mxu0 %v2207
  %2219 = vmatpush.bf16.msra.mxu0 %v2206
  %2220 = vmatpush.bf16.msra.mxu0 %v2205
  %2221 = vmatpush.bf16.msra.mxu0 %v2204
  %2222 = vmatpush.bf16.msra.mxu0 %v2203
  %2223 = vmatpush.bf16.msra.mxu0 %v2202
  %2224 = vmatpush.bf16.msra.mxu0 %v2201
  %2225 = vmatmul.bf16.gmra.mxu0 %v2167
  %v2226 = vpop.f32.mrf.mxu0
  %v2227 = vadd.f32 0.0, %v2226
  %v2228 = vpop.f32.mrf.mxu0
  %v2229 = vadd.f32 0.0, %v2228
  %2230 = vmatmul.bf16.gmra.mxu0 %v2168
  %v2231 = vpop.f32.mrf.mxu0
  %v2232 = vadd.f32 0.0, %v2231
  %v2233 = vpop.f32.mrf.mxu0
  %v2234 = vadd.f32 0.0, %v2233
  %2235 = vdwg.mxu0
  %v2236 = vadd.f32 %v2128, %v2227
  %v2237 = vadd.f32 %v2129, %v2229
  %v2238 = vadd.f32 %v2130, %v2232
  %v2239 = vadd.f32 %v2131, %v2234
  %v2240 = vmax.f32 %v2236, 0.0
  %v2241 = vmax.f32 %v2237, 0.0
  %v2242 = vmax.f32 %v2238, 0.0
  %v2243 = vmax.f32 %v2239, 0.0
  %v2244 = vpack.c.bf16 %v2241, %v2240
  %v2245 = vpack.c.bf16 %v2243, %v2242
  %v2246 = vld [vmem:[%s3 + $0x40] sm:$0xf]
  %v2247 = vld [vmem:[%s3 + $0x44] sm:$0xf]
  %v2248 = vld [vmem:[%s3 + $0x48] sm:$0xf]
  %v2249 = vld [vmem:[%s3 + $0x4c] sm:$0xf]
  %v2250 = vld [vmem:[%s3 + $0x50] sm:$0xf]
  %v2251 = vld [vmem:[%s3 + $0x54] sm:$0xf]
  %v2252 = vld [vmem:[%s3 + $0x58] sm:$0xf]
  %v2253 = vld [vmem:[%s3 + $0x5c] sm:$0xf]
  %v2254 = vld [vmem:[%s3 + $0x60] sm:$0xf]
  %v2255 = vld [vmem:[%s3 + $0x64] sm:$0xf]
  %v2256 = vld [vmem:[%s3 + $0x68] sm:$0xf]
  %v2257 = vld [vmem:[%s3 + $0x6c] sm:$0xf]
  %v2258 = vld [vmem:[%s3 + $0x70] sm:$0xf]
  %v2259 = vld [vmem:[%s3 + $0x74] sm:$0xf]
  %v2260 = vld [vmem:[%s3 + $0x78] sm:$0xf]
  %v2261 = vld [vmem:[%s3 + $0x7c] sm:$0xf]
  %v2278 = vunpack.c.l.b16 %v2246
  %v2279 = vunpack.c.l.b16 %v2247
  %v2280 = vunpack.c.l.b16 %v2248
  %v2281 = vunpack.c.l.b16 %v2249
  %v2282 = vunpack.c.l.b16 %v2250
  %v2283 = vunpack.c.l.b16 %v2251
  %v2284 = vunpack.c.l.b16 %v2252
  %v2285 = vunpack.c.l.b16 %v2253
  %v2286 = vunpack.c.l.b16 %v2254
  %v2287 = vunpack.c.l.b16 %v2255
  %v2288 = vunpack.c.l.b16 %v2256
  %v2289 = vunpack.c.l.b16 %v2257
  %v2290 = vunpack.c.l.b16 %v2258
  %v2291 = vunpack.c.l.b16 %v2259
  %v2292 = vunpack.c.l.b16 %v2260
  %v2293 = vunpack.c.l.b16 %v2261
  %v2294 = vpack.c.b16 %v2279, %v2278
  %v2295 = vpack.c.b16 %v2281, %v2280
  %v2296 = vpack.c.b16 %v2283, %v2282
  %v2297 = vpack.c.b16 %v2285, %v2284
  %v2298 = vpack.c.b16 %v2287, %v2286
  %v2299 = vpack.c.b16 %v2289, %v2288
  %v2300 = vpack.c.b16 %v2291, %v2290
  %v2301 = vpack.c.b16 %v2293, %v2292
  %2310 = vmatpush.bf16.msra.mxu0 %v2301
  %2311 = vmatpush.bf16.msra.mxu0 %v2300
  %2312 = vmatpush.bf16.msra.mxu0 %v2299
  %2313 = vmatpush.bf16.msra.mxu0 %v2298
  %2314 = vmatpush.bf16.msra.mxu0 %v2297
  %2315 = vmatpush.bf16.msra.mxu0 %v2296
  %2316 = vmatpush.bf16.msra.mxu0 %v2295
  %2317 = vmatpush.bf16.msra.mxu0 %v2294
  %2318 = vmatmul.bf16.gmra.mxu0 %v2244
  %v2319 = vpop.f32.mrf.mxu0
  %v2320 = vadd.f32 0.0, %v2319
  %v2321 = vpop.f32.mrf.mxu0
  %v2322 = vadd.f32 0.0, %v2321
  %2323 = vmatmul.bf16.gmra.mxu0 %v2245
  %v2324 = vpop.f32.mrf.mxu0
  %v2325 = vadd.f32 0.0, %v2324
  %v2326 = vpop.f32.mrf.mxu0
  %v2327 = vadd.f32 0.0, %v2326
  %2328 = vdwg.mxu0
  %v2329 = vadd.f32 %v1266, %v2320
  %v2330 = vadd.f32 %v1267, %v2322
  %v2331 = vadd.f32 %v1268, %v2325
  %v2332 = vadd.f32 %v1269, %v2327
  %v2333 = vpack.c.bf16 %v2329, %v2329
  %v2334 = vpack.c.bf16 %v2330, %v2330
  %v2335 = vpack.c.bf16 %v2331, %v2331
  %v2336 = vpack.c.bf16 %v2332, %v2332
  %2337 = vst [vmem:[%s4] sm:$0xf] %v2333
  %2338 = vst [vmem:[%s4 + $0x4] sm:$0xf] %v2334
  %2339 = vst [vmem:[%s4 + $0x8] sm:$0xf] %v2335
  %2340 = vst [vmem:[%s4 + $0xc] sm:$0xf] %v2336
  // Predicated region
  $region18: #{bio_vae_forward.12} parent=0 // pred_check
    _
  $region19: #{bio_vae_forward.12} parent=0 // pred_check_branch
    %2342 = sbr.rel (0) target = $region21
  $region20: #{bio_vae_forward.12} parent=0 // pred_region
    _
  $region21: #{bio_vae_forward.12} parent=0 // pred_fallthru
    _
  // Predicated region
  $region22: #{bio_vae_forward.12} parent=0 // pred_check
    _
  $region23: #{bio_vae_forward.12} parent=0 // pred_check_branch
    %2344 = sbr.rel (0) target = $region25
  $region24: #{bio_vae_forward.12} parent=0 // pred_region
    _
  $region25: #{bio_vae_forward.12} parent=0 // pred_fallthru
    _

// kernel: bio_vae_forward.17
$region0: #{bio_vae_forward.17}
  #allocation0 [shape = 'u32[]', space=smem, size = 0x4, offset = 0x4, fixed_abs, tag = 'smem constant byte address 0x4 - core index']
  #allocation1 [shape = 'u32[72,128]{1,0:T(1,128)}', space=vmem, size = 0x9000, scoped, tag = 'internal scratch']
  %s0 = inlined_call_operand.vmem [shape: bf16[128,256], index: 0, kind: input, shape index: {}]
  %s1 = inlined_call_operand.vmem [shape: bf16[256,512], index: 1, kind: input, shape index: {}]
  %s2 = inlined_call_operand.vmem [shape: f32[1,512], index: 2, kind: input, shape index: {}]
  %s3 = inlined_call_operand.vmem [shape: f32[128,512], index: 3, kind: output, shape index: {}]
  %s4 = sld [smem:[#allocation0]]
  $region22: #{bio_vae_forward.17} parent=0
    _
  %s6 = ssub.s32 1, %s4
  %s7 = scalar_select 0, %s6, %s4
  // Predicated region
  $region2: #{bio_vae_forward.17} parent=0 // pred_check
    _
  $region3: #{bio_vae_forward.17} parent=0 // pred_check_branch
    %9 = sbr.rel (0) target = $region5
  $region4: #{bio_vae_forward.17} parent=0 // pred_region
    _
  $region5: #{bio_vae_forward.17} parent=0 // pred_fallthru
    _
  // Predicated region
  $region6: #{bio_vae_forward.17} parent=0 // pred_check
    _
  $region7: #{bio_vae_forward.17} parent=0 // pred_check_branch
    %11 = sbr.rel (0) target = $region9
  $region8: #{bio_vae_forward.17} parent=0 // pred_region
    _
  $region9: #{bio_vae_forward.17} parent=0 // pred_fallthru
    _
  // Predicated region
  $region10: #{bio_vae_forward.17} parent=0 // pred_check
    _
  $region11: #{bio_vae_forward.17} parent=0 // pred_check_branch
    %13 = sbr.rel (0) target = $region13
  $region12: #{bio_vae_forward.17} parent=0 // pred_region
    _
  $region13: #{bio_vae_forward.17} parent=0 // pred_fallthru
    _
  %v14 = vld [vmem:[%s0] sm:$0xff]
  %v15 = vld [vmem:[%s0 + $0x8] sm:$0xff]
  %v16 = vld [vmem:[%s0 + $0x10] sm:$0xff]
  %v17 = vld [vmem:[%s0 + $0x18] sm:$0xff]
  %v18 = vld [vmem:[%s0 + $0x20] sm:$0xff]
  %v19 = vld [vmem:[%s0 + $0x28] sm:$0xff]
  %v20 = vld [vmem:[%s0 + $0x30] sm:$0xff]
  %v21 = vld [vmem:[%s0 + $0x38] sm:$0xff]
  %v22 = vld [vmem:[%s0 + $0x40] sm:$0xff]
  %v23 = vld [vmem:[%s0 + $0x48] sm:$0xff]
  %v24 = vld [vmem:[%s0 + $0x50] sm:$0xff]
  %v25 = vld [vmem:[%s0 + $0x58] sm:$0xff]
  %v26 = vld [vmem:[%s0 + $0x60] sm:$0xff]
  %v27 = vld [vmem:[%s0 + $0x68] sm:$0xff]
  %v28 = vld [vmem:[%s0 + $0x70] sm:$0xff]
  %v29 = vld [vmem:[%s0 + $0x78] sm:$0xff]
  %v30 = vld [vmem:[%s1] sm:$0xff]
  %v31 = vld [vmem:[%s1 + $0x8] sm:$0xff]
  %v32 = vld [vmem:[%s1 + $0x10] sm:$0xff]
  %v33 = vld [vmem:[%s1 + $0x18] sm:$0xff]
  %v34 = vld [vmem:[%s1 + $0x20] sm:$0xff]
  %v35 = vld [vmem:[%s1 + $0x28] sm:$0xff]
  %v36 = vld [vmem:[%s1 + $0x30] sm:$0xff]
  %v37 = vld [vmem:[%s1 + $0x38] sm:$0xff]
  %v38 = vld [vmem:[%s1 + $0x40] sm:$0xff]
  %v39 = vld [vmem:[%s1 + $0x48] sm:$0xff]
  %v40 = vld [vmem:[%s1 + $0x50] sm:$0xff]
  %v41 = vld [vmem:[%s1 + $0x58] sm:$0xff]
  %v42 = vld [vmem:[%s1 + $0x60] sm:$0xff]
  %v43 = vld [vmem:[%s1 + $0x68] sm:$0xff]
  %v44 = vld [vmem:[%s1 + $0x70] sm:$0xff]
  %v45 = vld [vmem:[%s1 + $0x78] sm:$0xff]
  %v46 = vld [vmem:[%s1 + $0x80] sm:$0xff]
  %v47 = vld [vmem:[%s1 + $0x88] sm:$0xff]
  %v48 = vld [vmem:[%s1 + $0x90] sm:$0xff]
  %v49 = vld [vmem:[%s1 + $0x98] sm:$0xff]
  %v50 = vld [vmem:[%s1 + $0xa0] sm:$0xff]
  %v51 = vld [vmem:[%s1 + $0xa8] sm:$0xff]
  %v52 = vld [vmem:[%s1 + $0xb0] sm:$0xff]
  %v53 = vld [vmem:[%s1 + $0xb8] sm:$0xff]
  %v54 = vld [vmem:[%s1 + $0xc0] sm:$0xff]
  %v55 = vld [vmem:[%s1 + $0xc8] sm:$0xff]
  %v56 = vld [vmem:[%s1 + $0xd0] sm:$0xff]
  %v57 = vld [vmem:[%s1 + $0xd8] sm:$0xff]
  %v58 = vld [vmem:[%s1 + $0xe0] sm:$0xff]
  %v59 = vld [vmem:[%s1 + $0xe8] sm:$0xff]
  %v60 = vld [vmem:[%s1 + $0xf0] sm:$0xff]
  %v61 = vld [vmem:[%s1 + $0xf8] sm:$0xff]
  %v62 = vld [vmem:[%s1 + $0x100] sm:$0xff]
  %v63 = vld [vmem:[%s1 + $0x108] sm:$0xff]
  %v64 = vld [vmem:[%s1 + $0x110] sm:$0xff]
  %v65 = vld [vmem:[%s1 + $0x118] sm:$0xff]
  %v66 = vld [vmem:[%s1 + $0x120] sm:$0xff]
  %v67 = vld [vmem:[%s1 + $0x128] sm:$0xff]
  %v68 = vld [vmem:[%s1 + $0x130] sm:$0xff]
  %v69 = vld [vmem:[%s1 + $0x138] sm:$0xff]
  %v70 = vld [vmem:[%s1 + $0x140] sm:$0xff]
  %v71 = vld [vmem:[%s1 + $0x148] sm:$0xff]
  %v72 = vld [vmem:[%s1 + $0x150] sm:$0xff]
  %v73 = vld [vmem:[%s1 + $0x158] sm:$0xff]
  %v74 = vld [vmem:[%s1 + $0x160] sm:$0xff]
  %v75 = vld [vmem:[%s1 + $0x168] sm:$0xff]
  %v76 = vld [vmem:[%s1 + $0x170] sm:$0xff]
  %v77 = vld [vmem:[%s1 + $0x178] sm:$0xff]
  %v78 = vld [vmem:[%s1 + $0x180] sm:$0xff]
  %v79 = vld [vmem:[%s1 + $0x188] sm:$0xff]
  %v80 = vld [vmem:[%s1 + $0x190] sm:$0xff]
  %v81 = vld [vmem:[%s1 + $0x198] sm:$0xff]
  %v82 = vld [vmem:[%s1 + $0x1a0] sm:$0xff]
  %v83 = vld [vmem:[%s1 + $0x1a8] sm:$0xff]
  %v84 = vld [vmem:[%s1 + $0x1b0] sm:$0xff]
  %v85 = vld [vmem:[%s1 + $0x1b8] sm:$0xff]
  %v86 = vld [vmem:[%s1 + $0x1c0] sm:$0xff]
  %v87 = vld [vmem:[%s1 + $0x1c8] sm:$0xff]
  %v88 = vld [vmem:[%s1 + $0x1d0] sm:$0xff]
  %v89 = vld [vmem:[%s1 + $0x1d8] sm:$0xff]
  %v90 = vld [vmem:[%s1 + $0x1e0] sm:$0xff]
  %v91 = vld [vmem:[%s1 + $0x1e8] sm:$0xff]
  %v92 = vld [vmem:[%s1 + $0x1f0] sm:$0xff]
  %v93 = vld [vmem:[%s1 + $0x1f8] sm:$0xff]
  %v94 = vld [vmem:[%s2] sm:$0xf]
  %v96 = vperm.slane %v94, 0
  %v97 = vperm.slane %v94, 1
  %v98 = vperm.slane %v94, 2
  %v99 = vperm.slane %v94, 3
  %v120 = vunpack.c.l.b16 %v14
  %v121 = vunpack.c.h.b16 %v14
  %v122 = vunpack.c.l.b16 %v15
  %v123 = vunpack.c.h.b16 %v15
  %v124 = vunpack.c.l.b16 %v16
  %v125 = vunpack.c.h.b16 %v16
  %v126 = vunpack.c.l.b16 %v17
  %v127 = vunpack.c.h.b16 %v17
  %v128 = vunpack.c.l.b16 %v18
  %v129 = vunpack.c.h.b16 %v18
  %v130 = vunpack.c.l.b16 %v19
  %v131 = vunpack.c.h.b16 %v19
  %v132 = vunpack.c.l.b16 %v20
  %v133 = vunpack.c.h.b16 %v20
  %v134 = vunpack.c.l.b16 %v21
  %v135 = vunpack.c.h.b16 %v21
  %v136 = vunpack.c.l.b16 %v22
  %v137 = vunpack.c.h.b16 %v22
  %v138 = vunpack.c.l.b16 %v23
  %v139 = vunpack.c.h.b16 %v23
  %v140 = vunpack.c.l.b16 %v24
  %v141 = vunpack.c.h.b16 %v24
  %v142 = vunpack.c.l.b16 %v25
  %v143 = vunpack.c.h.b16 %v25
  %v144 = vunpack.c.l.b16 %v26
  %v145 = vunpack.c.h.b16 %v26
  %v146 = vunpack.c.l.b16 %v27
  %v147 = vunpack.c.h.b16 %v27
  %v148 = vunpack.c.l.b16 %v28
  %v149 = vunpack.c.h.b16 %v28
  %v150 = vunpack.c.l.b16 %v29
  %v151 = vunpack.c.h.b16 %v29
  %v152 = vpack.c.b16 %v122, %v120
  %v153 = vpack.c.b16 %v123, %v121
  %v154 = vpack.c.b16 %v126, %v124
  %v155 = vpack.c.b16 %v127, %v125
  %v156 = vpack.c.b16 %v130, %v128
  %v157 = vpack.c.b16 %v131, %v129
  %v158 = vpack.c.b16 %v134, %v132
  %v159 = vpack.c.b16 %v135, %v133
  %v160 = vpack.c.b16 %v138, %v136
  %v161 = vpack.c.b16 %v139, %v137
  %v162 = vpack.c.b16 %v142, %v140
  %v163 = vpack.c.b16 %v143, %v141
  %v164 = vpack.c.b16 %v146, %v144
  %v165 = vpack.c.b16 %v147, %v145
  %v166 = vpack.c.b16 %v150, %v148
  %v167 = vpack.c.b16 %v151, %v149
  %v248 = vunpack.c.l.b16 %v30
  %v249 = vunpack.c.h.b16 %v30
  %v250 = vunpack.c.l.b16 %v31
  %v251 = vunpack.c.h.b16 %v31
  %v252 = vunpack.c.l.b16 %v32
  %v253 = vunpack.c.h.b16 %v32
  %v254 = vunpack.c.l.b16 %v33
  %v255 = vunpack.c.h.b16 %v33
  %v256 = vunpack.c.l.b16 %v34
  %v257 = vunpack.c.h.b16 %v34
  %v258 = vunpack.c.l.b16 %v35
  %v259 = vunpack.c.h.b16 %v35
  %v260 = vunpack.c.l.b16 %v36
  %v261 = vunpack.c.h.b16 %v36
  %v262 = vunpack.c.l.b16 %v37
  %v263 = vunpack.c.h.b16 %v37
  %v264 = vunpack.c.l.b16 %v38
  %v265 = vunpack.c.h.b16 %v38
  %v266 = vunpack.c.l.b16 %v39
  %v267 = vunpack.c.h.b16 %v39
  %v268 = vunpack.c.l.b16 %v40
  %v269 = vunpack.c.h.b16 %v40
  %v270 = vunpack.c.l.b16 %v41
  %v271 = vunpack.c.h.b16 %v41
  %v272 = vunpack.c.l.b16 %v42
  %v273 = vunpack.c.h.b16 %v42
  %v274 = vunpack.c.l.b16 %v43
  %v275 = vunpack.c.h.b16 %v43
  %v276 = vunpack.c.l.b16 %v44
  %v277 = vunpack.c.h.b16 %v44
  %v278 = vunpack.c.l.b16 %v45
  %v279 = vunpack.c.h.b16 %v45
  %v280 = vunpack.c.l.b16 %v46
  %v281 = vunpack.c.h.b16 %v46
  %v282 = vunpack.c.l.b16 %v47
  %v283 = vunpack.c.h.b16 %v47
  %v284 = vunpack.c.l.b16 %v48
  %v285 = vunpack.c.h.b16 %v48
  %v286 = vunpack.c.l.b16 %v49
  %v287 = vunpack.c.h.b16 %v49
  %v288 = vunpack.c.l.b16 %v50
  %v289 = vunpack.c.h.b16 %v50
  %v290 = vunpack.c.l.b16 %v51
  %v291 = vunpack.c.h.b16 %v51
  %v292 = vunpack.c.l.b16 %v52
  %v293 = vunpack.c.h.b16 %v52
  %v294 = vunpack.c.l.b16 %v53
  %v295 = vunpack.c.h.b16 %v53
  %v296 = vunpack.c.l.b16 %v54
  %v297 = vunpack.c.h.b16 %v54
  %v298 = vunpack.c.l.b16 %v55
  %v299 = vunpack.c.h.b16 %v55
  %v300 = vunpack.c.l.b16 %v56
  %v301 = vunpack.c.h.b16 %v56
  %v302 = vunpack.c.l.b16 %v57
  %v303 = vunpack.c.h.b16 %v57
  %v304 = vunpack.c.l.b16 %v58
  %v305 = vunpack.c.h.b16 %v58
  %v306 = vunpack.c.l.b16 %v59
  %v307 = vunpack.c.h.b16 %v59
  %v308 = vunpack.c.l.b16 %v60
  %v309 = vunpack.c.h.b16 %v60
  %v310 = vunpack.c.l.b16 %v61
  %v311 = vunpack.c.h.b16 %v61
  %v312 = vunpack.c.l.b16 %v62
  %v313 = vunpack.c.h.b16 %v62
  %v314 = vunpack.c.l.b16 %v63
  %v315 = vunpack.c.h.b16 %v63
  %v316 = vunpack.c.l.b16 %v64
  %v317 = vunpack.c.h.b16 %v64
  %v318 = vunpack.c.l.b16 %v65
  %v319 = vunpack.c.h.b16 %v65
  %v320 = vunpack.c.l.b16 %v66
  %v321 = vunpack.c.h.b16 %v66
  %v322 = vunpack.c.l.b16 %v67
  %v323 = vunpack.c.h.b16 %v67
  %v324 = vunpack.c.l.b16 %v68
  %v325 = vunpack.c.h.b16 %v68
  %v326 = vunpack.c.l.b16 %v69
  %v327 = vunpack.c.h.b16 %v69
  %v328 = vunpack.c.l.b16 %v70
  %v329 = vunpack.c.h.b16 %v70
  %v330 = vunpack.c.l.b16 %v71
  %v331 = vunpack.c.h.b16 %v71
  %v332 = vunpack.c.l.b16 %v72
  %v333 = vunpack.c.h.b16 %v72
  %v334 = vunpack.c.l.b16 %v73
  %v335 = vunpack.c.h.b16 %v73
  %v336 = vunpack.c.l.b16 %v74
  %v337 = vunpack.c.h.b16 %v74
  %v338 = vunpack.c.l.b16 %v75
  %v339 = vunpack.c.h.b16 %v75
  %v340 = vunpack.c.l.b16 %v76
  %v341 = vunpack.c.h.b16 %v76
  %v342 = vunpack.c.l.b16 %v77
  %v343 = vunpack.c.h.b16 %v77
  %v344 = vunpack.c.l.b16 %v78
  %v345 = vunpack.c.h.b16 %v78
  %v346 = vunpack.c.l.b16 %v79
  %v347 = vunpack.c.h.b16 %v79
  %v348 = vunpack.c.l.b16 %v80
  %v349 = vunpack.c.h.b16 %v80
  %v350 = vunpack.c.l.b16 %v81
  %v351 = vunpack.c.h.b16 %v81
  %v352 = vunpack.c.l.b16 %v82
  %v353 = vunpack.c.h.b16 %v82
  %v354 = vunpack.c.l.b16 %v83
  %v355 = vunpack.c.h.b16 %v83
  %v356 = vunpack.c.l.b16 %v84
  %v357 = vunpack.c.h.b16 %v84
  %v358 = vunpack.c.l.b16 %v85
  %v359 = vunpack.c.h.b16 %v85
  %v360 = vunpack.c.l.b16 %v86
  %v361 = vunpack.c.h.b16 %v86
  %v362 = vunpack.c.l.b16 %v87
  %v363 = vunpack.c.h.b16 %v87
  %v364 = vunpack.c.l.b16 %v88
  %v365 = vunpack.c.h.b16 %v88
  %v366 = vunpack.c.l.b16 %v89
  %v367 = vunpack.c.h.b16 %v89
  %v368 = vunpack.c.l.b16 %v90
  %v369 = vunpack.c.h.b16 %v90
  %v370 = vunpack.c.l.b16 %v91
  %v371 = vunpack.c.h.b16 %v91
  %v372 = vunpack.c.l.b16 %v92
  %v373 = vunpack.c.h.b16 %v92
  %v374 = vunpack.c.l.b16 %v93
  %v375 = vunpack.c.h.b16 %v93
  %v376 = vpack.c.b16 %v252, %v248
  %v377 = vpack.c.b16 %v253, %v249
  %v378 = vpack.c.b16 %v254, %v250
  %v379 = vpack.c.b16 %v255, %v251
  %v380 = vpack.c.b16 %v260, %v256
  %v381 = vpack.c.b16 %v261, %v257
  %v382 = vpack.c.b16 %v262, %v258
  %v383 = vpack.c.b16 %v263, %v259
  %v384 = vpack.c.b16 %v268, %v264
  %v385 = vpack.c.b16 %v269, %v265
  %v386 = vpack.c.b16 %v270, %v266
  %v387 = vpack.c.b16 %v271, %v267
  %v388 = vpack.c.b16 %v276, %v272
  %v389 = vpack.c.b16 %v277, %v273
  %v390 = vpack.c.b16 %v278, %v274
  %v391 = vpack.c.b16 %v279, %v275
  %v392 = vpack.c.b16 %v284, %v280
  %v393 = vpack.c.b16 %v285, %v281
  %v394 = vpack.c.b16 %v286, %v282
  %v395 = vpack.c.b16 %v287, %v283
  %v396 = vpack.c.b16 %v292, %v288
  %v397 = vpack.c.b16 %v293, %v289
  %v398 = vpack.c.b16 %v294, %v290
  %v399 = vpack.c.b16 %v295, %v291
  %v400 = vpack.c.b16 %v300, %v296
  %v401 = vpack.c.b16 %v301, %v297
  %v402 = vpack.c.b16 %v302, %v298
  %v403 = vpack.c.b16 %v303, %v299
  %v404 = vpack.c.b16 %v308, %v304
  %v405 = vpack.c.b16 %v309, %v305
  %v406 = vpack.c.b16 %v310, %v306
  %v407 = vpack.c.b16 %v311, %v307
  %v408 = vpack.c.b16 %v316, %v312
  %v409 = vpack.c.b16 %v317, %v313
  %v410 = vpack.c.b16 %v318, %v314
  %v411 = vpack.c.b16 %v319, %v315
  %v412 = vpack.c.b16 %v324, %v320
  %v413 = vpack.c.b16 %v325, %v321
  %v414 = vpack.c.b16 %v326, %v322
  %v415 = vpack.c.b16 %v327, %v323
  %v416 = vpack.c.b16 %v332, %v328
  %v417 = vpack.c.b16 %v333, %v329
  %v418 = vpack.c.b16 %v334, %v330
  %v419 = vpack.c.b16 %v335, %v331
  %v420 = vpack.c.b16 %v340, %v336
  %v421 = vpack.c.b16 %v341, %v337
  %v422 = vpack.c.b16 %v342, %v338
  %v423 = vpack.c.b16 %v343, %v339
  %v424 = vpack.c.b16 %v348, %v344
  %v425 = vpack.c.b16 %v349, %v345
  %v426 = vpack.c.b16 %v350, %v346
  %v427 = vpack.c.b16 %v351, %v347
  %v428 = vpack.c.b16 %v356, %v352
  %v429 = vpack.c.b16 %v357, %v353
  %v430 = vpack.c.b16 %v358, %v354
  %v431 = vpack.c.b16 %v359, %v355
  %v432 = vpack.c.b16 %v364, %v360
  %v433 = vpack.c.b16 %v365, %v361
  %v434 = vpack.c.b16 %v366, %v362
  %v435 = vpack.c.b16 %v367, %v363
  %v436 = vpack.c.b16 %v372, %v368
  %v437 = vpack.c.b16 %v373, %v369
  %v438 = vpack.c.b16 %v374, %v370
  %v439 = vpack.c.b16 %v375, %v371
  %504 = vmatpush.bf16.msra.mxu0 %v404
  %505 = vmatpush.bf16.msra.mxu0 %v400
  %506 = vmatpush.bf16.msra.mxu0 %v396
  %507 = vmatpush.bf16.msra.mxu0 %v392
  %508 = vmatpush.bf16.msra.mxu0 %v388
  %509 = vmatpush.bf16.msra.mxu0 %v384
  %510 = vmatpush.bf16.msra.mxu0 %v380
  %511 = vmatpush.bf16.msra.mxu0 %v376
  %512 = vmatmul.bf16.gmra.mxu0 %v152
  %v513 = vpop.f32.mrf.mxu0
  %v514 = vadd.f32 %v96, %v513
  %v515 = vpop.f32.mrf.mxu0
  %v516 = vadd.f32 %v96, %v515
  %517 = vmatmul.bf16.gmra.mxu0 %v154
  %v518 = vpop.f32.mrf.mxu0
  %v519 = vadd.f32 %v96, %v518
  %v520 = vpop.f32.mrf.mxu0
  %v521 = vadd.f32 %v96, %v520
  %522 = vmatmul.bf16.gmra.mxu0 %v156
  %v523 = vpop.f32.mrf.mxu0
  %v524 = vadd.f32 %v96, %v523
  %v525 = vpop.f32.mrf.mxu0
  %v526 = vadd.f32 %v96, %v525
  %527 = vmatmul.bf16.gmra.mxu0 %v158
  %v528 = vpop.f32.mrf.mxu0
  %v529 = vadd.f32 %v96, %v528
  %v530 = vpop.f32.mrf.mxu0
  %v531 = vadd.f32 %v96, %v530
  %532 = vmatmul.bf16.gmra.mxu0 %v160
  %v533 = vpop.f32.mrf.mxu0
  %v534 = vadd.f32 %v96, %v533
  %v535 = vpop.f32.mrf.mxu0
  %v536 = vadd.f32 %v96, %v535
  %537 = vmatmul.bf16.gmra.mxu0 %v162
  %v538 = vpop.f32.mrf.mxu0
  %v539 = vadd.f32 %v96, %v538
  %v540 = vpop.f32.mrf.mxu0
  %v541 = vadd.f32 %v96, %v540
  %542 = vmatmul.bf16.gmra.mxu0 %v164
  %v543 = vpop.f32.mrf.mxu0
  %v544 = vadd.f32 %v96, %v543
  %v545 = vpop.f32.mrf.mxu0
  %v546 = vadd.f32 %v96, %v545
  %547 = vmatmul.bf16.gmra.mxu0 %v166
  %v548 = vpop.f32.mrf.mxu0
  %v549 = vadd.f32 %v96, %v548
  %v550 = vpop.f32.mrf.mxu0
  %v551 = vadd.f32 %v96, %v550
  %552 = vdwg.mxu0
  %553 = vmatpush.bf16.msra.mxu0 %v436
  %554 = vmatpush.bf16.msra.mxu0 %v432
  %555 = vmatpush.bf16.msra.mxu0 %v428
  %556 = vmatpush.bf16.msra.mxu0 %v424
  %557 = vmatpush.bf16.msra.mxu0 %v420
  %558 = vmatpush.bf16.msra.mxu0 %v416
  %559 = vmatpush.bf16.msra.mxu0 %v412
  %560 = vmatpush.bf16.msra.mxu0 %v408
  %561 = vmatmul.bf16.gmra.mxu0 %v153
  %v562 = vpop.f32.mrf.mxu0
  %v563 = vadd.f32 %v514, %v562
  %v564 = vpop.f32.mrf.mxu0
  %v565 = vadd.f32 %v516, %v564
  %566 = vmatmul.bf16.gmra.mxu0 %v155
  %v567 = vpop.f32.mrf.mxu0
  %v568 = vadd.f32 %v519, %v567
  %v569 = vpop.f32.mrf.mxu0
  %v570 = vadd.f32 %v521, %v569
  %571 = vmatmul.bf16.gmra.mxu0 %v157
  %v572 = vpop.f32.mrf.mxu0
  %v573 = vadd.f32 %v524, %v572
  %v574 = vpop.f32.mrf.mxu0
  %v575 = vadd.f32 %v526, %v574
  %576 = vmatmul.bf16.gmra.mxu0 %v159
  %v577 = vpop.f32.mrf.mxu0
  %v578 = vadd.f32 %v529, %v577
  %v579 = vpop.f32.mrf.mxu0
  %v580 = vadd.f32 %v531, %v579
  %581 = vmatmul.bf16.gmra.mxu0 %v161
  %v582 = vpop.f32.mrf.mxu0
  %v583 = vadd.f32 %v534, %v582
  %v584 = vpop.f32.mrf.mxu0
  %v585 = vadd.f32 %v536, %v584
  %586 = vmatmul.bf16.gmra.mxu0 %v163
  %v587 = vpop.f32.mrf.mxu0
  %v588 = vadd.f32 %v539, %v587
  %v589 = vpop.f32.mrf.mxu0
  %v590 = vadd.f32 %v541, %v589
  %591 = vmatmul.bf16.gmra.mxu0 %v165
  %v592 = vpop.f32.mrf.mxu0
  %v593 = vadd.f32 %v544, %v592
  %v594 = vpop.f32.mrf.mxu0
  %v595 = vadd.f32 %v546, %v594
  %596 = vmatmul.bf16.gmra.mxu0 %v167
  %v597 = vpop.f32.mrf.mxu0
  %v598 = vadd.f32 %v549, %v597
  %v599 = vpop.f32.mrf.mxu0
  %v600 = vadd.f32 %v551, %v599
  %601 = vdwg.mxu0
  %602 = vmatpush.bf16.msra.mxu0 %v405
  %603 = vmatpush.bf16.msra.mxu0 %v401
  %604 = vmatpush.bf16.msra.mxu0 %v397
  %605 = vmatpush.bf16.msra.mxu0 %v393
  %606 = vmatpush.bf16.msra.mxu0 %v389
  %607 = vmatpush.bf16.msra.mxu0 %v385
  %608 = vmatpush.bf16.msra.mxu0 %v381
  %609 = vmatpush.bf16.msra.mxu0 %v377
  %610 = vmatmul.bf16.gmra.mxu0 %v152
  %v611 = vpop.f32.mrf.mxu0
  %v612 = vadd.f32 %v97, %v611
  %v613 = vpop.f32.mrf.mxu0
  %v614 = vadd.f32 %v97, %v613
  %615 = vmatmul.bf16.gmra.mxu0 %v154
  %v616 = vpop.f32.mrf.mxu0
  %v617 = vadd.f32 %v97, %v616
  %v618 = vpop.f32.mrf.mxu0
  %v619 = vadd.f32 %v97, %v618
  %620 = vmatmul.bf16.gmra.mxu0 %v156
  %v621 = vpop.f32.mrf.mxu0
  %v622 = vadd.f32 %v97, %v621
  %v623 = vpop.f32.mrf.mxu0
  %v624 = vadd.f32 %v97, %v623
  %625 = vmatmul.bf16.gmra.mxu0 %v158
  %v626 = vpop.f32.mrf.mxu0
  %v627 = vadd.f32 %v97, %v626
  %v628 = vpop.f32.mrf.mxu0
  %v629 = vadd.f32 %v97, %v628
  %630 = vmatmul.bf16.gmra.mxu0 %v160
  %v631 = vpop.f32.mrf.mxu0
  %v632 = vadd.f32 %v97, %v631
  %v633 = vpop.f32.mrf.mxu0
  %v634 = vadd.f32 %v97, %v633
  %635 = vmatmul.bf16.gmra.mxu0 %v162
  %v636 = vpop.f32.mrf.mxu0
  %v637 = vadd.f32 %v97, %v636
  %v638 = vpop.f32.mrf.mxu0
  %v639 = vadd.f32 %v97, %v638
  %640 = vmatmul.bf16.gmra.mxu0 %v164
  %v641 = vpop.f32.mrf.mxu0
  %v642 = vadd.f32 %v97, %v641
  %v643 = vpop.f32.mrf.mxu0
  %v644 = vadd.f32 %v97, %v643
  %645 = vmatmul.bf16.gmra.mxu0 %v166
  %v646 = vpop.f32.mrf.mxu0
  %v647 = vadd.f32 %v97, %v646
  %v648 = vpop.f32.mrf.mxu0
  %v649 = vadd.f32 %v97, %v648
  %650 = vdwg.mxu0
  %651 = vmatpush.bf16.msra.mxu0 %v437
  %652 = vmatpush.bf16.msra.mxu0 %v433
  %653 = vmatpush.bf16.msra.mxu0 %v429
  %654 = vmatpush.bf16.msra.mxu0 %v425
  %655 = vmatpush.bf16.msra.mxu0 %v421
  %656 = vmatpush.bf16.msra.mxu0 %v417
  %657 = vmatpush.bf16.msra.mxu0 %v413
  %658 = vmatpush.bf16.msra.mxu0 %v409
  %659 = vmatmul.bf16.gmra.mxu0 %v153
  %v660 = vpop.f32.mrf.mxu0
  %v661 = vadd.f32 %v612, %v660
  %v662 = vpop.f32.mrf.mxu0
  %v663 = vadd.f32 %v614, %v662
  %664 = vmatmul.bf16.gmra.mxu0 %v155
  %v665 = vpop.f32.mrf.mxu0
  %v666 = vadd.f32 %v617, %v665
  %v667 = vpop.f32.mrf.mxu0
  %v668 = vadd.f32 %v619, %v667
  %669 = vmatmul.bf16.gmra.mxu0 %v157
  %v670 = vpop.f32.mrf.mxu0
  %v671 = vadd.f32 %v622, %v670
  %v672 = vpop.f32.mrf.mxu0
  %v673 = vadd.f32 %v624, %v672
  %674 = vmatmul.bf16.gmra.mxu0 %v159
  %v675 = vpop.f32.mrf.mxu0
  %v676 = vadd.f32 %v627, %v675
  %v677 = vpop.f32.mrf.mxu0
  %v678 = vadd.f32 %v629, %v677
  %679 = vmatmul.bf16.gmra.mxu0 %v161
  %v680 = vpop.f32.mrf.mxu0
  %v681 = vadd.f32 %v632, %v680
  %v682 = vpop.f32.mrf.mxu0
  %v683 = vadd.f32 %v634, %v682
  %684 = vmatmul.bf16.gmra.mxu0 %v163
  %v685 = vpop.f32.mrf.mxu0
  %v686 = vadd.f32 %v637, %v685
  %v687 = vpop.f32.mrf.mxu0
  %v688 = vadd.f32 %v639, %v687
  %689 = vmatmul.bf16.gmra.mxu0 %v165
  %v690 = vpop.f32.mrf.mxu0
  %v691 = vadd.f32 %v642, %v690
  %v692 = vpop.f32.mrf.mxu0
  %v693 = vadd.f32 %v644, %v692
  %694 = vmatmul.bf16.gmra.mxu0 %v167
  %v695 = vpop.f32.mrf.mxu0
  %v696 = vadd.f32 %v647, %v695
  %v697 = vpop.f32.mrf.mxu0
  %v698 = vadd.f32 %v649, %v697
  %699 = vdwg.mxu0
  %700 = vmatpush.bf16.msra.mxu0 %v406
  %701 = vmatpush.bf16.msra.mxu0 %v402
  %702 = vmatpush.bf16.msra.mxu0 %v398
  %703 = vmatpush.bf16.msra.mxu0 %v394
  %704 = vmatpush.bf16.msra.mxu0 %v390
  %705 = vmatpush.bf16.msra.mxu0 %v386
  %706 = vmatpush.bf16.msra.mxu0 %v382
  %707 = vmatpush.bf16.msra.mxu0 %v378
  %708 = vmatmul.bf16.gmra.mxu0 %v152
  %v709 = vpop.f32.mrf.mxu0
  %v710 = vadd.f32 %v98, %v709
  %v711 = vpop.f32.mrf.mxu0
  %v712 = vadd.f32 %v98, %v711
  %713 = vmatmul.bf16.gmra.mxu0 %v154
  %v714 = vpop.f32.mrf.mxu0
  %v715 = vadd.f32 %v98, %v714
  %v716 = vpop.f32.mrf.mxu0
  %v717 = vadd.f32 %v98, %v716
  %718 = vmatmul.bf16.gmra.mxu0 %v156
  %v719 = vpop.f32.mrf.mxu0
  %v720 = vadd.f32 %v98, %v719
  %v721 = vpop.f32.mrf.mxu0
  %v722 = vadd.f32 %v98, %v721
  %723 = vmatmul.bf16.gmra.mxu0 %v158
  %v724 = vpop.f32.mrf.mxu0
  %v725 = vadd.f32 %v98, %v724
  %v726 = vpop.f32.mrf.mxu0
  %v727 = vadd.f32 %v98, %v726
  %728 = vmatmul.bf16.gmra.mxu0 %v160
  %v729 = vpop.f32.mrf.mxu0
  %v730 = vadd.f32 %v98, %v729
  %v731 = vpop.f32.mrf.mxu0
  %v732 = vadd.f32 %v98, %v731
  %733 = vmatmul.bf16.gmra.mxu0 %v162
  %v734 = vpop.f32.mrf.mxu0
  %v735 = vadd.f32 %v98, %v734
  %v736 = vpop.f32.mrf.mxu0
  %v737 = vadd.f32 %v98, %v736
  %738 = vmatmul.bf16.gmra.mxu0 %v164
  %v739 = vpop.f32.mrf.mxu0
  %v740 = vadd.f32 %v98, %v739
  %v741 = vpop.f32.mrf.mxu0
  %v742 = vadd.f32 %v98, %v741
  %743 = vmatmul.bf16.gmra.mxu0 %v166
  %v744 = vpop.f32.mrf.mxu0
  %v745 = vadd.f32 %v98, %v744
  %v746 = vpop.f32.mrf.mxu0
  %v747 = vadd.f32 %v98, %v746
  %748 = vdwg.mxu0
  %749 = vmatpush.bf16.msra.mxu0 %v438
  %750 = vmatpush.bf16.msra.mxu0 %v434
  %751 = vmatpush.bf16.msra.mxu0 %v430
  %752 = vmatpush.bf16.msra.mxu0 %v426
  %753 = vmatpush.bf16.msra.mxu0 %v422
  %754 = vmatpush.bf16.msra.mxu0 %v418
  %755 = vmatpush.bf16.msra.mxu0 %v414
  %756 = vmatpush.bf16.msra.mxu0 %v410
  %757 = vmatmul.bf16.gmra.mxu0 %v153
  %v758 = vpop.f32.mrf.mxu0
  %v759 = vadd.f32 %v710, %v758
  %v760 = vpop.f32.mrf.mxu0
  %v761 = vadd.f32 %v712, %v760
  %762 = vmatmul.bf16.gmra.mxu0 %v155
  %v763 = vpop.f32.mrf.mxu0
  %v764 = vadd.f32 %v715, %v763
  %v765 = vpop.f32.mrf.mxu0
  %v766 = vadd.f32 %v717, %v765
  %767 = vmatmul.bf16.gmra.mxu0 %v157
  %v768 = vpop.f32.mrf.mxu0
  %v769 = vadd.f32 %v720, %v768
  %v770 = vpop.f32.mrf.mxu0
  %v771 = vadd.f32 %v722, %v770
  %772 = vmatmul.bf16.gmra.mxu0 %v159
  %v773 = vpop.f32.mrf.mxu0
  %v774 = vadd.f32 %v725, %v773
  %v775 = vpop.f32.mrf.mxu0
  %v776 = vadd.f32 %v727, %v775
  %777 = vmatmul.bf16.gmra.mxu0 %v161
  %v778 = vpop.f32.mrf.mxu0
  %v779 = vadd.f32 %v730, %v778
  %v780 = vpop.f32.mrf.mxu0
  %v781 = vadd.f32 %v732, %v780
  %782 = vmatmul.bf16.gmra.mxu0 %v163
  %v783 = vpop.f32.mrf.mxu0
  %v784 = vadd.f32 %v735, %v783
  %v785 = vpop.f32.mrf.mxu0
  %v786 = vadd.f32 %v737, %v785
  %787 = vmatmul.bf16.gmra.mxu0 %v165
  %v788 = vpop.f32.mrf.mxu0
  %v789 = vadd.f32 %v740, %v788
  %v790 = vpop.f32.mrf.mxu0
  %v791 = vadd.f32 %v742, %v790
  %792 = vmatmul.bf16.gmra.mxu0 %v167
  %v793 = vpop.f32.mrf.mxu0
  %v794 = vadd.f32 %v745, %v793
  %v795 = vpop.f32.mrf.mxu0
  %v796 = vadd.f32 %v747, %v795
  %797 = vdwg.mxu0
  %798 = vmatpush.bf16.msra.mxu0 %v407
  %799 = vmatpush.bf16.msra.mxu0 %v403
  %800 = vmatpush.bf16.msra.mxu0 %v399
  %801 = vmatpush.bf16.msra.mxu0 %v395
  %802 = vmatpush.bf16.msra.mxu0 %v391
  %803 = vmatpush.bf16.msra.mxu0 %v387
  %804 = vmatpush.bf16.msra.mxu0 %v383
  %805 = vmatpush.bf16.msra.mxu0 %v379
  %806 = vmatmul.bf16.gmra.mxu0 %v152
  %v807 = vpop.f32.mrf.mxu0
  %v808 = vadd.f32 %v99, %v807
  %v809 = vpop.f32.mrf.mxu0
  %v810 = vadd.f32 %v99, %v809
  %811 = vmatmul.bf16.gmra.mxu0 %v154
  %v812 = vpop.f32.mrf.mxu0
  %v813 = vadd.f32 %v99, %v812
  %v814 = vpop.f32.mrf.mxu0
  %v815 = vadd.f32 %v99, %v814
  %816 = vmatmul.bf16.gmra.mxu0 %v156
  %v817 = vpop.f32.mrf.mxu0
  %v818 = vadd.f32 %v99, %v817
  %v819 = vpop.f32.mrf.mxu0
  %v820 = vadd.f32 %v99, %v819
  %821 = vmatmul.bf16.gmra.mxu0 %v158
  %v822 = vpop.f32.mrf.mxu0
  %v823 = vadd.f32 %v99, %v822
  %v824 = vpop.f32.mrf.mxu0
  %v825 = vadd.f32 %v99, %v824
  %826 = vmatmul.bf16.gmra.mxu0 %v160
  %v827 = vpop.f32.mrf.mxu0
  %v828 = vadd.f32 %v99, %v827
  %v829 = vpop.f32.mrf.mxu0
  %v830 = vadd.f32 %v99, %v829
  %831 = vmatmul.bf16.gmra.mxu0 %v162
  %v832 = vpop.f32.mrf.mxu0
  %v833 = vadd.f32 %v99, %v832
  %v834 = vpop.f32.mrf.mxu0
  %v835 = vadd.f32 %v99, %v834
  %836 = vmatmul.bf16.gmra.mxu0 %v164
  %v837 = vpop.f32.mrf.mxu0
  %v838 = vadd.f32 %v99, %v837
  %v839 = vpop.f32.mrf.mxu0
  %v840 = vadd.f32 %v99, %v839
  %841 = vmatmul.bf16.gmra.mxu0 %v166
  %v842 = vpop.f32.mrf.mxu0
  %v843 = vadd.f32 %v99, %v842
  %v844 = vpop.f32.mrf.mxu0
  %v845 = vadd.f32 %v99, %v844
  %846 = vdwg.mxu0
  %847 = vmatpush.bf16.msra.mxu0 %v439
  %848 = vmatpush.bf16.msra.mxu0 %v435
  %849 = vmatpush.bf16.msra.mxu0 %v431
  %850 = vmatpush.bf16.msra.mxu0 %v427
  %851 = vmatpush.bf16.msra.mxu0 %v423
  %852 = vmatpush.bf16.msra.mxu0 %v419
  %853 = vmatpush.bf16.msra.mxu0 %v415
  %854 = vmatpush.bf16.msra.mxu0 %v411
  %855 = vmatmul.bf16.gmra.mxu0 %v153
  %v856 = vpop.f32.mrf.mxu0
  %v857 = vadd.f32 %v808, %v856
  %v858 = vpop.f32.mrf.mxu0
  %v859 = vadd.f32 %v810, %v858
  %860 = vmatmul.bf16.gmra.mxu0 %v155
  %v861 = vpop.f32.mrf.mxu0
  %v862 = vadd.f32 %v813, %v861
  %v863 = vpop.f32.mrf.mxu0
  %v864 = vadd.f32 %v815, %v863
  %865 = vmatmul.bf16.gmra.mxu0 %v157
  %v866 = vpop.f32.mrf.mxu0
  %v867 = vadd.f32 %v818, %v866
  %v868 = vpop.f32.mrf.mxu0
  %v869 = vadd.f32 %v820, %v868
  %870 = vmatmul.bf16.gmra.mxu0 %v159
  %v871 = vpop.f32.mrf.mxu0
  %v872 = vadd.f32 %v823, %v871
  %v873 = vpop.f32.mrf.mxu0
  %v874 = vadd.f32 %v825, %v873
  %875 = vmatmul.bf16.gmra.mxu0 %v161
  %v876 = vpop.f32.mrf.mxu0
  %v877 = vadd.f32 %v828, %v876
  %v878 = vpop.f32.mrf.mxu0
  %v879 = vadd.f32 %v830, %v878
  %880 = vmatmul.bf16.gmra.mxu0 %v163
  %v881 = vpop.f32.mrf.mxu0
  %v882 = vadd.f32 %v833, %v881
  %v883 = vpop.f32.mrf.mxu0
  %v884 = vadd.f32 %v835, %v883
  %885 = vmatmul.bf16.gmra.mxu0 %v165
  %v886 = vpop.f32.mrf.mxu0
  %v887 = vadd.f32 %v838, %v886
  %v888 = vpop.f32.mrf.mxu0
  %v889 = vadd.f32 %v840, %v888
  %890 = vmatmul.bf16.gmra.mxu0 %v167
  %v891 = vpop.f32.mrf.mxu0
  %v892 = vadd.f32 %v843, %v891
  %v893 = vpop.f32.mrf.mxu0
  %v894 = vadd.f32 %v845, %v893
  %895 = vdwg.mxu0
  %896 = vst [vmem:[%s3] sm:$0xff] %v563
  %897 = vst [vmem:[%s3 + $0x8] sm:$0xff] %v661
  %898 = vst [vmem:[%s3 + $0x10] sm:$0xff] %v759
  %899 = vst [vmem:[%s3 + $0x18] sm:$0xff] %v857
  %900 = vst [vmem:[%s3 + $0x20] sm:$0xff] %v565
  %901 = vst [vmem:[%s3 + $0x28] sm:$0xff] %v663
  %902 = vst [vmem:[%s3 + $0x30] sm:$0xff] %v761
  %903 = vst [vmem:[%s3 + $0x38] sm:$0xff] %v859
  %904 = vst [vmem:[%s3 + $0x40] sm:$0xff] %v568
  %905 = vst [vmem:[%s3 + $0x48] sm:$0xff] %v666
  %906 = vst [vmem:[%s3 + $0x50] sm:$0xff] %v764
  %907 = vst [vmem:[%s3 + $0x58] sm:$0xff] %v862
  %908 = vst [vmem:[%s3 + $0x60] sm:$0xff] %v570
  %909 = vst [vmem:[%s3 + $0x68] sm:$0xff] %v668
  %910 = vst [vmem:[%s3 + $0x70] sm:$0xff] %v766
  %911 = vst [vmem:[%s3 + $0x78] sm:$0xff] %v864
  %912 = vst [vmem:[%s3 + $0x80] sm:$0xff] %v573
  %913 = vst [vmem:[%s3 + $0x88] sm:$0xff] %v671
  %914 = vst [vmem:[%s3 + $0x90] sm:$0xff] %v769
  %915 = vst [vmem:[%s3 + $0x98] sm:$0xff] %v867
  %916 = vst [vmem:[%s3 + $0xa0] sm:$0xff] %v575
  %917 = vst [vmem:[%s3 + $0xa8] sm:$0xff] %v673
  %918 = vst [vmem:[%s3 + $0xb0] sm:$0xff] %v771
  %919 = vst [vmem:[%s3 + $0xb8] sm:$0xff] %v869
  %920 = vst [vmem:[%s3 + $0xc0] sm:$0xff] %v578
  %921 = vst [vmem:[%s3 + $0xc8] sm:$0xff] %v676
  %922 = vst [vmem:[%s3 + $0xd0] sm:$0xff] %v774
  %923 = vst [vmem:[%s3 + $0xd8] sm:$0xff] %v872
  %924 = vst [vmem:[%s3 + $0xe0] sm:$0xff] %v580
  %925 = vst [vmem:[%s3 + $0xe8] sm:$0xff] %v678
  %926 = vst [vmem:[%s3 + $0xf0] sm:$0xff] %v776
  %927 = vst [vmem:[%s3 + $0xf8] sm:$0xff] %v874
  %928 = vst [vmem:[%s3 + $0x100] sm:$0xff] %v583
  %929 = vst [vmem:[%s3 + $0x108] sm:$0xff] %v681
  %930 = vst [vmem:[%s3 + $0x110] sm:$0xff] %v779
  %931 = vst [vmem:[%s3 + $0x118] sm:$0xff] %v877
  %932 = vst [vmem:[%s3 + $0x120] sm:$0xff] %v585
  %933 = vst [vmem:[%s3 + $0x128] sm:$0xff] %v683
  %934 = vst [vmem:[%s3 + $0x130] sm:$0xff] %v781
  %935 = vst [vmem:[%s3 + $0x138] sm:$0xff] %v879
  %936 = vst [vmem:[%s3 + $0x140] sm:$0xff] %v588
  %937 = vst [vmem:[%s3 + $0x148] sm:$0xff] %v686
  %938 = vst [vmem:[%s3 + $0x150] sm:$0xff] %v784
  %939 = vst [vmem:[%s3 + $0x158] sm:$0xff] %v882
  %940 = vst [vmem:[%s3 + $0x160] sm:$0xff] %v590
  %941 = vst [vmem:[%s3 + $0x168] sm:$0xff] %v688
  %942 = vst [vmem:[%s3 + $0x170] sm:$0xff] %v786
  %943 = vst [vmem:[%s3 + $0x178] sm:$0xff] %v884
  %944 = vst [vmem:[%s3 + $0x180] sm:$0xff] %v593
  %945 = vst [vmem:[%s3 + $0x188] sm:$0xff] %v691
  %946 = vst [vmem:[%s3 + $0x190] sm:$0xff] %v789
  %947 = vst [vmem:[%s3 + $0x198] sm:$0xff] %v887
  %948 = vst [vmem:[%s3 + $0x1a0] sm:$0xff] %v595
  %949 = vst [vmem:[%s3 + $0x1a8] sm:$0xff] %v693
  %950 = vst [vmem:[%s3 + $0x1b0] sm:$0xff] %v791
  %951 = vst [vmem:[%s3 + $0x1b8] sm:$0xff] %v889
  %952 = vst [vmem:[%s3 + $0x1c0] sm:$0xff] %v598
  %953 = vst [vmem:[%s3 + $0x1c8] sm:$0xff] %v696
  %954 = vst [vmem:[%s3 + $0x1d0] sm:$0xff] %v794
  %955 = vst [vmem:[%s3 + $0x1d8] sm:$0xff] %v892
  %956 = vst [vmem:[%s3 + $0x1e0] sm:$0xff] %v600
  %957 = vst [vmem:[%s3 + $0x1e8] sm:$0xff] %v698
  %958 = vst [vmem:[%s3 + $0x1f0] sm:$0xff] %v796
  %959 = vst [vmem:[%s3 + $0x1f8] sm:$0xff] %v894
  // Predicated region
  $region14: #{bio_vae_forward.17} parent=0 // pred_check
    _
  $region15: #{bio_vae_forward.17} parent=0 // pred_check_branch
    %961 = sbr.rel (0) target = $region17
  $region16: #{bio_vae_forward.17} parent=0 // pred_region
    _
  $region17: #{bio_vae_forward.17} parent=0 // pred_fallthru
    _
  // Predicated region
  $region18: #{bio_vae_forward.17} parent=0 // pred_check
    _
  $region19: #{bio_vae_forward.17} parent=0 // pred_check_branch
    %963 = sbr.rel (0) target = $region21
  $region20: #{bio_vae_forward.17} parent=0 // pred_region
    _
  $region21: #{bio_vae_forward.17} parent=0 // pred_fallthru
    _

</llo_original>
